<compile_context>
chip_gen: v7x
topology: tpu7x:2x2x1
jax: 0.10.0
libtpu: 0.0.40
codegen_flags: <defaults>
</compile_context>

<pallas_src>
import functools

import jax
import jax.numpy as jnp
from jax.experimental import pallas as pl
from jax.experimental.pallas import tpu as pltpu

# ------------------------- model hyper-parameters ---------------------------
VOCAB_SIZE = 32
WORD_SIZE = 16
THOUGHT_SIZE = 32
MAXLEN = 8   # sequence length (defines IDX = reversed time indices)
BATCH = 2

_HP = jax.lax.Precision.HIGHEST


# --------------------------- fused Pallas kernel -----------------------------
def encoder_kernel(packed_ref, we_ref, th_ref, *, T, B, H, W, V):
    """Fused embedding-gather + tanh + reversed-time LSTM (gate order i,f,g,o).

    packed_ref : (W+H+8+V+T*B, 4H) f32, single VMEM-resident slab holding
                 [ w_ih^T | w_hh^T | bias (padded to 8 rows) |
                   embedding (lane-padded to 4H) | token ids (lane-broadcast) ]
    we_ref     : (T*B, 4H) f32  lane-dense tanh(embedding); lanes >= W are 0
    th_ref     : (B, H)    f32  final hidden state (thoughts)
    """
    TB = T * B
    # Static row offsets into the packed slab (all 8-row aligned for W=16,H=32,V=32).
    r_wih = 0
    r_whh = r_wih + W
    r_b = r_whh + H
    r_emb = r_b + 8
    r_tok = r_emb + V

    w_ih = packed_ref[r_wih:r_wih + W, :]          # (W, 4H)   = W_ih^T
    w_hh = packed_ref[r_whh:r_whh + H, :]          # (H, 4H)   = W_hh^T
    b = packed_ref[r_b:r_b + 1, :]                 # (1, 4H)   = b_ih + b_hh
    emb = packed_ref[r_emb:r_emb + V, :]           # (V, 4H)   table, lanes >= W zero
    tokf = packed_ref[r_tok:r_tok + TB, :]         # (TB, 4H)  token id in every lane

    # ---- embedding gather via exact one-hot matmul, then tanh ---------------
    tok_i = tokf[:, :V].astype(jnp.int32)                               # (TB, V)
    vocab_iota = jax.lax.broadcasted_iota(jnp.int32, (TB, V), 1)
    one_hot = (tok_i == vocab_iota).astype(jnp.float32)                 # (TB, V)
    we_full = jnp.tanh(
        jnp.dot(one_hot, emb, preferred_element_type=jnp.float32,
                precision=_HP))                                         # (TB, 4H)
    we_ref[...] = we_full                          # lane-dense, unmasked store

    # ---- input projection for ALL time steps in one MXU pass ----------------
    x_proj = jnp.dot(we_full[:, :W], w_ih,
                     preferred_element_type=jnp.float32,
                     precision=_HP) + b                                 # (TB, 4H)

    # ---- LSTM recurrence over reversed time (index_select(0, IDX)) ----------
    # TODO(synk): if the Mosaic bundle shows the constant RHS being re-pushed in
    # each of the T dependent dots, stage W_hh once with pltpu.matmul_push_rhs /
    # matmul_acc_lhs / matmul_pop to cut the per-step MXU cadence.
    h = jnp.zeros((B, H), jnp.float32)
    c = jnp.zeros((B, H), jnp.float32)
    for s in range(T):                 # T is small & static -> fully unrolled
        t = T - 1 - s                  # reversed-time order
        gates = x_proj[t * B:(t + 1) * B, :] + jnp.dot(
            h, w_hh, preferred_element_type=jnp.float32, precision=_HP)  # (B, 4H)
        sg = jax.nn.sigmoid(gates)     # one EUP pass over the full 4H lanes
        tg = jnp.tanh(gates)           # one EUP pass
        i = sg[:, 0:H]                 # native lanes 0:H, no realignment
        f = sg[:, H:2 * H]
        g = tg[:, 2 * H:3 * H]
        o = sg[:, 3 * H:4 * H]         # its realignment overlaps the c update
        c = f * c + i * g
        h = o * jnp.tanh(c)
    th_ref[...] = h


def encoder_pallas(tokens_tb, embedding, w_ih, w_hh, b_ih, b_hh):
    """tokens_tb: (T, B) int32. Returns (thoughts (B,H), word_embeddings (T,B,W))."""
    T, B = tokens_tb.shape
    V, W = embedding.shape
    H = w_hh.shape[1]
    LANES = 4 * H
    assert LANES % 128 == 0 and W <= LANES and V <= 8 * LANES
    f32 = jnp.float32

    # ---- pack every input into one lane-dense slab (single input DMA) -------
    w_ih_t = jnp.asarray(w_ih, f32).T                                    # (W, 4H)
    w_hh_t = jnp.asarray(w_hh, f32).T                                    # (H, 4H)
    b_row = (jnp.asarray(b_ih, f32) + jnp.asarray(b_hh, f32)).reshape(1, LANES)
    b_blk = jnp.concatenate([b_row, jnp.zeros((7, LANES), f32)], axis=0)  # pad to 8 rows
    emb_blk = jnp.pad(jnp.asarray(embedding, f32), ((0, 0), (0, LANES - W)))
    tok = jnp.clip(tokens_tb.reshape(T * B), 0, V - 1).astype(f32)        # clamp like jnp.take
    tok_blk = jnp.broadcast_to(tok[:, None], (T * B, LANES))
    packed = jnp.concatenate([w_ih_t, w_hh_t, b_blk, emb_blk, tok_blk], axis=0)

    vmem = pl.BlockSpec(memory_space=pltpu.MemorySpace.VMEM)
    # Note (v7x): grid-less => one TensorCore; add a parallel batch grid axis
    # once B is large enough to split (recurrence is independent across batch).
    we_full, thoughts = pl.pallas_call(
        functools.partial(encoder_kernel, T=T, B=B, H=H, W=W, V=V),
        out_shape=(
            jax.ShapeDtypeStruct((T * B, LANES), f32),   # lane-dense word embeddings
            jax.ShapeDtypeStruct((B, H), f32),           # thoughts
        ),
        in_specs=[vmem],
        out_specs=(vmem, vmem),
    )(packed)

    word_embeddings = we_full[:, :W].reshape(T, B, W)
    return thoughts, word_embeddings


# --------------------------- Encoder forward ---------------------------------
@jax.jit
def encoder_forward(sentences, params):
    """sentences: (B, T) int32 token ids.  Returns (thoughts, word_embeddings)."""
    tokens = sentences.T                                  # (T, B): transpose(0,1)
    return encoder_pallas(
        tokens,
        params["embedding"],
        params["w_ih"], params["w_hh"],
        params["b_ih"], params["b_hh"],
    )


# --------------------------- pure-JAX reference -------------------------------
def encoder_reference(sentences, params):
    tokens = sentences.T
    emb = jnp.tanh(jnp.take(params["embedding"], tokens, axis=0))
    rev = emb[::-1]
    H = THOUGHT_SIZE
    w_ih_t, w_hh_t = params["w_ih"].T, params["w_hh"].T
    b = params["b_ih"] + params["b_hh"]

    def step(carry, x):
        h, c = carry
        gates = (jnp.dot(x, w_ih_t, precision=_HP)
                 + jnp.dot(h, w_hh_t, precision=_HP) + b)
        i = jax.nn.sigmoid(gates[:, 0:H])
        f = jax.nn.sigmoid(gates[:, H:2 * H])
        g = jnp.tanh(gates[:, 2 * H:3 * H])
        o = jax.nn.sigmoid(gates[:, 3 * H:4 * H])
        c = f * c + i * g
        h = o * jnp.tanh(c)
        return (h, c), None

    B = sentences.shape[0]
    h0 = jnp.zeros((B, H), jnp.float32)
    (h, _), _ = jax.lax.scan(step, (h0, h0), rev)
    return h, emb


# ------------------------------- main ----------------------------------------
if __name__ == "__main__":
    key = jax.random.PRNGKey(0)
    k_emb, k_wih, k_whh, k_bih, k_bhh, k_tok = jax.random.split(key, 6)

    params = {
        "embedding": 0.1 * jax.random.normal(
            k_emb, (VOCAB_SIZE, WORD_SIZE), jnp.float32),
        "w_ih": 0.1 * jax.random.normal(
            k_wih, (4 * THOUGHT_SIZE, WORD_SIZE), jnp.float32),
        "w_hh": 0.1 * jax.random.normal(
            k_whh, (4 * THOUGHT_SIZE, THOUGHT_SIZE), jnp.float32),
        "b_ih": 0.1 * jax.random.normal(
            k_bih, (4 * THOUGHT_SIZE,), jnp.float32),
        "b_hh": 0.1 * jax.random.normal(
            k_bhh, (4 * THOUGHT_SIZE,), jnp.float32),
    }

    sentences = jax.random.randint(
        k_tok, (BATCH, MAXLEN), 0, VOCAB_SIZE, dtype=jnp.int32)

    thoughts, word_embeddings = encoder_forward(sentences, params)
    jax.block_until_ready((thoughts, word_embeddings))

    ref_thoughts, ref_emb = encoder_reference(sentences, params)
    assert thoughts.shape == (BATCH, THOUGHT_SIZE)
    assert word_embeddings.shape == (MAXLEN, BATCH, WORD_SIZE)
    assert jnp.allclose(thoughts, ref_thoughts, atol=1e-5, rtol=1e-5)
    assert jnp.allclose(word_embeddings, ref_emb, atol=1e-5, rtol=1e-5)

    print("KERNEL_OK")
</pallas_src>

<mosaic_0001>
module attributes {stable_mosaic.version = 11 : i64} {
  func.func @encoder_kernel(%arg0: memref<104x128xf32, #tpu.memory_space<vmem>>, %arg1: memref<16x128xf32, #tpu.memory_space<vmem>>, %arg2: memref<2x32xf32, #tpu.memory_space<vmem>>) attributes {dimension_semantics = [], scalar_prefetch = 0 : i64, scratch_operands = 0 : i64, tpu.core_type = #tpu.core_type<tc>} {
    %c0 = arith.constant 0 : index
    %c0_0 = arith.constant 0 : index
    %0 = vector.load %arg0[%c0, %c0_0] : memref<104x128xf32, #tpu.memory_space<vmem>>, vector<16x128xf32>
    %c16 = arith.constant 16 : index
    %c0_1 = arith.constant 0 : index
    %1 = vector.load %arg0[%c16, %c0_1] : memref<104x128xf32, #tpu.memory_space<vmem>>, vector<32x128xf32>
    %c48 = arith.constant 48 : index
    %c0_2 = arith.constant 0 : index
    %2 = vector.load %arg0[%c48, %c0_2] : memref<104x128xf32, #tpu.memory_space<vmem>>, vector<1x128xf32>
    %c56 = arith.constant 56 : index
    %c0_3 = arith.constant 0 : index
    %3 = vector.load %arg0[%c56, %c0_3] : memref<104x128xf32, #tpu.memory_space<vmem>>, vector<32x128xf32>
    %c88 = arith.constant 88 : index
    %c0_4 = arith.constant 0 : index
    %4 = vector.load %arg0[%c88, %c0_4] : memref<104x128xf32, #tpu.memory_space<vmem>>, vector<16x128xf32>
    %5 = vector.extract_strided_slice %4 {offsets = [0, 0], sizes = [16, 32], strides = [1, 1]} : vector<16x128xf32> to vector<16x32xf32>
    %6 = arith.fptosi %5 : vector<16x32xf32> to vector<16x32xi32>
    %7 = tpu.iota {dimensions = array<i32: 1>} : vector<16x32xi32>
    %8 = arith.cmpi eq, %6, %7 : vector<16x32xi32>
    %9 = arith.extui %8 : vector<16x32xi1> to vector<16x32xi32>
    %10 = arith.sitofp %9 : vector<16x32xi32> to vector<16x32xf32>
    %cst = arith.constant dense<0.000000e+00> : vector<16x128xf32>
    %11 = tpu.matmul %10, %3, %cst {dimension_numbers = #tpu.dot_dimension_numbers<[1], [0], [0], [1], [0, 0, 1, 1], [], []>, precision = #tpu.contract_precision<fp32>} : vector<16x32xf32>, vector<32x128xf32>, vector<16x128xf32> -> vector<16x128xf32>
    %12 = math.tanh %11 : vector<16x128xf32>
    %c0_5 = arith.constant 0 : index
    %c0_6 = arith.constant 0 : index
    %13 = vector.load %arg1[%c0_5, %c0_6] : memref<16x128xf32, #tpu.memory_space<vmem>>, vector<16x128xf32>
    tpu.vector_store %arg1[%c0_5, %c0_6], %12 {strides = array<i32>} : memref<16x128xf32, #tpu.memory_space<vmem>>, vector<16x128xf32>,
    %14 = vector.extract_strided_slice %12 {offsets = [0, 0], sizes = [16, 16], strides = [1, 1]} : vector<16x128xf32> to vector<16x16xf32>
    %cst_7 = arith.constant dense<0.000000e+00> : vector<16x128xf32>
    %15 = tpu.matmul %14, %0, %cst_7 {dimension_numbers = #tpu.dot_dimension_numbers<[1], [0], [0], [1], [0, 0, 1, 1], [], []>, precision = #tpu.contract_precision<fp32>} : vector<16x16xf32>, vector<16x128xf32>, vector<16x128xf32> -> vector<16x128xf32>
    %16 = vector.broadcast %2 : vector<1x128xf32> to vector<16x128xf32>
    %17 = arith.addf %15, %16 : vector<16x128xf32>
    %cst_8 = arith.constant 0.000000e+00 : f32
    %18 = vector.broadcast %cst_8 : f32 to vector<2x32xf32>
    %cst_9 = arith.constant 0.000000e+00 : f32
    %19 = vector.broadcast %cst_9 : f32 to vector<2x32xf32>
    %20 = vector.extract_strided_slice %17 {offsets = [14, 0], sizes = [2, 128], strides = [1, 1]} : vector<16x128xf32> to vector<2x128xf32>
    %cst_10 = arith.constant dense<0.000000e+00> : vector<2x128xf32>
    %21 = tpu.matmul %18, %1, %cst_10 {dimension_numbers = #tpu.dot_dimension_numbers<[1], [0], [0], [1], [0, 0, 1, 1], [], []>, precision = #tpu.contract_precision<fp32>} : vector<2x32xf32>, vector<32x128xf32>, vector<2x128xf32> -> vector<2x128xf32>
    %22 = arith.addf %20, %21 : vector<2x128xf32>
    %23 = arith.negf %22 : vector<2x128xf32>
    %24 = math.exp %23 : vector<2x128xf32>
    %cst_11 = arith.constant 1.000000e+00 : f32
    %25 = vector.broadcast %cst_11 : f32 to vector<2x128xf32>
    %26 = arith.addf %25, %24 : vector<2x128xf32>
    %27 = arith.divf %25, %26 : vector<2x128xf32>
    %28 = math.tanh %22 : vector<2x128xf32>
    %29 = vector.extract_strided_slice %27 {offsets = [0, 0], sizes = [2, 32], strides = [1, 1]} : vector<2x128xf32> to vector<2x32xf32>
    %30 = vector.extract_strided_slice %27 {offsets = [0, 32], sizes = [2, 32], strides = [1, 1]} : vector<2x128xf32> to vector<2x32xf32>
    %31 = vector.extract_strided_slice %28 {offsets = [0, 64], sizes = [2, 32], strides = [1, 1]} : vector<2x128xf32> to vector<2x32xf32>
    %32 = vector.extract_strided_slice %27 {offsets = [0, 96], sizes = [2, 32], strides = [1, 1]} : vector<2x128xf32> to vector<2x32xf32>
    %33 = arith.mulf %30, %19 : vector<2x32xf32>
    %34 = arith.mulf %29, %31 : vector<2x32xf32>
    %35 = arith.addf %33, %34 : vector<2x32xf32>
    %36 = math.tanh %35 : vector<2x32xf32>
    %37 = arith.mulf %32, %36 : vector<2x32xf32>
    %38 = vector.extract_strided_slice %17 {offsets = [12, 0], sizes = [2, 128], strides = [1, 1]} : vector<16x128xf32> to vector<2x128xf32>
    %cst_12 = arith.constant dense<0.000000e+00> : vector<2x128xf32>
    %39 = tpu.matmul %37, %1, %cst_12 {dimension_numbers = #tpu.dot_dimension_numbers<[1], [0], [0], [1], [0, 0, 1, 1], [], []>, precision = #tpu.contract_precision<fp32>} : vector<2x32xf32>, vector<32x128xf32>, vector<2x128xf32> -> vector<2x128xf32>
    %40 = arith.addf %38, %39 : vector<2x128xf32>
    %41 = arith.negf %40 : vector<2x128xf32>
    %42 = math.exp %41 : vector<2x128xf32>
    %cst_13 = arith.constant 1.000000e+00 : f32
    %43 = vector.broadcast %cst_13 : f32 to vector<2x128xf32>
    %44 = arith.addf %43, %42 : vector<2x128xf32>
    %45 = arith.divf %43, %44 : vector<2x128xf32>
    %46 = math.tanh %40 : vector<2x128xf32>
    %47 = vector.extract_strided_slice %45 {offsets = [0, 0], sizes = [2, 32], strides = [1, 1]} : vector<2x128xf32> to vector<2x32xf32>
    %48 = vector.extract_strided_slice %45 {offsets = [0, 32], sizes = [2, 32], strides = [1, 1]} : vector<2x128xf32> to vector<2x32xf32>
    %49 = vector.extract_strided_slice %46 {offsets = [0, 64], sizes = [2, 32], strides = [1, 1]} : vector<2x128xf32> to vector<2x32xf32>
    %50 = vector.extract_strided_slice %45 {offsets = [0, 96], sizes = [2, 32], strides = [1, 1]} : vector<2x128xf32> to vector<2x32xf32>
    %51 = arith.mulf %48, %35 : vector<2x32xf32>
    %52 = arith.mulf %47, %49 : vector<2x32xf32>
    %53 = arith.addf %51, %52 : vector<2x32xf32>
    %54 = math.tanh %53 : vector<2x32xf32>
    %55 = arith.mulf %50, %54 : vector<2x32xf32>
    %56 = vector.extract_strided_slice %17 {offsets = [10, 0], sizes = [2, 128], strides = [1, 1]} : vector<16x128xf32> to vector<2x128xf32>
    %cst_14 = arith.constant dense<0.000000e+00> : vector<2x128xf32>
    %57 = tpu.matmul %55, %1, %cst_14 {dimension_numbers = #tpu.dot_dimension_numbers<[1], [0], [0], [1], [0, 0, 1, 1], [], []>, precision = #tpu.contract_precision<fp32>} : vector<2x32xf32>, vector<32x128xf32>, vector<2x128xf32> -> vector<2x128xf32>
    %58 = arith.addf %56, %57 : vector<2x128xf32>
    %59 = arith.negf %58 : vector<2x128xf32>
    %60 = math.exp %59 : vector<2x128xf32>
    %cst_15 = arith.constant 1.000000e+00 : f32
    %61 = vector.broadcast %cst_15 : f32 to vector<2x128xf32>
    %62 = arith.addf %61, %60 : vector<2x128xf32>
    %63 = arith.divf %61, %62 : vector<2x128xf32>
    %64 = math.tanh %58 : vector<2x128xf32>
    %65 = vector.extract_strided_slice %63 {offsets = [0, 0], sizes = [2, 32], strides = [1, 1]} : vector<2x128xf32> to vector<2x32xf32>
    %66 = vector.extract_strided_slice %63 {offsets = [0, 32], sizes = [2, 32], strides = [1, 1]} : vector<2x128xf32> to vector<2x32xf32>
    %67 = vector.extract_strided_slice %64 {offsets = [0, 64], sizes = [2, 32], strides = [1, 1]} : vector<2x128xf32> to vector<2x32xf32>
    %68 = vector.extract_strided_slice %63 {offsets = [0, 96], sizes = [2, 32], strides = [1, 1]} : vector<2x128xf32> to vector<2x32xf32>
    %69 = arith.mulf %66, %53 : vector<2x32xf32>
    %70 = arith.mulf %65, %67 : vector<2x32xf32>
    %71 = arith.addf %69, %70 : vector<2x32xf32>
    %72 = math.tanh %71 : vector<2x32xf32>
    %73 = arith.mulf %68, %72 : vector<2x32xf32>
    %74 = vector.extract_strided_slice %17 {offsets = [8, 0], sizes = [2, 128], strides = [1, 1]} : vector<16x128xf32> to vector<2x128xf32>
    %cst_16 = arith.constant dense<0.000000e+00> : vector<2x128xf32>
    %75 = tpu.matmul %73, %1, %cst_16 {dimension_numbers = #tpu.dot_dimension_numbers<[1], [0], [0], [1], [0, 0, 1, 1], [], []>, precision = #tpu.contract_precision<fp32>} : vector<2x32xf32>, vector<32x128xf32>, vector<2x128xf32> -> vector<2x128xf32>
    %76 = arith.addf %74, %75 : vector<2x128xf32>
    %77 = arith.negf %76 : vector<2x128xf32>
    %78 = math.exp %77 : vector<2x128xf32>
    %cst_17 = arith.constant 1.000000e+00 : f32
    %79 = vector.broadcast %cst_17 : f32 to vector<2x128xf32>
    %80 = arith.addf %79, %78 : vector<2x128xf32>
    %81 = arith.divf %79, %80 : vector<2x128xf32>
    %82 = math.tanh %76 : vector<2x128xf32>
    %83 = vector.extract_strided_slice %81 {offsets = [0, 0], sizes = [2, 32], strides = [1, 1]} : vector<2x128xf32> to vector<2x32xf32>
    %84 = vector.extract_strided_slice %81 {offsets = [0, 32], sizes = [2, 32], strides = [1, 1]} : vector<2x128xf32> to vector<2x32xf32>
    %85 = vector.extract_strided_slice %82 {offsets = [0, 64], sizes = [2, 32], strides = [1, 1]} : vector<2x128xf32> to vector<2x32xf32>
    %86 = vector.extract_strided_slice %81 {offsets = [0, 96], sizes = [2, 32], strides = [1, 1]} : vector<2x128xf32> to vector<2x32xf32>
    %87 = arith.mulf %84, %71 : vector<2x32xf32>
    %88 = arith.mulf %83, %85 : vector<2x32xf32>
    %89 = arith.addf %87, %88 : vector<2x32xf32>
    %90 = math.tanh %89 : vector<2x32xf32>
    %91 = arith.mulf %86, %90 : vector<2x32xf32>
    %92 = vector.extract_strided_slice %17 {offsets = [6, 0], sizes = [2, 128], strides = [1, 1]} : vector<16x128xf32> to vector<2x128xf32>
    %cst_18 = arith.constant dense<0.000000e+00> : vector<2x128xf32>
    %93 = tpu.matmul %91, %1, %cst_18 {dimension_numbers = #tpu.dot_dimension_numbers<[1], [0], [0], [1], [0, 0, 1, 1], [], []>, precision = #tpu.contract_precision<fp32>} : vector<2x32xf32>, vector<32x128xf32>, vector<2x128xf32> -> vector<2x128xf32>
    %94 = arith.addf %92, %93 : vector<2x128xf32>
    %95 = arith.negf %94 : vector<2x128xf32>
    %96 = math.exp %95 : vector<2x128xf32>
    %cst_19 = arith.constant 1.000000e+00 : f32
    %97 = vector.broadcast %cst_19 : f32 to vector<2x128xf32>
    %98 = arith.addf %97, %96 : vector<2x128xf32>
    %99 = arith.divf %97, %98 : vector<2x128xf32>
    %100 = math.tanh %94 : vector<2x128xf32>
    %101 = vector.extract_strided_slice %99 {offsets = [0, 0], sizes = [2, 32], strides = [1, 1]} : vector<2x128xf32> to vector<2x32xf32>
    %102 = vector.extract_strided_slice %99 {offsets = [0, 32], sizes = [2, 32], strides = [1, 1]} : vector<2x128xf32> to vector<2x32xf32>
    %103 = vector.extract_strided_slice %100 {offsets = [0, 64], sizes = [2, 32], strides = [1, 1]} : vector<2x128xf32> to vector<2x32xf32>
    %104 = vector.extract_strided_slice %99 {offsets = [0, 96], sizes = [2, 32], strides = [1, 1]} : vector<2x128xf32> to vector<2x32xf32>
    %105 = arith.mulf %102, %89 : vector<2x32xf32>
    %106 = arith.mulf %101, %103 : vector<2x32xf32>
    %107 = arith.addf %105, %106 : vector<2x32xf32>
    %108 = math.tanh %107 : vector<2x32xf32>
    %109 = arith.mulf %104, %108 : vector<2x32xf32>
    %110 = vector.extract_strided_slice %17 {offsets = [4, 0], sizes = [2, 128], strides = [1, 1]} : vector<16x128xf32> to vector<2x128xf32>
    %cst_20 = arith.constant dense<0.000000e+00> : vector<2x128xf32>
    %111 = tpu.matmul %109, %1, %cst_20 {dimension_numbers = #tpu.dot_dimension_numbers<[1], [0], [0], [1], [0, 0, 1, 1], [], []>, precision = #tpu.contract_precision<fp32>} : vector<2x32xf32>, vector<32x128xf32>, vector<2x128xf32> -> vector<2x128xf32>
    %112 = arith.addf %110, %111 : vector<2x128xf32>
    %113 = arith.negf %112 : vector<2x128xf32>
    %114 = math.exp %113 : vector<2x128xf32>
    %cst_21 = arith.constant 1.000000e+00 : f32
    %115 = vector.broadcast %cst_21 : f32 to vector<2x128xf32>
    %116 = arith.addf %115, %114 : vector<2x128xf32>
    %117 = arith.divf %115, %116 : vector<2x128xf32>
    %118 = math.tanh %112 : vector<2x128xf32>
    %119 = vector.extract_strided_slice %117 {offsets = [0, 0], sizes = [2, 32], strides = [1, 1]} : vector<2x128xf32> to vector<2x32xf32>
    %120 = vector.extract_strided_slice %117 {offsets = [0, 32], sizes = [2, 32], strides = [1, 1]} : vector<2x128xf32> to vector<2x32xf32>
    %121 = vector.extract_strided_slice %118 {offsets = [0, 64], sizes = [2, 32], strides = [1, 1]} : vector<2x128xf32> to vector<2x32xf32>
    %122 = vector.extract_strided_slice %117 {offsets = [0, 96], sizes = [2, 32], strides = [1, 1]} : vector<2x128xf32> to vector<2x32xf32>
    %123 = arith.mulf %120, %107 : vector<2x32xf32>
    %124 = arith.mulf %119, %121 : vector<2x32xf32>
    %125 = arith.addf %123, %124 : vector<2x32xf32>
    %126 = math.tanh %125 : vector<2x32xf32>
    %127 = arith.mulf %122, %126 : vector<2x32xf32>
    %128 = vector.extract_strided_slice %17 {offsets = [2, 0], sizes = [2, 128], strides = [1, 1]} : vector<16x128xf32> to vector<2x128xf32>
    %cst_22 = arith.constant dense<0.000000e+00> : vector<2x128xf32>
    %129 = tpu.matmul %127, %1, %cst_22 {dimension_numbers = #tpu.dot_dimension_numbers<[1], [0], [0], [1], [0, 0, 1, 1], [], []>, precision = #tpu.contract_precision<fp32>} : vector<2x32xf32>, vector<32x128xf32>, vector<2x128xf32> -> vector<2x128xf32>
    %130 = arith.addf %128, %129 : vector<2x128xf32>
    %131 = arith.negf %130 : vector<2x128xf32>
    %132 = math.exp %131 : vector<2x128xf32>
    %cst_23 = arith.constant 1.000000e+00 : f32
    %133 = vector.broadcast %cst_23 : f32 to vector<2x128xf32>
    %134 = arith.addf %133, %132 : vector<2x128xf32>
    %135 = arith.divf %133, %134 : vector<2x128xf32>
    %136 = math.tanh %130 : vector<2x128xf32>
    %137 = vector.extract_strided_slice %135 {offsets = [0, 0], sizes = [2, 32], strides = [1, 1]} : vector<2x128xf32> to vector<2x32xf32>
    %138 = vector.extract_strided_slice %135 {offsets = [0, 32], sizes = [2, 32], strides = [1, 1]} : vector<2x128xf32> to vector<2x32xf32>
    %139 = vector.extract_strided_slice %136 {offsets = [0, 64], sizes = [2, 32], strides = [1, 1]} : vector<2x128xf32> to vector<2x32xf32>
    %140 = vector.extract_strided_slice %135 {offsets = [0, 96], sizes = [2, 32], strides = [1, 1]} : vector<2x128xf32> to vector<2x32xf32>
    %141 = arith.mulf %138, %125 : vector<2x32xf32>
    %142 = arith.mulf %137, %139 : vector<2x32xf32>
    %143 = arith.addf %141, %142 : vector<2x32xf32>
    %144 = math.tanh %143 : vector<2x32xf32>
    %145 = arith.mulf %140, %144 : vector<2x32xf32>
    %146 = vector.extract_strided_slice %17 {offsets = [0, 0], sizes = [2, 128], strides = [1, 1]} : vector<16x128xf32> to vector<2x128xf32>
    %cst_24 = arith.constant dense<0.000000e+00> : vector<2x128xf32>
    %147 = tpu.matmul %145, %1, %cst_24 {dimension_numbers = #tpu.dot_dimension_numbers<[1], [0], [0], [1], [0, 0, 1, 1], [], []>, precision = #tpu.contract_precision<fp32>} : vector<2x32xf32>, vector<32x128xf32>, vector<2x128xf32> -> vector<2x128xf32>
    %148 = arith.addf %146, %147 : vector<2x128xf32>
    %149 = arith.negf %148 : vector<2x128xf32>
    %150 = math.exp %149 : vector<2x128xf32>
    %cst_25 = arith.constant 1.000000e+00 : f32
    %151 = vector.broadcast %cst_25 : f32 to vector<2x128xf32>
    %152 = arith.addf %151, %150 : vector<2x128xf32>
    %153 = arith.divf %151, %152 : vector<2x128xf32>
    %154 = math.tanh %148 : vector<2x128xf32>
    %155 = vector.extract_strided_slice %153 {offsets = [0, 0], sizes = [2, 32], strides = [1, 1]} : vector<2x128xf32> to vector<2x32xf32>
    %156 = vector.extract_strided_slice %153 {offsets = [0, 32], sizes = [2, 32], strides = [1, 1]} : vector<2x128xf32> to vector<2x32xf32>
    %157 = vector.extract_strided_slice %154 {offsets = [0, 64], sizes = [2, 32], strides = [1, 1]} : vector<2x128xf32> to vector<2x32xf32>
    %158 = vector.extract_strided_slice %153 {offsets = [0, 96], sizes = [2, 32], strides = [1, 1]} : vector<2x128xf32> to vector<2x32xf32>
    %159 = arith.mulf %156, %143 : vector<2x32xf32>
    %160 = arith.mulf %155, %157 : vector<2x32xf32>
    %161 = arith.addf %159, %160 : vector<2x32xf32>
    %162 = math.tanh %161 : vector<2x32xf32>
    %163 = arith.mulf %158, %162 : vector<2x32xf32>
    %c0_26 = arith.constant 0 : index
    %c0_27 = arith.constant 0 : index
    %164 = vector.load %arg2[%c0_26, %c0_27] : memref<2x32xf32, #tpu.memory_space<vmem>>, vector<2x32xf32>
    tpu.vector_store %arg2[%c0_26, %c0_27], %163 {strides = array<i32>} : memref<2x32xf32, #tpu.memory_space<vmem>>, vector<2x32xf32>,
    return
  }
}

</mosaic_0001>

<llo_original>
// kernel: encoder_forward.1
$region0: #{encoder_forward.1}
  #allocation0 [shape = 'u32[]', space=smem, size = 0x4, offset = 0x4, fixed_abs, tag = 'smem constant byte address 0x4 - core index']
  #allocation1 [shape = 'u32[144,128]{1,0:T(1,128)}', space=vmem, size = 0x12000, scoped, tag = 'internal scratch']
  %s0 = inlined_call_operand.vmem [shape: f32[104,128], index: 0, kind: input, shape index: {}]
  %s1 = inlined_call_operand.hbm [shape: f32[16,128], index: 1, kind: output, shape index: {0}]
  %s2 = inlined_call_operand.hbm [shape: f32[2,32], index: 2, kind: output, shape index: {1}]
  %3 = xla_tuple %s1, %s2
  %s4 = sld [smem:[#allocation0]]
  $region22: #{encoder_forward.1} parent=0
    _
  %s6 = ssub.s32 1, %s4
  %s7 = scalar_select 0, %s6, %s4
  $region1: #{encoder_forward.1} parent=0
    #allocation2 [shape = 'u8[8192]{0}', space=vmem, size = 0x2000, scoped, tag = 'output window, operand 0, single buffered']
    #allocation3 [shape = 's32[1]{0}', space=sflag, size = 0x4, scoped, tag = 'scoped memory for encoder_forward.1']
    #allocation4 [shape = 'u8[1024]{0}', space=vmem, size = 0x400, scoped, tag = 'output window, operand 1, single buffered']
    #allocation5 [shape = 's32[1]{0}', space=sflag, size = 0x4, scoped, tag = 'scoped memory for encoder_forward.1']
    %8 = vsyncpa [#allocation3], 0
    %9 = vsyncpa [#allocation5], 0
    // Predicated region
    $region2: #{encoder_forward.1} parent=1 // pred_check
      _
    $region3: #{encoder_forward.1} parent=1 // pred_check_branch
      %11 = sbr.rel (0) target = $region5
    $region4: #{encoder_forward.1} parent=1 // pred_region
      _
    $region5: #{encoder_forward.1} parent=1 // pred_fallthru
      _
    %v12 = vld [vmem:[%s0] sm:$0xff]
    %v13 = vld [vmem:[%s0 + $0x8] sm:$0xff]
    %v14 = vld [vmem:[%s0 + $0x10] sm:$0xff]
    %v15 = vld [vmem:[%s0 + $0x18] sm:$0xff]
    %v16 = vld [vmem:[%s0 + $0x20] sm:$0xff]
    %v17 = vld [vmem:[%s0 + $0x28] sm:$0xff]
    %v18 = vld [vmem:[%s0 + $0x30] sm:$0x1]
    %v19 = vld [vmem:[%s0 + $0x38] sm:$0xff]
    %v20 = vld [vmem:[%s0 + $0x40] sm:$0xff]
    %v21 = vld [vmem:[%s0 + $0x48] sm:$0xff]
    %v22 = vld [vmem:[%s0 + $0x50] sm:$0xff]
    %v23 = vld [vmem:[%s0 + $0x58] sm:$0xff]
    %v24 = vld [vmem:[%s0 + $0x60] sm:$0xff]
    %v25 = vcvt.f32.s32.to.zero.pseudo %v23
    %v26 = vcvt.f32.s32.to.zero.pseudo %v24
    %v27 = vlaneseq
    %v28 = vand.u32 %v27, 127
    %vm29 = vcmp.eq.s32.totalorder %v25, %v28
    %vm30 = vcmp.eq.s32.totalorder %v26, %v28
    %v31 = vsel %vm29, 1, 0
    %v32 = vsel %vm30, 1, 0
    %v33 = vcvt.s32.f32 %v31
    %v34 = vcvt.s32.f32 %v32
    %vm35 = vcmask 261120
    %v37 = vsel %vm35, %v33, 0
    %v40 = vsel %vm35, %v34, 0
    %42 = vmatprep.subr.mxu0 0.0
    %v43 = vand.u32 %v19, 4294901760
    %44 = vmatpush1.msra.mxu0 %v43
    %45 = vmatprep.subr.mxu0 0.0
    %v46 = vand.u32 %v20, 4294901760
    %47 = vmatpush1.msra.mxu0 %v46
    %48 = vmatprep.subr.mxu0 0.0
    %v49 = vand.u32 %v21, 4294901760
    %50 = vmatpush1.msra.mxu0 %v49
    %51 = vmatprep.subr.mxu0 0.0
    %v52 = vand.u32 %v22, 4294901760
    %53 = vmatpush1.msra.mxu0 %v52
    %54 = vmatprep.subr.mxu0 0.0
    %55 = vmatpush1.msra.mxu0 0.0
    %56 = vmatprep.subr.mxu0 0.0
    %57 = vmatpush1.msra.mxu0 0.0
    %58 = vmatprep.subr.mxu0 0.0
    %59 = vmatpush1.msra.mxu0 0.0
    %60 = vmatprep.subr.mxu0 0.0
    %61 = vmatpush1.msra.mxu0 0.0
    %62 = vmatprep.subr.mxu0 0.0
    %63 = vmatpush1.msra.mxu0 0.0
    %64 = vmatprep.subr.mxu0 0.0
    %65 = vmatpush1.msra.mxu0 0.0
    %66 = vmatprep.subr.mxu0 0.0
    %67 = vmatpush1.msra.mxu0 0.0
    %68 = vmatprep.subr.mxu0 0.0
    %69 = vmatpush1.msra.mxu0 0.0
    %70 = vmatprep.subr.mxu0 0.0
    %71 = vmatpush1.msra.mxu0 0.0
    %72 = vmatprep.subr.mxu0 0.0
    %73 = vmatpush1.msra.mxu0 0.0
    %74 = vmatprep.subr.mxu0 0.0
    %75 = vmatpush1.msra.mxu0 0.0
    %76 = vmatprep.subr.mxu0 0.0
    %77 = vmatpush1.msra.mxu0 0.0
    %78 = vmatprep.subr.mxu0 0.0
    %79 = vmatpush1.msra.mxu0 0.0
    %80 = vmatprep.subr.mxu0 0.0
    %81 = vmatpush1.msra.mxu0 0.0
    %82 = vmatprep.subr.mxu0 0.0
    %83 = vmatpush1.msra.mxu0 0.0
    %84 = vmatprep.subr.mxu0 0.0
    %85 = vmatpush1.msra.mxu0 0.0
    %86 = vmatprep.subr.mxu0 0.0
    %87 = vmatpush1.msra.mxu0 0.0
    %88 = vmatprep.subr.mxu0 0.0
    %89 = vmatpush1.msra.mxu0 0.0
    %90 = vmatprep.subr.mxu0 0.0
    %91 = vmatpush1.msra.mxu0 0.0
    %92 = vmatprep.subr.mxu0 0.0
    %93 = vmatpush1.msra.mxu0 0.0
    %94 = vmatprep.subr.mxu0 0.0
    %95 = vmatpush1.msra.mxu0 0.0
    %96 = vmatprep.subr.mxu0 0.0
    %97 = vmatpush1.msra.mxu0 0.0
    %98 = vmatprep.subr.mxu0 0.0
    %99 = vmatpush1.msra.mxu0 0.0
    %100 = vmatprep.subr.mxu0 0.0
    %101 = vmatpush1.msra.mxu0 0.0
    %102 = vmatprep.subr.mxu0 0.0
    %103 = vmatpush1.msra.mxu0 0.0
    %104 = vmatprep.subr.mxu0 0.0
    %105 = vmatpush1.msra.mxu0 0.0
    %106 = vmatprep.subr.mxu0 0.0
    %107 = vmatpush1.msra.mxu0 0.0
    %108 = vmatprep.subr.mxu0 0.0
    %109 = vmatpush1.msra.mxu0 0.0
    %110 = vmatprep.mubr.f32.mxu0 0.0
    %v111 = vand.u32 %v37, 4294901760
    %v112 = vsub.f32 %v37, %v111
    %v113 = vand.u32 %v112, 4294901760
    %v114 = vsub.f32 %v112, %v113
    %v115 = vand.u32 %v114, 4294901760
    %116 = vmatmul.mubr.f32.gmra.mrb[0].mxu0 %v115
    %v117 = vpop.f32.mrb[0].mxu0
    %v118 = vadd.f32 0.0, %v117
    %v119 = vpop.f32.mrb[0].mxu0
    %120 = vmatprep.mubr.f32.mxu0 0.0
    %v121 = vand.u32 %v40, 4294901760
    %v122 = vsub.f32 %v40, %v121
    %v123 = vand.u32 %v122, 4294901760
    %v124 = vsub.f32 %v122, %v123
    %v125 = vand.u32 %v124, 4294901760
    %126 = vmatmul.mubr.f32.gmra.mrb[0].mxu0 %v125
    %v127 = vpop.f32.mrb[0].mxu0
    %v128 = vadd.f32 0.0, %v127
    %v129 = vpop.f32.mrb[0].mxu0
    %130 = vdwg.mxu0
    %131 = vmatprep.subr.mxu0 0.0
    %v132 = vand.u32 %v19, 4294901760
    %v133 = vsub.f32 %v19, %v132
    %v134 = vand.u32 %v133, 4294901760
    %v135 = vsub.f32 %v133, %v134
    %v136 = vand.u32 %v135, 4294901760
    %137 = vmatpush1.msra.mxu0 %v136
    %138 = vmatprep.subr.mxu0 0.0
    %v139 = vand.u32 %v20, 4294901760
    %v140 = vsub.f32 %v20, %v139
    %v141 = vand.u32 %v140, 4294901760
    %v142 = vsub.f32 %v140, %v141
    %v143 = vand.u32 %v142, 4294901760
    %144 = vmatpush1.msra.mxu0 %v143
    %145 = vmatprep.subr.mxu0 0.0
    %v146 = vand.u32 %v21, 4294901760
    %v147 = vsub.f32 %v21, %v146
    %v148 = vand.u32 %v147, 4294901760
    %v149 = vsub.f32 %v147, %v148
    %v150 = vand.u32 %v149, 4294901760
    %151 = vmatpush1.msra.mxu0 %v150
    %152 = vmatprep.subr.mxu0 0.0
    %v153 = vand.u32 %v22, 4294901760
    %v154 = vsub.f32 %v22, %v153
    %v155 = vand.u32 %v154, 4294901760
    %v156 = vsub.f32 %v154, %v155
    %v157 = vand.u32 %v156, 4294901760
    %158 = vmatpush1.msra.mxu0 %v157
    %159 = vmatprep.subr.mxu0 0.0
    %160 = vmatpush1.msra.mxu0 0.0
    %161 = vmatprep.subr.mxu0 0.0
    %162 = vmatpush1.msra.mxu0 0.0
    %163 = vmatprep.subr.mxu0 0.0
    %164 = vmatpush1.msra.mxu0 0.0
    %165 = vmatprep.subr.mxu0 0.0
    %166 = vmatpush1.msra.mxu0 0.0
    %167 = vmatprep.subr.mxu0 0.0
    %168 = vmatpush1.msra.mxu0 0.0
    %169 = vmatprep.subr.mxu0 0.0
    %170 = vmatpush1.msra.mxu0 0.0
    %171 = vmatprep.subr.mxu0 0.0
    %172 = vmatpush1.msra.mxu0 0.0
    %173 = vmatprep.subr.mxu0 0.0
    %174 = vmatpush1.msra.mxu0 0.0
    %175 = vmatprep.subr.mxu0 0.0
    %176 = vmatpush1.msra.mxu0 0.0
    %177 = vmatprep.subr.mxu0 0.0
    %178 = vmatpush1.msra.mxu0 0.0
    %179 = vmatprep.subr.mxu0 0.0
    %180 = vmatpush1.msra.mxu0 0.0
    %181 = vmatprep.subr.mxu0 0.0
    %182 = vmatpush1.msra.mxu0 0.0
    %183 = vmatprep.subr.mxu0 0.0
    %184 = vmatpush1.msra.mxu0 0.0
    %185 = vmatprep.subr.mxu0 0.0
    %186 = vmatpush1.msra.mxu0 0.0
    %187 = vmatprep.subr.mxu0 0.0
    %188 = vmatpush1.msra.mxu0 0.0
    %189 = vmatprep.subr.mxu0 0.0
    %190 = vmatpush1.msra.mxu0 0.0
    %191 = vmatprep.subr.mxu0 0.0
    %192 = vmatpush1.msra.mxu0 0.0
    %193 = vmatprep.subr.mxu0 0.0
    %194 = vmatpush1.msra.mxu0 0.0
    %195 = vmatprep.subr.mxu0 0.0
    %196 = vmatpush1.msra.mxu0 0.0
    %197 = vmatprep.subr.mxu0 0.0
    %198 = vmatpush1.msra.mxu0 0.0
    %199 = vmatprep.subr.mxu0 0.0
    %200 = vmatpush1.msra.mxu0 0.0
    %201 = vmatprep.subr.mxu0 0.0
    %202 = vmatpush1.msra.mxu0 0.0
    %203 = vmatprep.subr.mxu0 0.0
    %204 = vmatpush1.msra.mxu0 0.0
    %205 = vmatprep.subr.mxu0 0.0
    %206 = vmatpush1.msra.mxu0 0.0
    %207 = vmatprep.subr.mxu0 0.0
    %208 = vmatpush1.msra.mxu0 0.0
    %209 = vmatprep.subr.mxu0 0.0
    %210 = vmatpush1.msra.mxu0 0.0
    %211 = vmatprep.subr.mxu0 0.0
    %212 = vmatpush1.msra.mxu0 0.0
    %213 = vmatprep.subr.mxu0 0.0
    %214 = vmatpush1.msra.mxu0 0.0
    %215 = vmatprep.mubr.f32.mxu0 0.0
    %v216 = vand.u32 %v37, 4294901760
    %217 = vmatmul.mubr.f32.gmra.mrb[0].mxu0 %v216
    %v218 = vpop.f32.mrb[0].mxu0
    %v219 = vadd.f32 %v118, %v218
    %v220 = vpop.f32.mrb[0].mxu0
    %221 = vmatprep.mubr.f32.mxu0 0.0
    %v222 = vand.u32 %v40, 4294901760
    %223 = vmatmul.mubr.f32.gmra.mrb[0].mxu0 %v222
    %v224 = vpop.f32.mrb[0].mxu0
    %v225 = vadd.f32 %v128, %v224
    %v226 = vpop.f32.mrb[0].mxu0
    %227 = vdwg.mxu0
    %228 = vmatprep.subr.mxu0 0.0
    %v229 = vand.u32 %v19, 4294901760
    %v230 = vsub.f32 %v19, %v229
    %231 = vmatpush1.msra.mxu0 %v230
    %232 = vmatprep.subr.mxu0 0.0
    %v233 = vand.u32 %v20, 4294901760
    %v234 = vsub.f32 %v20, %v233
    %235 = vmatpush1.msra.mxu0 %v234
    %236 = vmatprep.subr.mxu0 0.0
    %v237 = vand.u32 %v21, 4294901760
    %v238 = vsub.f32 %v21, %v237
    %239 = vmatpush1.msra.mxu0 %v238
    %240 = vmatprep.subr.mxu0 0.0
    %v241 = vand.u32 %v22, 4294901760
    %v242 = vsub.f32 %v22, %v241
    %243 = vmatpush1.msra.mxu0 %v242
    %244 = vmatprep.subr.mxu0 0.0
    %245 = vmatpush1.msra.mxu0 0.0
    %246 = vmatprep.subr.mxu0 0.0
    %247 = vmatpush1.msra.mxu0 0.0
    %248 = vmatprep.subr.mxu0 0.0
    %249 = vmatpush1.msra.mxu0 0.0
    %250 = vmatprep.subr.mxu0 0.0
    %251 = vmatpush1.msra.mxu0 0.0
    %252 = vmatprep.subr.mxu0 0.0
    %253 = vmatpush1.msra.mxu0 0.0
    %254 = vmatprep.subr.mxu0 0.0
    %255 = vmatpush1.msra.mxu0 0.0
    %256 = vmatprep.subr.mxu0 0.0
    %257 = vmatpush1.msra.mxu0 0.0
    %258 = vmatprep.subr.mxu0 0.0
    %259 = vmatpush1.msra.mxu0 0.0
    %260 = vmatprep.subr.mxu0 0.0
    %261 = vmatpush1.msra.mxu0 0.0
    %262 = vmatprep.subr.mxu0 0.0
    %263 = vmatpush1.msra.mxu0 0.0
    %264 = vmatprep.subr.mxu0 0.0
    %265 = vmatpush1.msra.mxu0 0.0
    %266 = vmatprep.subr.mxu0 0.0
    %267 = vmatpush1.msra.mxu0 0.0
    %268 = vmatprep.subr.mxu0 0.0
    %269 = vmatpush1.msra.mxu0 0.0
    %270 = vmatprep.subr.mxu0 0.0
    %271 = vmatpush1.msra.mxu0 0.0
    %272 = vmatprep.subr.mxu0 0.0
    %273 = vmatpush1.msra.mxu0 0.0
    %274 = vmatprep.subr.mxu0 0.0
    %275 = vmatpush1.msra.mxu0 0.0
    %276 = vmatprep.subr.mxu0 0.0
    %277 = vmatpush1.msra.mxu0 0.0
    %278 = vmatprep.subr.mxu0 0.0
    %279 = vmatpush1.msra.mxu0 0.0
    %280 = vmatprep.subr.mxu0 0.0
    %281 = vmatpush1.msra.mxu0 0.0
    %282 = vmatprep.subr.mxu0 0.0
    %283 = vmatpush1.msra.mxu0 0.0
    %284 = vmatprep.subr.mxu0 0.0
    %285 = vmatpush1.msra.mxu0 0.0
    %286 = vmatprep.subr.mxu0 0.0
    %287 = vmatpush1.msra.mxu0 0.0
    %288 = vmatprep.subr.mxu0 0.0
    %289 = vmatpush1.msra.mxu0 0.0
    %290 = vmatprep.subr.mxu0 0.0
    %291 = vmatpush1.msra.mxu0 0.0
    %292 = vmatprep.subr.mxu0 0.0
    %293 = vmatpush1.msra.mxu0 0.0
    %294 = vmatprep.subr.mxu0 0.0
    %295 = vmatpush1.msra.mxu0 0.0
    %296 = vmatprep.subr.mxu0 0.0
    %297 = vmatpush1.msra.mxu0 0.0
    %298 = vmatprep.subr.mxu0 0.0
    %299 = vmatpush1.msra.mxu0 0.0
    %300 = vmatprep.mubr.f32.mxu0 0.0
    %v301 = vand.u32 %v37, 4294901760
    %v302 = vsub.f32 %v37, %v301
    %303 = vmatmul.mubr.f32.gmra.mrb[0].mxu0 %v302
    %v304 = vpop.f32.mrb[0].mxu0
    %v305 = vadd.f32 %v219, %v304
    %v306 = vpop.f32.mrb[0].mxu0
    %307 = vmatprep.mubr.f32.mxu0 0.0
    %v308 = vand.u32 %v40, 4294901760
    %v309 = vsub.f32 %v40, %v308
    %310 = vmatmul.mubr.f32.gmra.mrb[0].mxu0 %v309
    %v311 = vpop.f32.mrb[0].mxu0
    %v312 = vadd.f32 %v225, %v311
    %v313 = vpop.f32.mrb[0].mxu0
    %314 = vdwg.mxu0
    %315 = vmatprep.subr.mxu0 0.0
    %v316 = vand.u32 %v19, 4294901760
    %317 = vmatpush1.msra.mxu0 %v316
    %318 = vmatprep.subr.mxu0 0.0
    %v319 = vand.u32 %v20, 4294901760
    %320 = vmatpush1.msra.mxu0 %v319
    %321 = vmatprep.subr.mxu0 0.0
    %v322 = vand.u32 %v21, 4294901760
    %323 = vmatpush1.msra.mxu0 %v322
    %324 = vmatprep.subr.mxu0 0.0
    %v325 = vand.u32 %v22, 4294901760
    %326 = vmatpush1.msra.mxu0 %v325
    %327 = vmatprep.subr.mxu0 0.0
    %328 = vmatpush1.msra.mxu0 0.0
    %329 = vmatprep.subr.mxu0 0.0
    %330 = vmatpush1.msra.mxu0 0.0
    %331 = vmatprep.subr.mxu0 0.0
    %332 = vmatpush1.msra.mxu0 0.0
    %333 = vmatprep.subr.mxu0 0.0
    %334 = vmatpush1.msra.mxu0 0.0
    %335 = vmatprep.subr.mxu0 0.0
    %336 = vmatpush1.msra.mxu0 0.0
    %337 = vmatprep.subr.mxu0 0.0
    %338 = vmatpush1.msra.mxu0 0.0
    %339 = vmatprep.subr.mxu0 0.0
    %340 = vmatpush1.msra.mxu0 0.0
    %341 = vmatprep.subr.mxu0 0.0
    %342 = vmatpush1.msra.mxu0 0.0
    %343 = vmatprep.subr.mxu0 0.0
    %344 = vmatpush1.msra.mxu0 0.0
    %345 = vmatprep.subr.mxu0 0.0
    %346 = vmatpush1.msra.mxu0 0.0
    %347 = vmatprep.subr.mxu0 0.0
    %348 = vmatpush1.msra.mxu0 0.0
    %349 = vmatprep.subr.mxu0 0.0
    %350 = vmatpush1.msra.mxu0 0.0
    %351 = vmatprep.subr.mxu0 0.0
    %352 = vmatpush1.msra.mxu0 0.0
    %353 = vmatprep.subr.mxu0 0.0
    %354 = vmatpush1.msra.mxu0 0.0
    %355 = vmatprep.subr.mxu0 0.0
    %356 = vmatpush1.msra.mxu0 0.0
    %357 = vmatprep.subr.mxu0 0.0
    %358 = vmatpush1.msra.mxu0 0.0
    %359 = vmatprep.subr.mxu0 0.0
    %360 = vmatpush1.msra.mxu0 0.0
    %361 = vmatprep.subr.mxu0 0.0
    %362 = vmatpush1.msra.mxu0 0.0
    %363 = vmatprep.subr.mxu0 0.0
    %364 = vmatpush1.msra.mxu0 0.0
    %365 = vmatprep.subr.mxu0 0.0
    %366 = vmatpush1.msra.mxu0 0.0
    %367 = vmatprep.subr.mxu0 0.0
    %368 = vmatpush1.msra.mxu0 0.0
    %369 = vmatprep.subr.mxu0 0.0
    %370 = vmatpush1.msra.mxu0 0.0
    %371 = vmatprep.subr.mxu0 0.0
    %372 = vmatpush1.msra.mxu0 0.0
    %373 = vmatprep.subr.mxu0 0.0
    %374 = vmatpush1.msra.mxu0 0.0
    %375 = vmatprep.subr.mxu0 0.0
    %376 = vmatpush1.msra.mxu0 0.0
    %377 = vmatprep.subr.mxu0 0.0
    %378 = vmatpush1.msra.mxu0 0.0
    %379 = vmatprep.subr.mxu0 0.0
    %380 = vmatpush1.msra.mxu0 0.0
    %381 = vmatprep.subr.mxu0 0.0
    %382 = vmatpush1.msra.mxu0 0.0
    %383 = vmatprep.mubr.f32.mxu0 0.0
    %v384 = vand.u32 %v37, 4294901760
    %v385 = vsub.f32 %v37, %v384
    %v386 = vand.u32 %v385, 4294901760
    %387 = vmatmul.mubr.f32.gmra.mrb[0].mxu0 %v386
    %v388 = vpop.f32.mrb[0].mxu0
    %v389 = vadd.f32 %v305, %v388
    %v390 = vpop.f32.mrb[0].mxu0
    %391 = vmatprep.mubr.f32.mxu0 0.0
    %v392 = vand.u32 %v40, 4294901760
    %v393 = vsub.f32 %v40, %v392
    %v394 = vand.u32 %v393, 4294901760
    %395 = vmatmul.mubr.f32.gmra.mrb[0].mxu0 %v394
    %v396 = vpop.f32.mrb[0].mxu0
    %v397 = vadd.f32 %v312, %v396
    %v398 = vpop.f32.mrb[0].mxu0
    %399 = vdwg.mxu0
    %400 = vmatprep.subr.mxu0 0.0
    %v401 = vand.u32 %v19, 4294901760
    %v402 = vsub.f32 %v19, %v401
    %v403 = vand.u32 %v402, 4294901760
    %404 = vmatpush1.msra.mxu0 %v403
    %405 = vmatprep.subr.mxu0 0.0
    %v406 = vand.u32 %v20, 4294901760
    %v407 = vsub.f32 %v20, %v406
    %v408 = vand.u32 %v407, 4294901760
    %409 = vmatpush1.msra.mxu0 %v408
    %410 = vmatprep.subr.mxu0 0.0
    %v411 = vand.u32 %v21, 4294901760
    %v412 = vsub.f32 %v21, %v411
    %v413 = vand.u32 %v412, 4294901760
    %414 = vmatpush1.msra.mxu0 %v413
    %415 = vmatprep.subr.mxu0 0.0
    %v416 = vand.u32 %v22, 4294901760
    %v417 = vsub.f32 %v22, %v416
    %v418 = vand.u32 %v417, 4294901760
    %419 = vmatpush1.msra.mxu0 %v418
    %420 = vmatprep.subr.mxu0 0.0
    %421 = vmatpush1.msra.mxu0 0.0
    %422 = vmatprep.subr.mxu0 0.0
    %423 = vmatpush1.msra.mxu0 0.0
    %424 = vmatprep.subr.mxu0 0.0
    %425 = vmatpush1.msra.mxu0 0.0
    %426 = vmatprep.subr.mxu0 0.0
    %427 = vmatpush1.msra.mxu0 0.0
    %428 = vmatprep.subr.mxu0 0.0
    %429 = vmatpush1.msra.mxu0 0.0
    %430 = vmatprep.subr.mxu0 0.0
    %431 = vmatpush1.msra.mxu0 0.0
    %432 = vmatprep.subr.mxu0 0.0
    %433 = vmatpush1.msra.mxu0 0.0
    %434 = vmatprep.subr.mxu0 0.0
    %435 = vmatpush1.msra.mxu0 0.0
    %436 = vmatprep.subr.mxu0 0.0
    %437 = vmatpush1.msra.mxu0 0.0
    %438 = vmatprep.subr.mxu0 0.0
    %439 = vmatpush1.msra.mxu0 0.0
    %440 = vmatprep.subr.mxu0 0.0
    %441 = vmatpush1.msra.mxu0 0.0
    %442 = vmatprep.subr.mxu0 0.0
    %443 = vmatpush1.msra.mxu0 0.0
    %444 = vmatprep.subr.mxu0 0.0
    %445 = vmatpush1.msra.mxu0 0.0
    %446 = vmatprep.subr.mxu0 0.0
    %447 = vmatpush1.msra.mxu0 0.0
    %448 = vmatprep.subr.mxu0 0.0
    %449 = vmatpush1.msra.mxu0 0.0
    %450 = vmatprep.subr.mxu0 0.0
    %451 = vmatpush1.msra.mxu0 0.0
    %452 = vmatprep.subr.mxu0 0.0
    %453 = vmatpush1.msra.mxu0 0.0
    %454 = vmatprep.subr.mxu0 0.0
    %455 = vmatpush1.msra.mxu0 0.0
    %456 = vmatprep.subr.mxu0 0.0
    %457 = vmatpush1.msra.mxu0 0.0
    %458 = vmatprep.subr.mxu0 0.0
    %459 = vmatpush1.msra.mxu0 0.0
    %460 = vmatprep.subr.mxu0 0.0
    %461 = vmatpush1.msra.mxu0 0.0
    %462 = vmatprep.subr.mxu0 0.0
    %463 = vmatpush1.msra.mxu0 0.0
    %464 = vmatprep.subr.mxu0 0.0
    %465 = vmatpush1.msra.mxu0 0.0
    %466 = vmatprep.subr.mxu0 0.0
    %467 = vmatpush1.msra.mxu0 0.0
    %468 = vmatprep.subr.mxu0 0.0
    %469 = vmatpush1.msra.mxu0 0.0
    %470 = vmatprep.subr.mxu0 0.0
    %471 = vmatpush1.msra.mxu0 0.0
    %472 = vmatprep.subr.mxu0 0.0
    %473 = vmatpush1.msra.mxu0 0.0
    %474 = vmatprep.subr.mxu0 0.0
    %475 = vmatpush1.msra.mxu0 0.0
    %476 = vmatprep.mubr.f32.mxu0 0.0
    %v477 = vand.u32 %v37, 4294901760
    %478 = vmatmul.mubr.f32.gmra.mrb[0].mxu0 %v477
    %v479 = vpop.f32.mrb[0].mxu0
    %v480 = vadd.f32 %v389, %v479
    %v481 = vpop.f32.mrb[0].mxu0
    %482 = vmatprep.mubr.f32.mxu0 0.0
    %v483 = vand.u32 %v40, 4294901760
    %484 = vmatmul.mubr.f32.gmra.mrb[0].mxu0 %v483
    %v485 = vpop.f32.mrb[0].mxu0
    %v486 = vadd.f32 %v397, %v485
    %v487 = vpop.f32.mrb[0].mxu0
    %488 = vdwg.mxu0
    %489 = vmatprep.subr.mxu0 0.0
    %v490 = vand.u32 %v19, 4294901760
    %491 = vmatpush1.msra.mxu0 %v490
    %492 = vmatprep.subr.mxu0 0.0
    %v493 = vand.u32 %v20, 4294901760
    %494 = vmatpush1.msra.mxu0 %v493
    %495 = vmatprep.subr.mxu0 0.0
    %v496 = vand.u32 %v21, 4294901760
    %497 = vmatpush1.msra.mxu0 %v496
    %498 = vmatprep.subr.mxu0 0.0
    %v499 = vand.u32 %v22, 4294901760
    %500 = vmatpush1.msra.mxu0 %v499
    %501 = vmatprep.subr.mxu0 0.0
    %502 = vmatpush1.msra.mxu0 0.0
    %503 = vmatprep.subr.mxu0 0.0
    %504 = vmatpush1.msra.mxu0 0.0
    %505 = vmatprep.subr.mxu0 0.0
    %506 = vmatpush1.msra.mxu0 0.0
    %507 = vmatprep.subr.mxu0 0.0
    %508 = vmatpush1.msra.mxu0 0.0
    %509 = vmatprep.subr.mxu0 0.0
    %510 = vmatpush1.msra.mxu0 0.0
    %511 = vmatprep.subr.mxu0 0.0
    %512 = vmatpush1.msra.mxu0 0.0
    %513 = vmatprep.subr.mxu0 0.0
    %514 = vmatpush1.msra.mxu0 0.0
    %515 = vmatprep.subr.mxu0 0.0
    %516 = vmatpush1.msra.mxu0 0.0
    %517 = vmatprep.subr.mxu0 0.0
    %518 = vmatpush1.msra.mxu0 0.0
    %519 = vmatprep.subr.mxu0 0.0
    %520 = vmatpush1.msra.mxu0 0.0
    %521 = vmatprep.subr.mxu0 0.0
    %522 = vmatpush1.msra.mxu0 0.0
    %523 = vmatprep.subr.mxu0 0.0
    %524 = vmatpush1.msra.mxu0 0.0
    %525 = vmatprep.subr.mxu0 0.0
    %526 = vmatpush1.msra.mxu0 0.0
    %527 = vmatprep.subr.mxu0 0.0
    %528 = vmatpush1.msra.mxu0 0.0
    %529 = vmatprep.subr.mxu0 0.0
    %530 = vmatpush1.msra.mxu0 0.0
    %531 = vmatprep.subr.mxu0 0.0
    %532 = vmatpush1.msra.mxu0 0.0
    %533 = vmatprep.subr.mxu0 0.0
    %534 = vmatpush1.msra.mxu0 0.0
    %535 = vmatprep.subr.mxu0 0.0
    %536 = vmatpush1.msra.mxu0 0.0
    %537 = vmatprep.subr.mxu0 0.0
    %538 = vmatpush1.msra.mxu0 0.0
    %539 = vmatprep.subr.mxu0 0.0
    %540 = vmatpush1.msra.mxu0 0.0
    %541 = vmatprep.subr.mxu0 0.0
    %542 = vmatpush1.msra.mxu0 0.0
    %543 = vmatprep.subr.mxu0 0.0
    %544 = vmatpush1.msra.mxu0 0.0
    %545 = vmatprep.subr.mxu0 0.0
    %546 = vmatpush1.msra.mxu0 0.0
    %547 = vmatprep.subr.mxu0 0.0
    %548 = vmatpush1.msra.mxu0 0.0
    %549 = vmatprep.subr.mxu0 0.0
    %550 = vmatpush1.msra.mxu0 0.0
    %551 = vmatprep.subr.mxu0 0.0
    %552 = vmatpush1.msra.mxu0 0.0
    %553 = vmatprep.subr.mxu0 0.0
    %554 = vmatpush1.msra.mxu0 0.0
    %555 = vmatprep.subr.mxu0 0.0
    %556 = vmatpush1.msra.mxu0 0.0
    %557 = vmatprep.mubr.f32.mxu0 0.0
    %v558 = vand.u32 %v37, 4294901760
    %559 = vmatmul.mubr.f32.gmra.mrb[0].mxu0 %v558
    %v560 = vpop.f32.mrb[0].mxu0
    %v561 = vadd.f32 %v480, %v560
    %v562 = vpop.f32.mrb[0].mxu0
    %563 = vmatprep.mubr.f32.mxu0 0.0
    %v564 = vand.u32 %v40, 4294901760
    %565 = vmatmul.mubr.f32.gmra.mrb[0].mxu0 %v564
    %v566 = vpop.f32.mrb[0].mxu0
    %v567 = vadd.f32 %v486, %v566
    %v568 = vpop.f32.mrb[0].mxu0
    %569 = vdwg.mxu0
    %v570 = vtanh.pop %v561
    %v571 = vtanh.pop %v567
    %572 = vst [vmem:[#allocation2] sm:$0xff] %v570
    %573 = vst [vmem:[#allocation2 + $0x8] sm:$0xff] %v571
    %v574 = vlaneseq
    %v575 = vshrl.u32 %v574, 7
    %v576 = vsub.s32 0, %v575
    %v577 = vrot.slane %v18, %v576
    %vm578 = vcmask 130048
    %v580 = vsel %vm578, %v570, 0
    %v583 = vsel %vm578, %v571, 0
    %585 = vmatprep.subr.mxu0 0.0
    %v586 = vand.u32 %v12, 4294901760
    %587 = vmatpush1.msra.mxu0 %v586
    %588 = vmatprep.subr.mxu0 0.0
    %v589 = vand.u32 %v13, 4294901760
    %590 = vmatpush1.msra.mxu0 %v589
    %591 = vmatprep.subr.mxu0 0.0
    %592 = vmatpush1.msra.mxu0 0.0
    %593 = vmatprep.subr.mxu0 0.0
    %594 = vmatpush1.msra.mxu0 0.0
    %595 = vmatprep.subr.mxu0 0.0
    %596 = vmatpush1.msra.mxu0 0.0
    %597 = vmatprep.subr.mxu0 0.0
    %598 = vmatpush1.msra.mxu0 0.0
    %599 = vmatprep.subr.mxu0 0.0
    %600 = vmatpush1.msra.mxu0 0.0
    %601 = vmatprep.subr.mxu0 0.0
    %602 = vmatpush1.msra.mxu0 0.0
    %603 = vmatprep.subr.mxu0 0.0
    %604 = vmatpush1.msra.mxu0 0.0
    %605 = vmatprep.subr.mxu0 0.0
    %606 = vmatpush1.msra.mxu0 0.0
    %607 = vmatprep.subr.mxu0 0.0
    %608 = vmatpush1.msra.mxu0 0.0
    %609 = vmatprep.subr.mxu0 0.0
    %610 = vmatpush1.msra.mxu0 0.0
    %611 = vmatprep.subr.mxu0 0.0
    %612 = vmatpush1.msra.mxu0 0.0
    %613 = vmatprep.subr.mxu0 0.0
    %614 = vmatpush1.msra.mxu0 0.0
    %615 = vmatprep.subr.mxu0 0.0
    %616 = vmatpush1.msra.mxu0 0.0
    %617 = vmatprep.subr.mxu0 0.0
    %618 = vmatpush1.msra.mxu0 0.0
    %619 = vmatprep.subr.mxu0 0.0
    %620 = vmatpush1.msra.mxu0 0.0
    %621 = vmatprep.subr.mxu0 0.0
    %622 = vmatpush1.msra.mxu0 0.0
    %623 = vmatprep.subr.mxu0 0.0
    %624 = vmatpush1.msra.mxu0 0.0
    %625 = vmatprep.subr.mxu0 0.0
    %626 = vmatpush1.msra.mxu0 0.0
    %627 = vmatprep.subr.mxu0 0.0
    %628 = vmatpush1.msra.mxu0 0.0
    %629 = vmatprep.subr.mxu0 0.0
    %630 = vmatpush1.msra.mxu0 0.0
    %631 = vmatprep.subr.mxu0 0.0
    %632 = vmatpush1.msra.mxu0 0.0
    %633 = vmatprep.subr.mxu0 0.0
    %634 = vmatpush1.msra.mxu0 0.0
    %635 = vmatprep.subr.mxu0 0.0
    %636 = vmatpush1.msra.mxu0 0.0
    %637 = vmatprep.subr.mxu0 0.0
    %638 = vmatpush1.msra.mxu0 0.0
    %639 = vmatprep.subr.mxu0 0.0
    %640 = vmatpush1.msra.mxu0 0.0
    %641 = vmatprep.subr.mxu0 0.0
    %642 = vmatpush1.msra.mxu0 0.0
    %643 = vmatprep.subr.mxu0 0.0
    %644 = vmatpush1.msra.mxu0 0.0
    %645 = vmatprep.subr.mxu0 0.0
    %646 = vmatpush1.msra.mxu0 0.0
    %647 = vmatprep.subr.mxu0 0.0
    %648 = vmatpush1.msra.mxu0 0.0
    %649 = vmatprep.subr.mxu0 0.0
    %650 = vmatpush1.msra.mxu0 0.0
    %651 = vmatprep.mubr.f32.mxu0 0.0
    %v652 = vand.u32 %v580, 4294901760
    %v653 = vsub.f32 %v580, %v652
    %v654 = vand.u32 %v653, 4294901760
    %v655 = vsub.f32 %v653, %v654
    %v656 = vand.u32 %v655, 4294901760
    %657 = vmatmul.mubr.f32.gmra.mrb[0].mxu0 %v656
    %v658 = vpop.f32.mrb[0].mxu0
    %v659 = vadd.f32 %v577, %v658
    %v660 = vpop.f32.mrb[0].mxu0
    %661 = vmatprep.mubr.f32.mxu0 0.0
    %v662 = vand.u32 %v583, 4294901760
    %v663 = vsub.f32 %v583, %v662
    %v664 = vand.u32 %v663, 4294901760
    %v665 = vsub.f32 %v663, %v664
    %v666 = vand.u32 %v665, 4294901760
    %667 = vmatmul.mubr.f32.gmra.mrb[0].mxu0 %v666
    %v668 = vpop.f32.mrb[0].mxu0
    %v669 = vadd.f32 %v577, %v668
    %v670 = vpop.f32.mrb[0].mxu0
    %671 = vdwg.mxu0
    %672 = vmatprep.subr.mxu0 0.0
    %v673 = vand.u32 %v12, 4294901760
    %v674 = vsub.f32 %v12, %v673
    %v675 = vand.u32 %v674, 4294901760
    %v676 = vsub.f32 %v674, %v675
    %v677 = vand.u32 %v676, 4294901760
    %678 = vmatpush1.msra.mxu0 %v677
    %679 = vmatprep.subr.mxu0 0.0
    %v680 = vand.u32 %v13, 4294901760
    %v681 = vsub.f32 %v13, %v680
    %v682 = vand.u32 %v681, 4294901760
    %v683 = vsub.f32 %v681, %v682
    %v684 = vand.u32 %v683, 4294901760
    %685 = vmatpush1.msra.mxu0 %v684
    %686 = vmatprep.subr.mxu0 0.0
    %687 = vmatpush1.msra.mxu0 0.0
    %688 = vmatprep.subr.mxu0 0.0
    %689 = vmatpush1.msra.mxu0 0.0
    %690 = vmatprep.subr.mxu0 0.0
    %691 = vmatpush1.msra.mxu0 0.0
    %692 = vmatprep.subr.mxu0 0.0
    %693 = vmatpush1.msra.mxu0 0.0
    %694 = vmatprep.subr.mxu0 0.0
    %695 = vmatpush1.msra.mxu0 0.0
    %696 = vmatprep.subr.mxu0 0.0
    %697 = vmatpush1.msra.mxu0 0.0
    %698 = vmatprep.subr.mxu0 0.0
    %699 = vmatpush1.msra.mxu0 0.0
    %700 = vmatprep.subr.mxu0 0.0
    %701 = vmatpush1.msra.mxu0 0.0
    %702 = vmatprep.subr.mxu0 0.0
    %703 = vmatpush1.msra.mxu0 0.0
    %704 = vmatprep.subr.mxu0 0.0
    %705 = vmatpush1.msra.mxu0 0.0
    %706 = vmatprep.subr.mxu0 0.0
    %707 = vmatpush1.msra.mxu0 0.0
    %708 = vmatprep.subr.mxu0 0.0
    %709 = vmatpush1.msra.mxu0 0.0
    %710 = vmatprep.subr.mxu0 0.0
    %711 = vmatpush1.msra.mxu0 0.0
    %712 = vmatprep.subr.mxu0 0.0
    %713 = vmatpush1.msra.mxu0 0.0
    %714 = vmatprep.subr.mxu0 0.0
    %715 = vmatpush1.msra.mxu0 0.0
    %716 = vmatprep.subr.mxu0 0.0
    %717 = vmatpush1.msra.mxu0 0.0
    %718 = vmatprep.subr.mxu0 0.0
    %719 = vmatpush1.msra.mxu0 0.0
    %720 = vmatprep.subr.mxu0 0.0
    %721 = vmatpush1.msra.mxu0 0.0
    %722 = vmatprep.subr.mxu0 0.0
    %723 = vmatpush1.msra.mxu0 0.0
    %724 = vmatprep.subr.mxu0 0.0
    %725 = vmatpush1.msra.mxu0 0.0
    %726 = vmatprep.subr.mxu0 0.0
    %727 = vmatpush1.msra.mxu0 0.0
    %728 = vmatprep.subr.mxu0 0.0
    %729 = vmatpush1.msra.mxu0 0.0
    %730 = vmatprep.subr.mxu0 0.0
    %731 = vmatpush1.msra.mxu0 0.0
    %732 = vmatprep.subr.mxu0 0.0
    %733 = vmatpush1.msra.mxu0 0.0
    %734 = vmatprep.subr.mxu0 0.0
    %735 = vmatpush1.msra.mxu0 0.0
    %736 = vmatprep.subr.mxu0 0.0
    %737 = vmatpush1.msra.mxu0 0.0
    %738 = vmatprep.subr.mxu0 0.0
    %739 = vmatpush1.msra.mxu0 0.0
    %740 = vmatprep.subr.mxu0 0.0
    %741 = vmatpush1.msra.mxu0 0.0
    %742 = vmatprep.subr.mxu0 0.0
    %743 = vmatpush1.msra.mxu0 0.0
    %744 = vmatprep.subr.mxu0 0.0
    %745 = vmatpush1.msra.mxu0 0.0
    %746 = vmatprep.mubr.f32.mxu0 0.0
    %v747 = vand.u32 %v580, 4294901760
    %748 = vmatmul.mubr.f32.gmra.mrb[0].mxu0 %v747
    %v749 = vpop.f32.mrb[0].mxu0
    %v750 = vadd.f32 %v659, %v749
    %v751 = vpop.f32.mrb[0].mxu0
    %752 = vmatprep.mubr.f32.mxu0 0.0
    %v753 = vand.u32 %v583, 4294901760
    %754 = vmatmul.mubr.f32.gmra.mrb[0].mxu0 %v753
    %v755 = vpop.f32.mrb[0].mxu0
    %v756 = vadd.f32 %v669, %v755
    %v757 = vpop.f32.mrb[0].mxu0
    %758 = vdwg.mxu0
    %759 = vmatprep.subr.mxu0 0.0
    %v760 = vand.u32 %v12, 4294901760
    %v761 = vsub.f32 %v12, %v760
    %762 = vmatpush1.msra.mxu0 %v761
    %763 = vmatprep.subr.mxu0 0.0
    %v764 = vand.u32 %v13, 4294901760
    %v765 = vsub.f32 %v13, %v764
    %766 = vmatpush1.msra.mxu0 %v765
    %767 = vmatprep.subr.mxu0 0.0
    %768 = vmatpush1.msra.mxu0 0.0
    %769 = vmatprep.subr.mxu0 0.0
    %770 = vmatpush1.msra.mxu0 0.0
    %771 = vmatprep.subr.mxu0 0.0
    %772 = vmatpush1.msra.mxu0 0.0
    %773 = vmatprep.subr.mxu0 0.0
    %774 = vmatpush1.msra.mxu0 0.0
    %775 = vmatprep.subr.mxu0 0.0
    %776 = vmatpush1.msra.mxu0 0.0
    %777 = vmatprep.subr.mxu0 0.0
    %778 = vmatpush1.msra.mxu0 0.0
    %779 = vmatprep.subr.mxu0 0.0
    %780 = vmatpush1.msra.mxu0 0.0
    %781 = vmatprep.subr.mxu0 0.0
    %782 = vmatpush1.msra.mxu0 0.0
    %783 = vmatprep.subr.mxu0 0.0
    %784 = vmatpush1.msra.mxu0 0.0
    %785 = vmatprep.subr.mxu0 0.0
    %786 = vmatpush1.msra.mxu0 0.0
    %787 = vmatprep.subr.mxu0 0.0
    %788 = vmatpush1.msra.mxu0 0.0
    %789 = vmatprep.subr.mxu0 0.0
    %790 = vmatpush1.msra.mxu0 0.0
    %791 = vmatprep.subr.mxu0 0.0
    %792 = vmatpush1.msra.mxu0 0.0
    %793 = vmatprep.subr.mxu0 0.0
    %794 = vmatpush1.msra.mxu0 0.0
    %795 = vmatprep.subr.mxu0 0.0
    %796 = vmatpush1.msra.mxu0 0.0
    %797 = vmatprep.subr.mxu0 0.0
    %798 = vmatpush1.msra.mxu0 0.0
    %799 = vmatprep.subr.mxu0 0.0
    %800 = vmatpush1.msra.mxu0 0.0
    %801 = vmatprep.subr.mxu0 0.0
    %802 = vmatpush1.msra.mxu0 0.0
    %803 = vmatprep.subr.mxu0 0.0
    %804 = vmatpush1.msra.mxu0 0.0
    %805 = vmatprep.subr.mxu0 0.0
    %806 = vmatpush1.msra.mxu0 0.0
    %807 = vmatprep.subr.mxu0 0.0
    %808 = vmatpush1.msra.mxu0 0.0
    %809 = vmatprep.subr.mxu0 0.0
    %810 = vmatpush1.msra.mxu0 0.0
    %811 = vmatprep.subr.mxu0 0.0
    %812 = vmatpush1.msra.mxu0 0.0
    %813 = vmatprep.subr.mxu0 0.0
    %814 = vmatpush1.msra.mxu0 0.0
    %815 = vmatprep.subr.mxu0 0.0
    %816 = vmatpush1.msra.mxu0 0.0
    %817 = vmatprep.subr.mxu0 0.0
    %818 = vmatpush1.msra.mxu0 0.0
    %819 = vmatprep.subr.mxu0 0.0
    %820 = vmatpush1.msra.mxu0 0.0
    %821 = vmatprep.subr.mxu0 0.0
    %822 = vmatpush1.msra.mxu0 0.0
    %823 = vmatprep.subr.mxu0 0.0
    %824 = vmatpush1.msra.mxu0 0.0
    %825 = vmatprep.subr.mxu0 0.0
    %826 = vmatpush1.msra.mxu0 0.0
    %827 = vmatprep.mubr.f32.mxu0 0.0
    %v828 = vand.u32 %v580, 4294901760
    %v829 = vsub.f32 %v580, %v828
    %830 = vmatmul.mubr.f32.gmra.mrb[0].mxu0 %v829
    %v831 = vpop.f32.mrb[0].mxu0
    %v832 = vadd.f32 %v750, %v831
    %v833 = vpop.f32.mrb[0].mxu0
    %834 = vmatprep.mubr.f32.mxu0 0.0
    %v835 = vand.u32 %v583, 4294901760
    %v836 = vsub.f32 %v583, %v835
    %837 = vmatmul.mubr.f32.gmra.mrb[0].mxu0 %v836
    %v838 = vpop.f32.mrb[0].mxu0
    %v839 = vadd.f32 %v756, %v838
    %v840 = vpop.f32.mrb[0].mxu0
    %841 = vdwg.mxu0
    %842 = vmatprep.subr.mxu0 0.0
    %v843 = vand.u32 %v12, 4294901760
    %844 = vmatpush1.msra.mxu0 %v843
    %845 = vmatprep.subr.mxu0 0.0
    %v846 = vand.u32 %v13, 4294901760
    %847 = vmatpush1.msra.mxu0 %v846
    %848 = vmatprep.subr.mxu0 0.0
    %849 = vmatpush1.msra.mxu0 0.0
    %850 = vmatprep.subr.mxu0 0.0
    %851 = vmatpush1.msra.mxu0 0.0
    %852 = vmatprep.subr.mxu0 0.0
    %853 = vmatpush1.msra.mxu0 0.0
    %854 = vmatprep.subr.mxu0 0.0
    %855 = vmatpush1.msra.mxu0 0.0
    %856 = vmatprep.subr.mxu0 0.0
    %857 = vmatpush1.msra.mxu0 0.0
    %858 = vmatprep.subr.mxu0 0.0
    %859 = vmatpush1.msra.mxu0 0.0
    %860 = vmatprep.subr.mxu0 0.0
    %861 = vmatpush1.msra.mxu0 0.0
    %862 = vmatprep.subr.mxu0 0.0
    %863 = vmatpush1.msra.mxu0 0.0
    %864 = vmatprep.subr.mxu0 0.0
    %865 = vmatpush1.msra.mxu0 0.0
    %866 = vmatprep.subr.mxu0 0.0
    %867 = vmatpush1.msra.mxu0 0.0
    %868 = vmatprep.subr.mxu0 0.0
    %869 = vmatpush1.msra.mxu0 0.0
    %870 = vmatprep.subr.mxu0 0.0
    %871 = vmatpush1.msra.mxu0 0.0
    %872 = vmatprep.subr.mxu0 0.0
    %873 = vmatpush1.msra.mxu0 0.0
    %874 = vmatprep.subr.mxu0 0.0
    %875 = vmatpush1.msra.mxu0 0.0
    %876 = vmatprep.subr.mxu0 0.0
    %877 = vmatpush1.msra.mxu0 0.0
    %878 = vmatprep.subr.mxu0 0.0
    %879 = vmatpush1.msra.mxu0 0.0
    %880 = vmatprep.subr.mxu0 0.0
    %881 = vmatpush1.msra.mxu0 0.0
    %882 = vmatprep.subr.mxu0 0.0
    %883 = vmatpush1.msra.mxu0 0.0
    %884 = vmatprep.subr.mxu0 0.0
    %885 = vmatpush1.msra.mxu0 0.0
    %886 = vmatprep.subr.mxu0 0.0
    %887 = vmatpush1.msra.mxu0 0.0
    %888 = vmatprep.subr.mxu0 0.0
    %889 = vmatpush1.msra.mxu0 0.0
    %890 = vmatprep.subr.mxu0 0.0
    %891 = vmatpush1.msra.mxu0 0.0
    %892 = vmatprep.subr.mxu0 0.0
    %893 = vmatpush1.msra.mxu0 0.0
    %894 = vmatprep.subr.mxu0 0.0
    %895 = vmatpush1.msra.mxu0 0.0
    %896 = vmatprep.subr.mxu0 0.0
    %897 = vmatpush1.msra.mxu0 0.0
    %898 = vmatprep.subr.mxu0 0.0
    %899 = vmatpush1.msra.mxu0 0.0
    %900 = vmatprep.subr.mxu0 0.0
    %901 = vmatpush1.msra.mxu0 0.0
    %902 = vmatprep.subr.mxu0 0.0
    %903 = vmatpush1.msra.mxu0 0.0
    %904 = vmatprep.subr.mxu0 0.0
    %905 = vmatpush1.msra.mxu0 0.0
    %906 = vmatprep.subr.mxu0 0.0
    %907 = vmatpush1.msra.mxu0 0.0
    %908 = vmatprep.mubr.f32.mxu0 0.0
    %v909 = vand.u32 %v580, 4294901760
    %v910 = vsub.f32 %v580, %v909
    %v911 = vand.u32 %v910, 4294901760
    %912 = vmatmul.mubr.f32.gmra.mrb[0].mxu0 %v911
    %v913 = vpop.f32.mrb[0].mxu0
    %v914 = vadd.f32 %v832, %v913
    %v915 = vpop.f32.mrb[0].mxu0
    %916 = vmatprep.mubr.f32.mxu0 0.0
    %v917 = vand.u32 %v583, 4294901760
    %v918 = vsub.f32 %v583, %v917
    %v919 = vand.u32 %v918, 4294901760
    %920 = vmatmul.mubr.f32.gmra.mrb[0].mxu0 %v919
    %v921 = vpop.f32.mrb[0].mxu0
    %v922 = vadd.f32 %v839, %v921
    %v923 = vpop.f32.mrb[0].mxu0
    %924 = vdwg.mxu0
    %925 = vmatprep.subr.mxu0 0.0
    %v926 = vand.u32 %v12, 4294901760
    %v927 = vsub.f32 %v12, %v926
    %v928 = vand.u32 %v927, 4294901760
    %929 = vmatpush1.msra.mxu0 %v928
    %930 = vmatprep.subr.mxu0 0.0
    %v931 = vand.u32 %v13, 4294901760
    %v932 = vsub.f32 %v13, %v931
    %v933 = vand.u32 %v932, 4294901760
    %934 = vmatpush1.msra.mxu0 %v933
    %935 = vmatprep.subr.mxu0 0.0
    %936 = vmatpush1.msra.mxu0 0.0
    %937 = vmatprep.subr.mxu0 0.0
    %938 = vmatpush1.msra.mxu0 0.0
    %939 = vmatprep.subr.mxu0 0.0
    %940 = vmatpush1.msra.mxu0 0.0
    %941 = vmatprep.subr.mxu0 0.0
    %942 = vmatpush1.msra.mxu0 0.0
    %943 = vmatprep.subr.mxu0 0.0
    %944 = vmatpush1.msra.mxu0 0.0
    %945 = vmatprep.subr.mxu0 0.0
    %946 = vmatpush1.msra.mxu0 0.0
    %947 = vmatprep.subr.mxu0 0.0
    %948 = vmatpush1.msra.mxu0 0.0
    %949 = vmatprep.subr.mxu0 0.0
    %950 = vmatpush1.msra.mxu0 0.0
    %951 = vmatprep.subr.mxu0 0.0
    %952 = vmatpush1.msra.mxu0 0.0
    %953 = vmatprep.subr.mxu0 0.0
    %954 = vmatpush1.msra.mxu0 0.0
    %955 = vmatprep.subr.mxu0 0.0
    %956 = vmatpush1.msra.mxu0 0.0
    %957 = vmatprep.subr.mxu0 0.0
    %958 = vmatpush1.msra.mxu0 0.0
    %959 = vmatprep.subr.mxu0 0.0
    %960 = vmatpush1.msra.mxu0 0.0
    %961 = vmatprep.subr.mxu0 0.0
    %962 = vmatpush1.msra.mxu0 0.0
    %963 = vmatprep.subr.mxu0 0.0
    %964 = vmatpush1.msra.mxu0 0.0
    %965 = vmatprep.subr.mxu0 0.0
    %966 = vmatpush1.msra.mxu0 0.0
    %967 = vmatprep.subr.mxu0 0.0
    %968 = vmatpush1.msra.mxu0 0.0
    %969 = vmatprep.subr.mxu0 0.0
    %970 = vmatpush1.msra.mxu0 0.0
    %971 = vmatprep.subr.mxu0 0.0
    %972 = vmatpush1.msra.mxu0 0.0
    %973 = vmatprep.subr.mxu0 0.0
    %974 = vmatpush1.msra.mxu0 0.0
    %975 = vmatprep.subr.mxu0 0.0
    %976 = vmatpush1.msra.mxu0 0.0
    %977 = vmatprep.subr.mxu0 0.0
    %978 = vmatpush1.msra.mxu0 0.0
    %979 = vmatprep.subr.mxu0 0.0
    %980 = vmatpush1.msra.mxu0 0.0
    %981 = vmatprep.subr.mxu0 0.0
    %982 = vmatpush1.msra.mxu0 0.0
    %983 = vmatprep.subr.mxu0 0.0
    %984 = vmatpush1.msra.mxu0 0.0
    %985 = vmatprep.subr.mxu0 0.0
    %986 = vmatpush1.msra.mxu0 0.0
    %987 = vmatprep.subr.mxu0 0.0
    %988 = vmatpush1.msra.mxu0 0.0
    %989 = vmatprep.subr.mxu0 0.0
    %990 = vmatpush1.msra.mxu0 0.0
    %991 = vmatprep.subr.mxu0 0.0
    %992 = vmatpush1.msra.mxu0 0.0
    %993 = vmatprep.subr.mxu0 0.0
    %994 = vmatpush1.msra.mxu0 0.0
    %995 = vmatprep.mubr.f32.mxu0 0.0
    %v996 = vand.u32 %v580, 4294901760
    %997 = vmatmul.mubr.f32.gmra.mrb[0].mxu0 %v996
    %v998 = vpop.f32.mrb[0].mxu0
    %v999 = vadd.f32 %v914, %v998
    %v1000 = vpop.f32.mrb[0].mxu0
    %1001 = vmatprep.mubr.f32.mxu0 0.0
    %v1002 = vand.u32 %v583, 4294901760
    %1003 = vmatmul.mubr.f32.gmra.mrb[0].mxu0 %v1002
    %v1004 = vpop.f32.mrb[0].mxu0
    %v1005 = vadd.f32 %v922, %v1004
    %v1006 = vpop.f32.mrb[0].mxu0
    %1007 = vdwg.mxu0
    %1008 = vmatprep.subr.mxu0 0.0
    %v1009 = vand.u32 %v12, 4294901760
    %1010 = vmatpush1.msra.mxu0 %v1009
    %1011 = vmatprep.subr.mxu0 0.0
    %v1012 = vand.u32 %v13, 4294901760
    %1013 = vmatpush1.msra.mxu0 %v1012
    %1014 = vmatprep.subr.mxu0 0.0
    %1015 = vmatpush1.msra.mxu0 0.0
    %1016 = vmatprep.subr.mxu0 0.0
    %1017 = vmatpush1.msra.mxu0 0.0
    %1018 = vmatprep.subr.mxu0 0.0
    %1019 = vmatpush1.msra.mxu0 0.0
    %1020 = vmatprep.subr.mxu0 0.0
    %1021 = vmatpush1.msra.mxu0 0.0
    %1022 = vmatprep.subr.mxu0 0.0
    %1023 = vmatpush1.msra.mxu0 0.0
    %1024 = vmatprep.subr.mxu0 0.0
    %1025 = vmatpush1.msra.mxu0 0.0
    %1026 = vmatprep.subr.mxu0 0.0
    %1027 = vmatpush1.msra.mxu0 0.0
    %1028 = vmatprep.subr.mxu0 0.0
    %1029 = vmatpush1.msra.mxu0 0.0
    %1030 = vmatprep.subr.mxu0 0.0
    %1031 = vmatpush1.msra.mxu0 0.0
    %1032 = vmatprep.subr.mxu0 0.0
    %1033 = vmatpush1.msra.mxu0 0.0
    %1034 = vmatprep.subr.mxu0 0.0
    %1035 = vmatpush1.msra.mxu0 0.0
    %1036 = vmatprep.subr.mxu0 0.0
    %1037 = vmatpush1.msra.mxu0 0.0
    %1038 = vmatprep.subr.mxu0 0.0
    %1039 = vmatpush1.msra.mxu0 0.0
    %1040 = vmatprep.subr.mxu0 0.0
    %1041 = vmatpush1.msra.mxu0 0.0
    %1042 = vmatprep.subr.mxu0 0.0
    %1043 = vmatpush1.msra.mxu0 0.0
    %1044 = vmatprep.subr.mxu0 0.0
    %1045 = vmatpush1.msra.mxu0 0.0
    %1046 = vmatprep.subr.mxu0 0.0
    %1047 = vmatpush1.msra.mxu0 0.0
    %1048 = vmatprep.subr.mxu0 0.0
    %1049 = vmatpush1.msra.mxu0 0.0
    %1050 = vmatprep.subr.mxu0 0.0
    %1051 = vmatpush1.msra.mxu0 0.0
    %1052 = vmatprep.subr.mxu0 0.0
    %1053 = vmatpush1.msra.mxu0 0.0
    %1054 = vmatprep.subr.mxu0 0.0
    %1055 = vmatpush1.msra.mxu0 0.0
    %1056 = vmatprep.subr.mxu0 0.0
    %1057 = vmatpush1.msra.mxu0 0.0
    %1058 = vmatprep.subr.mxu0 0.0
    %1059 = vmatpush1.msra.mxu0 0.0
    %1060 = vmatprep.subr.mxu0 0.0
    %1061 = vmatpush1.msra.mxu0 0.0
    %1062 = vmatprep.subr.mxu0 0.0
    %1063 = vmatpush1.msra.mxu0 0.0
    %1064 = vmatprep.subr.mxu0 0.0
    %1065 = vmatpush1.msra.mxu0 0.0
    %1066 = vmatprep.subr.mxu0 0.0
    %1067 = vmatpush1.msra.mxu0 0.0
    %1068 = vmatprep.subr.mxu0 0.0
    %1069 = vmatpush1.msra.mxu0 0.0
    %1070 = vmatprep.subr.mxu0 0.0
    %1071 = vmatpush1.msra.mxu0 0.0
    %1072 = vmatprep.subr.mxu0 0.0
    %1073 = vmatpush1.msra.mxu0 0.0
    %1074 = vmatprep.mubr.f32.mxu0 0.0
    %v1075 = vand.u32 %v580, 4294901760
    %1076 = vmatmul.mubr.f32.gmra.mrb[0].mxu0 %v1075
    %v1077 = vpop.f32.mrb[0].mxu0
    %v1078 = vadd.f32 %v999, %v1077
    %v1079 = vpop.f32.mrb[0].mxu0
    %1080 = vmatprep.mubr.f32.mxu0 0.0
    %v1081 = vand.u32 %v583, 4294901760
    %1082 = vmatmul.mubr.f32.gmra.mrb[0].mxu0 %v1081
    %v1083 = vpop.f32.mrb[0].mxu0
    %v1084 = vadd.f32 %v1005, %v1083
    %v1085 = vpop.f32.mrb[0].mxu0
    %1086 = vdwg.mxu0
    %v1088 = vsel %vm35, 0.0, 0
    %1090 = vmatprep.subr.mxu0 0.0
    %v1091 = vand.u32 %v14, 4294901760
    %1092 = vmatpush1.msra.mxu0 %v1091
    %1093 = vmatprep.subr.mxu0 0.0
    %v1094 = vand.u32 %v15, 4294901760
    %1095 = vmatpush1.msra.mxu0 %v1094
    %1096 = vmatprep.subr.mxu0 0.0
    %v1097 = vand.u32 %v16, 4294901760
    %1098 = vmatpush1.msra.mxu0 %v1097
    %1099 = vmatprep.subr.mxu0 0.0
    %v1100 = vand.u32 %v17, 4294901760
    %1101 = vmatpush1.msra.mxu0 %v1100
    %1102 = vmatprep.subr.mxu0 0.0
    %1103 = vmatpush1.msra.mxu0 0.0
    %1104 = vmatprep.subr.mxu0 0.0
    %1105 = vmatpush1.msra.mxu0 0.0
    %1106 = vmatprep.subr.mxu0 0.0
    %1107 = vmatpush1.msra.mxu0 0.0
    %1108 = vmatprep.subr.mxu0 0.0
    %1109 = vmatpush1.msra.mxu0 0.0
    %1110 = vmatprep.subr.mxu0 0.0
    %1111 = vmatpush1.msra.mxu0 0.0
    %1112 = vmatprep.subr.mxu0 0.0
    %1113 = vmatpush1.msra.mxu0 0.0
    %1114 = vmatprep.subr.mxu0 0.0
    %1115 = vmatpush1.msra.mxu0 0.0
    %1116 = vmatprep.subr.mxu0 0.0
    %1117 = vmatpush1.msra.mxu0 0.0
    %1118 = vmatprep.subr.mxu0 0.0
    %1119 = vmatpush1.msra.mxu0 0.0
    %1120 = vmatprep.subr.mxu0 0.0
    %1121 = vmatpush1.msra.mxu0 0.0
    %1122 = vmatprep.subr.mxu0 0.0
    %1123 = vmatpush1.msra.mxu0 0.0
    %1124 = vmatprep.subr.mxu0 0.0
    %1125 = vmatpush1.msra.mxu0 0.0
    %1126 = vmatprep.subr.mxu0 0.0
    %1127 = vmatpush1.msra.mxu0 0.0
    %1128 = vmatprep.subr.mxu0 0.0
    %1129 = vmatpush1.msra.mxu0 0.0
    %1130 = vmatprep.subr.mxu0 0.0
    %1131 = vmatpush1.msra.mxu0 0.0
    %1132 = vmatprep.subr.mxu0 0.0
    %1133 = vmatpush1.msra.mxu0 0.0
    %1134 = vmatprep.subr.mxu0 0.0
    %1135 = vmatpush1.msra.mxu0 0.0
    %1136 = vmatprep.subr.mxu0 0.0
    %1137 = vmatpush1.msra.mxu0 0.0
    %1138 = vmatprep.subr.mxu0 0.0
    %1139 = vmatpush1.msra.mxu0 0.0
    %1140 = vmatprep.subr.mxu0 0.0
    %1141 = vmatpush1.msra.mxu0 0.0
    %1142 = vmatprep.subr.mxu0 0.0
    %1143 = vmatpush1.msra.mxu0 0.0
    %1144 = vmatprep.subr.mxu0 0.0
    %1145 = vmatpush1.msra.mxu0 0.0
    %1146 = vmatprep.subr.mxu0 0.0
    %1147 = vmatpush1.msra.mxu0 0.0
    %1148 = vmatprep.subr.mxu0 0.0
    %1149 = vmatpush1.msra.mxu0 0.0
    %1150 = vmatprep.subr.mxu0 0.0
    %1151 = vmatpush1.msra.mxu0 0.0
    %1152 = vmatprep.subr.mxu0 0.0
    %1153 = vmatpush1.msra.mxu0 0.0
    %1154 = vmatprep.subr.mxu0 0.0
    %1155 = vmatpush1.msra.mxu0 0.0
    %1156 = vmatprep.subr.mxu0 0.0
    %1157 = vmatpush1.msra.mxu0 0.0
    %1158 = vmatprep.mubr.f32.mxu0 0.0
    %v1159 = vand.u32 %v1088, 4294901760
    %v1160 = vsub.f32 %v1088, %v1159
    %v1161 = vand.u32 %v1160, 4294901760
    %v1162 = vsub.f32 %v1160, %v1161
    %v1163 = vand.u32 %v1162, 4294901760
    %1164 = vmatmul.mubr.f32.gmra.mrb[0].mxu0 %v1163
    %v1165 = vpop.f32.mrb[0].mxu0
    %v1166 = vadd.f32 0.0, %v1165
    %v1167 = vpop.f32.mrb[0].mxu0
    %1168 = vdwg.mxu0
    %1169 = vmatprep.subr.mxu0 0.0
    %v1170 = vand.u32 %v14, 4294901760
    %v1171 = vsub.f32 %v14, %v1170
    %v1172 = vand.u32 %v1171, 4294901760
    %v1173 = vsub.f32 %v1171, %v1172
    %v1174 = vand.u32 %v1173, 4294901760
    %1175 = vmatpush1.msra.mxu0 %v1174
    %1176 = vmatprep.subr.mxu0 0.0
    %v1177 = vand.u32 %v15, 4294901760
    %v1178 = vsub.f32 %v15, %v1177
    %v1179 = vand.u32 %v1178, 4294901760
    %v1180 = vsub.f32 %v1178, %v1179
    %v1181 = vand.u32 %v1180, 4294901760
    %1182 = vmatpush1.msra.mxu0 %v1181
    %1183 = vmatprep.subr.mxu0 0.0
    %v1184 = vand.u32 %v16, 4294901760
    %v1185 = vsub.f32 %v16, %v1184
    %v1186 = vand.u32 %v1185, 4294901760
    %v1187 = vsub.f32 %v1185, %v1186
    %v1188 = vand.u32 %v1187, 4294901760
    %1189 = vmatpush1.msra.mxu0 %v1188
    %1190 = vmatprep.subr.mxu0 0.0
    %v1191 = vand.u32 %v17, 4294901760
    %v1192 = vsub.f32 %v17, %v1191
    %v1193 = vand.u32 %v1192, 4294901760
    %v1194 = vsub.f32 %v1192, %v1193
    %v1195 = vand.u32 %v1194, 4294901760
    %1196 = vmatpush1.msra.mxu0 %v1195
    %1197 = vmatprep.subr.mxu0 0.0
    %1198 = vmatpush1.msra.mxu0 0.0
    %1199 = vmatprep.subr.mxu0 0.0
    %1200 = vmatpush1.msra.mxu0 0.0
    %1201 = vmatprep.subr.mxu0 0.0
    %1202 = vmatpush1.msra.mxu0 0.0
    %1203 = vmatprep.subr.mxu0 0.0
    %1204 = vmatpush1.msra.mxu0 0.0
    %1205 = vmatprep.subr.mxu0 0.0
    %1206 = vmatpush1.msra.mxu0 0.0
    %1207 = vmatprep.subr.mxu0 0.0
    %1208 = vmatpush1.msra.mxu0 0.0
    %1209 = vmatprep.subr.mxu0 0.0
    %1210 = vmatpush1.msra.mxu0 0.0
    %1211 = vmatprep.subr.mxu0 0.0
    %1212 = vmatpush1.msra.mxu0 0.0
    %1213 = vmatprep.subr.mxu0 0.0
    %1214 = vmatpush1.msra.mxu0 0.0
    %1215 = vmatprep.subr.mxu0 0.0
    %1216 = vmatpush1.msra.mxu0 0.0
    %1217 = vmatprep.subr.mxu0 0.0
    %1218 = vmatpush1.msra.mxu0 0.0
    %1219 = vmatprep.subr.mxu0 0.0
    %1220 = vmatpush1.msra.mxu0 0.0
    %1221 = vmatprep.subr.mxu0 0.0
    %1222 = vmatpush1.msra.mxu0 0.0
    %1223 = vmatprep.subr.mxu0 0.0
    %1224 = vmatpush1.msra.mxu0 0.0
    %1225 = vmatprep.subr.mxu0 0.0
    %1226 = vmatpush1.msra.mxu0 0.0
    %1227 = vmatprep.subr.mxu0 0.0
    %1228 = vmatpush1.msra.mxu0 0.0
    %1229 = vmatprep.subr.mxu0 0.0
    %1230 = vmatpush1.msra.mxu0 0.0
    %1231 = vmatprep.subr.mxu0 0.0
    %1232 = vmatpush1.msra.mxu0 0.0
    %1233 = vmatprep.subr.mxu0 0.0
    %1234 = vmatpush1.msra.mxu0 0.0
    %1235 = vmatprep.subr.mxu0 0.0
    %1236 = vmatpush1.msra.mxu0 0.0
    %1237 = vmatprep.subr.mxu0 0.0
    %1238 = vmatpush1.msra.mxu0 0.0
    %1239 = vmatprep.subr.mxu0 0.0
    %1240 = vmatpush1.msra.mxu0 0.0
    %1241 = vmatprep.subr.mxu0 0.0
    %1242 = vmatpush1.msra.mxu0 0.0
    %1243 = vmatprep.subr.mxu0 0.0
    %1244 = vmatpush1.msra.mxu0 0.0
    %1245 = vmatprep.subr.mxu0 0.0
    %1246 = vmatpush1.msra.mxu0 0.0
    %1247 = vmatprep.subr.mxu0 0.0
    %1248 = vmatpush1.msra.mxu0 0.0
    %1249 = vmatprep.subr.mxu0 0.0
    %1250 = vmatpush1.msra.mxu0 0.0
    %1251 = vmatprep.subr.mxu0 0.0
    %1252 = vmatpush1.msra.mxu0 0.0
    %1253 = vmatprep.mubr.f32.mxu0 0.0
    %v1254 = vand.u32 %v1088, 4294901760
    %1255 = vmatmul.mubr.f32.gmra.mrb[0].mxu0 %v1254
    %v1256 = vpop.f32.mrb[0].mxu0
    %v1257 = vadd.f32 %v1166, %v1256
    %v1258 = vpop.f32.mrb[0].mxu0
    %1259 = vdwg.mxu0
    %1260 = vmatprep.subr.mxu0 0.0
    %v1261 = vand.u32 %v14, 4294901760
    %v1262 = vsub.f32 %v14, %v1261
    %1263 = vmatpush1.msra.mxu0 %v1262
    %1264 = vmatprep.subr.mxu0 0.0
    %v1265 = vand.u32 %v15, 4294901760
    %v1266 = vsub.f32 %v15, %v1265
    %1267 = vmatpush1.msra.mxu0 %v1266
    %1268 = vmatprep.subr.mxu0 0.0
    %v1269 = vand.u32 %v16, 4294901760
    %v1270 = vsub.f32 %v16, %v1269
    %1271 = vmatpush1.msra.mxu0 %v1270
    %1272 = vmatprep.subr.mxu0 0.0
    %v1273 = vand.u32 %v17, 4294901760
    %v1274 = vsub.f32 %v17, %v1273
    %1275 = vmatpush1.msra.mxu0 %v1274
    %1276 = vmatprep.subr.mxu0 0.0
    %1277 = vmatpush1.msra.mxu0 0.0
    %1278 = vmatprep.subr.mxu0 0.0
    %1279 = vmatpush1.msra.mxu0 0.0
    %1280 = vmatprep.subr.mxu0 0.0
    %1281 = vmatpush1.msra.mxu0 0.0
    %1282 = vmatprep.subr.mxu0 0.0
    %1283 = vmatpush1.msra.mxu0 0.0
    %1284 = vmatprep.subr.mxu0 0.0
    %1285 = vmatpush1.msra.mxu0 0.0
    %1286 = vmatprep.subr.mxu0 0.0
    %1287 = vmatpush1.msra.mxu0 0.0
    %1288 = vmatprep.subr.mxu0 0.0
    %1289 = vmatpush1.msra.mxu0 0.0
    %1290 = vmatprep.subr.mxu0 0.0
    %1291 = vmatpush1.msra.mxu0 0.0
    %1292 = vmatprep.subr.mxu0 0.0
    %1293 = vmatpush1.msra.mxu0 0.0
    %1294 = vmatprep.subr.mxu0 0.0
    %1295 = vmatpush1.msra.mxu0 0.0
    %1296 = vmatprep.subr.mxu0 0.0
    %1297 = vmatpush1.msra.mxu0 0.0
    %1298 = vmatprep.subr.mxu0 0.0
    %1299 = vmatpush1.msra.mxu0 0.0
    %1300 = vmatprep.subr.mxu0 0.0
    %1301 = vmatpush1.msra.mxu0 0.0
    %1302 = vmatprep.subr.mxu0 0.0
    %1303 = vmatpush1.msra.mxu0 0.0
    %1304 = vmatprep.subr.mxu0 0.0
    %1305 = vmatpush1.msra.mxu0 0.0
    %1306 = vmatprep.subr.mxu0 0.0
    %1307 = vmatpush1.msra.mxu0 0.0
    %1308 = vmatprep.subr.mxu0 0.0
    %1309 = vmatpush1.msra.mxu0 0.0
    %1310 = vmatprep.subr.mxu0 0.0
    %1311 = vmatpush1.msra.mxu0 0.0
    %1312 = vmatprep.subr.mxu0 0.0
    %1313 = vmatpush1.msra.mxu0 0.0
    %1314 = vmatprep.subr.mxu0 0.0
    %1315 = vmatpush1.msra.mxu0 0.0
    %1316 = vmatprep.subr.mxu0 0.0
    %1317 = vmatpush1.msra.mxu0 0.0
    %1318 = vmatprep.subr.mxu0 0.0
    %1319 = vmatpush1.msra.mxu0 0.0
    %1320 = vmatprep.subr.mxu0 0.0
    %1321 = vmatpush1.msra.mxu0 0.0
    %1322 = vmatprep.subr.mxu0 0.0
    %1323 = vmatpush1.msra.mxu0 0.0
    %1324 = vmatprep.subr.mxu0 0.0
    %1325 = vmatpush1.msra.mxu0 0.0
    %1326 = vmatprep.subr.mxu0 0.0
    %1327 = vmatpush1.msra.mxu0 0.0
    %1328 = vmatprep.subr.mxu0 0.0
    %1329 = vmatpush1.msra.mxu0 0.0
    %1330 = vmatprep.subr.mxu0 0.0
    %1331 = vmatpush1.msra.mxu0 0.0
    %1332 = vmatprep.mubr.f32.mxu0 0.0
    %v1333 = vand.u32 %v1088, 4294901760
    %v1334 = vsub.f32 %v1088, %v1333
    %1335 = vmatmul.mubr.f32.gmra.mrb[0].mxu0 %v1334
    %v1336 = vpop.f32.mrb[0].mxu0
    %v1337 = vadd.f32 %v1257, %v1336
    %v1338 = vpop.f32.mrb[0].mxu0
    %1339 = vdwg.mxu0
    %1340 = vmatprep.subr.mxu0 0.0
    %v1341 = vand.u32 %v14, 4294901760
    %1342 = vmatpush1.msra.mxu0 %v1341
    %1343 = vmatprep.subr.mxu0 0.0
    %v1344 = vand.u32 %v15, 4294901760
    %1345 = vmatpush1.msra.mxu0 %v1344
    %1346 = vmatprep.subr.mxu0 0.0
    %v1347 = vand.u32 %v16, 4294901760
    %1348 = vmatpush1.msra.mxu0 %v1347
    %1349 = vmatprep.subr.mxu0 0.0
    %v1350 = vand.u32 %v17, 4294901760
    %1351 = vmatpush1.msra.mxu0 %v1350
    %1352 = vmatprep.subr.mxu0 0.0
    %1353 = vmatpush1.msra.mxu0 0.0
    %1354 = vmatprep.subr.mxu0 0.0
    %1355 = vmatpush1.msra.mxu0 0.0
    %1356 = vmatprep.subr.mxu0 0.0
    %1357 = vmatpush1.msra.mxu0 0.0
    %1358 = vmatprep.subr.mxu0 0.0
    %1359 = vmatpush1.msra.mxu0 0.0
    %1360 = vmatprep.subr.mxu0 0.0
    %1361 = vmatpush1.msra.mxu0 0.0
    %1362 = vmatprep.subr.mxu0 0.0
    %1363 = vmatpush1.msra.mxu0 0.0
    %1364 = vmatprep.subr.mxu0 0.0
    %1365 = vmatpush1.msra.mxu0 0.0
    %1366 = vmatprep.subr.mxu0 0.0
    %1367 = vmatpush1.msra.mxu0 0.0
    %1368 = vmatprep.subr.mxu0 0.0
    %1369 = vmatpush1.msra.mxu0 0.0
    %1370 = vmatprep.subr.mxu0 0.0
    %1371 = vmatpush1.msra.mxu0 0.0
    %1372 = vmatprep.subr.mxu0 0.0
    %1373 = vmatpush1.msra.mxu0 0.0
    %1374 = vmatprep.subr.mxu0 0.0
    %1375 = vmatpush1.msra.mxu0 0.0
    %1376 = vmatprep.subr.mxu0 0.0
    %1377 = vmatpush1.msra.mxu0 0.0
    %1378 = vmatprep.subr.mxu0 0.0
    %1379 = vmatpush1.msra.mxu0 0.0
    %1380 = vmatprep.subr.mxu0 0.0
    %1381 = vmatpush1.msra.mxu0 0.0
    %1382 = vmatprep.subr.mxu0 0.0
    %1383 = vmatpush1.msra.mxu0 0.0
    %1384 = vmatprep.subr.mxu0 0.0
    %1385 = vmatpush1.msra.mxu0 0.0
    %1386 = vmatprep.subr.mxu0 0.0
    %1387 = vmatpush1.msra.mxu0 0.0
    %1388 = vmatprep.subr.mxu0 0.0
    %1389 = vmatpush1.msra.mxu0 0.0
    %1390 = vmatprep.subr.mxu0 0.0
    %1391 = vmatpush1.msra.mxu0 0.0
    %1392 = vmatprep.subr.mxu0 0.0
    %1393 = vmatpush1.msra.mxu0 0.0
    %1394 = vmatprep.subr.mxu0 0.0
    %1395 = vmatpush1.msra.mxu0 0.0
    %1396 = vmatprep.subr.mxu0 0.0
    %1397 = vmatpush1.msra.mxu0 0.0
    %1398 = vmatprep.subr.mxu0 0.0
    %1399 = vmatpush1.msra.mxu0 0.0
    %1400 = vmatprep.subr.mxu0 0.0
    %1401 = vmatpush1.msra.mxu0 0.0
    %1402 = vmatprep.subr.mxu0 0.0
    %1403 = vmatpush1.msra.mxu0 0.0
    %1404 = vmatprep.subr.mxu0 0.0
    %1405 = vmatpush1.msra.mxu0 0.0
    %1406 = vmatprep.subr.mxu0 0.0
    %1407 = vmatpush1.msra.mxu0 0.0
    %1408 = vmatprep.mubr.f32.mxu0 0.0
    %v1409 = vand.u32 %v1088, 4294901760
    %v1410 = vsub.f32 %v1088, %v1409
    %v1411 = vand.u32 %v1410, 4294901760
    %1412 = vmatmul.mubr.f32.gmra.mrb[0].mxu0 %v1411
    %v1413 = vpop.f32.mrb[0].mxu0
    %v1414 = vadd.f32 %v1337, %v1413
    %v1415 = vpop.f32.mrb[0].mxu0
    %1416 = vdwg.mxu0
    %1417 = vmatprep.subr.mxu0 0.0
    %v1418 = vand.u32 %v14, 4294901760
    %v1419 = vsub.f32 %v14, %v1418
    %v1420 = vand.u32 %v1419, 4294901760
    %1421 = vmatpush1.msra.mxu0 %v1420
    %1422 = vmatprep.subr.mxu0 0.0
    %v1423 = vand.u32 %v15, 4294901760
    %v1424 = vsub.f32 %v15, %v1423
    %v1425 = vand.u32 %v1424, 4294901760
    %1426 = vmatpush1.msra.mxu0 %v1425
    %1427 = vmatprep.subr.mxu0 0.0
    %v1428 = vand.u32 %v16, 4294901760
    %v1429 = vsub.f32 %v16, %v1428
    %v1430 = vand.u32 %v1429, 4294901760
    %1431 = vmatpush1.msra.mxu0 %v1430
    %1432 = vmatprep.subr.mxu0 0.0
    %v1433 = vand.u32 %v17, 4294901760
    %v1434 = vsub.f32 %v17, %v1433
    %v1435 = vand.u32 %v1434, 4294901760
    %1436 = vmatpush1.msra.mxu0 %v1435
    %1437 = vmatprep.subr.mxu0 0.0
    %1438 = vmatpush1.msra.mxu0 0.0
    %1439 = vmatprep.subr.mxu0 0.0
    %1440 = vmatpush1.msra.mxu0 0.0
    %1441 = vmatprep.subr.mxu0 0.0
    %1442 = vmatpush1.msra.mxu0 0.0
    %1443 = vmatprep.subr.mxu0 0.0
    %1444 = vmatpush1.msra.mxu0 0.0
    %1445 = vmatprep.subr.mxu0 0.0
    %1446 = vmatpush1.msra.mxu0 0.0
    %1447 = vmatprep.subr.mxu0 0.0
    %1448 = vmatpush1.msra.mxu0 0.0
    %1449 = vmatprep.subr.mxu0 0.0
    %1450 = vmatpush1.msra.mxu0 0.0
    %1451 = vmatprep.subr.mxu0 0.0
    %1452 = vmatpush1.msra.mxu0 0.0
    %1453 = vmatprep.subr.mxu0 0.0
    %1454 = vmatpush1.msra.mxu0 0.0
    %1455 = vmatprep.subr.mxu0 0.0
    %1456 = vmatpush1.msra.mxu0 0.0
    %1457 = vmatprep.subr.mxu0 0.0
    %1458 = vmatpush1.msra.mxu0 0.0
    %1459 = vmatprep.subr.mxu0 0.0
    %1460 = vmatpush1.msra.mxu0 0.0
    %1461 = vmatprep.subr.mxu0 0.0
    %1462 = vmatpush1.msra.mxu0 0.0
    %1463 = vmatprep.subr.mxu0 0.0
    %1464 = vmatpush1.msra.mxu0 0.0
    %1465 = vmatprep.subr.mxu0 0.0
    %1466 = vmatpush1.msra.mxu0 0.0
    %1467 = vmatprep.subr.mxu0 0.0
    %1468 = vmatpush1.msra.mxu0 0.0
    %1469 = vmatprep.subr.mxu0 0.0
    %1470 = vmatpush1.msra.mxu0 0.0
    %1471 = vmatprep.subr.mxu0 0.0
    %1472 = vmatpush1.msra.mxu0 0.0
    %1473 = vmatprep.subr.mxu0 0.0
    %1474 = vmatpush1.msra.mxu0 0.0
    %1475 = vmatprep.subr.mxu0 0.0
    %1476 = vmatpush1.msra.mxu0 0.0
    %1477 = vmatprep.subr.mxu0 0.0
    %1478 = vmatpush1.msra.mxu0 0.0
    %1479 = vmatprep.subr.mxu0 0.0
    %1480 = vmatpush1.msra.mxu0 0.0
    %1481 = vmatprep.subr.mxu0 0.0
    %1482 = vmatpush1.msra.mxu0 0.0
    %1483 = vmatprep.subr.mxu0 0.0
    %1484 = vmatpush1.msra.mxu0 0.0
    %1485 = vmatprep.subr.mxu0 0.0
    %1486 = vmatpush1.msra.mxu0 0.0
    %1487 = vmatprep.subr.mxu0 0.0
    %1488 = vmatpush1.msra.mxu0 0.0
    %1489 = vmatprep.subr.mxu0 0.0
    %1490 = vmatpush1.msra.mxu0 0.0
    %1491 = vmatprep.subr.mxu0 0.0
    %1492 = vmatpush1.msra.mxu0 0.0
    %1493 = vmatprep.mubr.f32.mxu0 0.0
    %v1494 = vand.u32 %v1088, 4294901760
    %1495 = vmatmul.mubr.f32.gmra.mrb[0].mxu0 %v1494
    %v1496 = vpop.f32.mrb[0].mxu0
    %v1497 = vadd.f32 %v1414, %v1496
    %v1498 = vpop.f32.mrb[0].mxu0
    %1499 = vdwg.mxu0
    %1500 = vmatprep.subr.mxu0 0.0
    %v1501 = vand.u32 %v14, 4294901760
    %1502 = vmatpush1.msra.mxu0 %v1501
    %1503 = vmatprep.subr.mxu0 0.0
    %v1504 = vand.u32 %v15, 4294901760
    %1505 = vmatpush1.msra.mxu0 %v1504
    %1506 = vmatprep.subr.mxu0 0.0
    %v1507 = vand.u32 %v16, 4294901760
    %1508 = vmatpush1.msra.mxu0 %v1507
    %1509 = vmatprep.subr.mxu0 0.0
    %v1510 = vand.u32 %v17, 4294901760
    %1511 = vmatpush1.msra.mxu0 %v1510
    %1512 = vmatprep.subr.mxu0 0.0
    %1513 = vmatpush1.msra.mxu0 0.0
    %1514 = vmatprep.subr.mxu0 0.0
    %1515 = vmatpush1.msra.mxu0 0.0
    %1516 = vmatprep.subr.mxu0 0.0
    %1517 = vmatpush1.msra.mxu0 0.0
    %1518 = vmatprep.subr.mxu0 0.0
    %1519 = vmatpush1.msra.mxu0 0.0
    %1520 = vmatprep.subr.mxu0 0.0
    %1521 = vmatpush1.msra.mxu0 0.0
    %1522 = vmatprep.subr.mxu0 0.0
    %1523 = vmatpush1.msra.mxu0 0.0
    %1524 = vmatprep.subr.mxu0 0.0
    %1525 = vmatpush1.msra.mxu0 0.0
    %1526 = vmatprep.subr.mxu0 0.0
    %1527 = vmatpush1.msra.mxu0 0.0
    %1528 = vmatprep.subr.mxu0 0.0
    %1529 = vmatpush1.msra.mxu0 0.0
    %1530 = vmatprep.subr.mxu0 0.0
    %1531 = vmatpush1.msra.mxu0 0.0
    %1532 = vmatprep.subr.mxu0 0.0
    %1533 = vmatpush1.msra.mxu0 0.0
    %1534 = vmatprep.subr.mxu0 0.0
    %1535 = vmatpush1.msra.mxu0 0.0
    %1536 = vmatprep.subr.mxu0 0.0
    %1537 = vmatpush1.msra.mxu0 0.0
    %1538 = vmatprep.subr.mxu0 0.0
    %1539 = vmatpush1.msra.mxu0 0.0
    %1540 = vmatprep.subr.mxu0 0.0
    %1541 = vmatpush1.msra.mxu0 0.0
    %1542 = vmatprep.subr.mxu0 0.0
    %1543 = vmatpush1.msra.mxu0 0.0
    %1544 = vmatprep.subr.mxu0 0.0
    %1545 = vmatpush1.msra.mxu0 0.0
    %1546 = vmatprep.subr.mxu0 0.0
    %1547 = vmatpush1.msra.mxu0 0.0
    %1548 = vmatprep.subr.mxu0 0.0
    %1549 = vmatpush1.msra.mxu0 0.0
    %1550 = vmatprep.subr.mxu0 0.0
    %1551 = vmatpush1.msra.mxu0 0.0
    %1552 = vmatprep.subr.mxu0 0.0
    %1553 = vmatpush1.msra.mxu0 0.0
    %1554 = vmatprep.subr.mxu0 0.0
    %1555 = vmatpush1.msra.mxu0 0.0
    %1556 = vmatprep.subr.mxu0 0.0
    %1557 = vmatpush1.msra.mxu0 0.0
    %1558 = vmatprep.subr.mxu0 0.0
    %1559 = vmatpush1.msra.mxu0 0.0
    %1560 = vmatprep.subr.mxu0 0.0
    %1561 = vmatpush1.msra.mxu0 0.0
    %1562 = vmatprep.subr.mxu0 0.0
    %1563 = vmatpush1.msra.mxu0 0.0
    %1564 = vmatprep.subr.mxu0 0.0
    %1565 = vmatpush1.msra.mxu0 0.0
    %1566 = vmatprep.subr.mxu0 0.0
    %1567 = vmatpush1.msra.mxu0 0.0
    %1568 = vmatprep.mubr.f32.mxu0 0.0
    %v1569 = vand.u32 %v1088, 4294901760
    %1570 = vmatmul.mubr.f32.gmra.mrb[0].mxu0 %v1569
    %v1571 = vpop.f32.mrb[0].mxu0
    %v1572 = vadd.f32 %v1497, %v1571
    %v1573 = vpop.f32.mrb[0].mxu0
    %1574 = vdwg.mxu0
    %v1576 = vrot.slane %v1572, 2
    %v1578 = vadd.f32 %v1084, %v1576
    %v1579 = vxor.u32 %v1578, 2147483648
    %v1580 = vmul.f32 %v1579, 1.442695
    %v1581 = vpow.pop %v1580
    %v1582 = vadd.f32 %v1581, 1.0
    %v1583 = vrcp.pop %v1582
    %v1584 = vmul.f32 1.0, %v1583
    %v1585 = vtanh.pop %v1578
    %v1586 = vmul.f32 %v1584, 0.0
    %1588 = vrot.lane.b32.xlu0 %v1585, 64
    %v1589 = vpop.permute.xlu0 %1588
    %v1591 = vmul.f32 %v1584, %v1589
    %1593 = vrot.lane.b32.xlu0 %v1591, 32
    %v1594 = vpop.permute.xlu0 %1593
    %v1596 = vadd.f32 %v1586, %v1594
    %v1597 = vtanh.pop %v1596
    %1599 = vrot.lane.b32.xlu0 %v1597, 64
    %v1600 = vpop.permute.xlu0 %1599
    %v1602 = vmul.f32 %v1584, %v1600
    %v1604 = vrot.slane %v1602, 6
    %1605 = vrot.lane.b32.xlu0 %v1604, 32
    %v1606 = vpop.permute.xlu0 %1605
    %v1607 = vsel %vm35, %v1606, 0
    %1609 = vmatprep.subr.mxu0 0.0
    %v1610 = vand.u32 %v14, 4294901760
    %1611 = vmatpush1.msra.mxu0 %v1610
    %1612 = vmatprep.subr.mxu0 0.0
    %v1613 = vand.u32 %v15, 4294901760
    %1614 = vmatpush1.msra.mxu0 %v1613
    %1615 = vmatprep.subr.mxu0 0.0
    %v1616 = vand.u32 %v16, 4294901760
    %1617 = vmatpush1.msra.mxu0 %v1616
    %1618 = vmatprep.subr.mxu0 0.0
    %v1619 = vand.u32 %v17, 4294901760
    %1620 = vmatpush1.msra.mxu0 %v1619
    %1621 = vmatprep.subr.mxu0 0.0
    %1622 = vmatpush1.msra.mxu0 0.0
    %1623 = vmatprep.subr.mxu0 0.0
    %1624 = vmatpush1.msra.mxu0 0.0
    %1625 = vmatprep.subr.mxu0 0.0
    %1626 = vmatpush1.msra.mxu0 0.0
    %1627 = vmatprep.subr.mxu0 0.0
    %1628 = vmatpush1.msra.mxu0 0.0
    %1629 = vmatprep.subr.mxu0 0.0
    %1630 = vmatpush1.msra.mxu0 0.0
    %1631 = vmatprep.subr.mxu0 0.0
    %1632 = vmatpush1.msra.mxu0 0.0
    %1633 = vmatprep.subr.mxu0 0.0
    %1634 = vmatpush1.msra.mxu0 0.0
    %1635 = vmatprep.subr.mxu0 0.0
    %1636 = vmatpush1.msra.mxu0 0.0
    %1637 = vmatprep.subr.mxu0 0.0
    %1638 = vmatpush1.msra.mxu0 0.0
    %1639 = vmatprep.subr.mxu0 0.0
    %1640 = vmatpush1.msra.mxu0 0.0
    %1641 = vmatprep.subr.mxu0 0.0
    %1642 = vmatpush1.msra.mxu0 0.0
    %1643 = vmatprep.subr.mxu0 0.0
    %1644 = vmatpush1.msra.mxu0 0.0
    %1645 = vmatprep.subr.mxu0 0.0
    %1646 = vmatpush1.msra.mxu0 0.0
    %1647 = vmatprep.subr.mxu0 0.0
    %1648 = vmatpush1.msra.mxu0 0.0
    %1649 = vmatprep.subr.mxu0 0.0
    %1650 = vmatpush1.msra.mxu0 0.0
    %1651 = vmatprep.subr.mxu0 0.0
    %1652 = vmatpush1.msra.mxu0 0.0
    %1653 = vmatprep.subr.mxu0 0.0
    %1654 = vmatpush1.msra.mxu0 0.0
    %1655 = vmatprep.subr.mxu0 0.0
    %1656 = vmatpush1.msra.mxu0 0.0
    %1657 = vmatprep.subr.mxu0 0.0
    %1658 = vmatpush1.msra.mxu0 0.0
    %1659 = vmatprep.subr.mxu0 0.0
    %1660 = vmatpush1.msra.mxu0 0.0
    %1661 = vmatprep.subr.mxu0 0.0
    %1662 = vmatpush1.msra.mxu0 0.0
    %1663 = vmatprep.subr.mxu0 0.0
    %1664 = vmatpush1.msra.mxu0 0.0
    %1665 = vmatprep.subr.mxu0 0.0
    %1666 = vmatpush1.msra.mxu0 0.0
    %1667 = vmatprep.subr.mxu0 0.0
    %1668 = vmatpush1.msra.mxu0 0.0
    %1669 = vmatprep.subr.mxu0 0.0
    %1670 = vmatpush1.msra.mxu0 0.0
    %1671 = vmatprep.subr.mxu0 0.0
    %1672 = vmatpush1.msra.mxu0 0.0
    %1673 = vmatprep.subr.mxu0 0.0
    %1674 = vmatpush1.msra.mxu0 0.0
    %1675 = vmatprep.subr.mxu0 0.0
    %1676 = vmatpush1.msra.mxu0 0.0
    %1677 = vmatprep.mubr.f32.mxu0 0.0
    %v1678 = vand.u32 %v1607, 4294901760
    %v1679 = vsub.f32 %v1607, %v1678
    %v1680 = vand.u32 %v1679, 4294901760
    %v1681 = vsub.f32 %v1679, %v1680
    %v1682 = vand.u32 %v1681, 4294901760
    %1683 = vmatmul.mubr.f32.gmra.mrb[0].mxu0 %v1682
    %v1684 = vpop.f32.mrb[0].mxu0
    %v1685 = vadd.f32 0.0, %v1684
    %v1686 = vpop.f32.mrb[0].mxu0
    %1687 = vdwg.mxu0
    %1688 = vmatprep.subr.mxu0 0.0
    %v1689 = vand.u32 %v14, 4294901760
    %v1690 = vsub.f32 %v14, %v1689
    %v1691 = vand.u32 %v1690, 4294901760
    %v1692 = vsub.f32 %v1690, %v1691
    %v1693 = vand.u32 %v1692, 4294901760
    %1694 = vmatpush1.msra.mxu0 %v1693
    %1695 = vmatprep.subr.mxu0 0.0
    %v1696 = vand.u32 %v15, 4294901760
    %v1697 = vsub.f32 %v15, %v1696
    %v1698 = vand.u32 %v1697, 4294901760
    %v1699 = vsub.f32 %v1697, %v1698
    %v1700 = vand.u32 %v1699, 4294901760
    %1701 = vmatpush1.msra.mxu0 %v1700
    %1702 = vmatprep.subr.mxu0 0.0
    %v1703 = vand.u32 %v16, 4294901760
    %v1704 = vsub.f32 %v16, %v1703
    %v1705 = vand.u32 %v1704, 4294901760
    %v1706 = vsub.f32 %v1704, %v1705
    %v1707 = vand.u32 %v1706, 4294901760
    %1708 = vmatpush1.msra.mxu0 %v1707
    %1709 = vmatprep.subr.mxu0 0.0
    %v1710 = vand.u32 %v17, 4294901760
    %v1711 = vsub.f32 %v17, %v1710
    %v1712 = vand.u32 %v1711, 4294901760
    %v1713 = vsub.f32 %v1711, %v1712
    %v1714 = vand.u32 %v1713, 4294901760
    %1715 = vmatpush1.msra.mxu0 %v1714
    %1716 = vmatprep.subr.mxu0 0.0
    %1717 = vmatpush1.msra.mxu0 0.0
    %1718 = vmatprep.subr.mxu0 0.0
    %1719 = vmatpush1.msra.mxu0 0.0
    %1720 = vmatprep.subr.mxu0 0.0
    %1721 = vmatpush1.msra.mxu0 0.0
    %1722 = vmatprep.subr.mxu0 0.0
    %1723 = vmatpush1.msra.mxu0 0.0
    %1724 = vmatprep.subr.mxu0 0.0
    %1725 = vmatpush1.msra.mxu0 0.0
    %1726 = vmatprep.subr.mxu0 0.0
    %1727 = vmatpush1.msra.mxu0 0.0
    %1728 = vmatprep.subr.mxu0 0.0
    %1729 = vmatpush1.msra.mxu0 0.0
    %1730 = vmatprep.subr.mxu0 0.0
    %1731 = vmatpush1.msra.mxu0 0.0
    %1732 = vmatprep.subr.mxu0 0.0
    %1733 = vmatpush1.msra.mxu0 0.0
    %1734 = vmatprep.subr.mxu0 0.0
    %1735 = vmatpush1.msra.mxu0 0.0
    %1736 = vmatprep.subr.mxu0 0.0
    %1737 = vmatpush1.msra.mxu0 0.0
    %1738 = vmatprep.subr.mxu0 0.0
    %1739 = vmatpush1.msra.mxu0 0.0
    %1740 = vmatprep.subr.mxu0 0.0
    %1741 = vmatpush1.msra.mxu0 0.0
    %1742 = vmatprep.subr.mxu0 0.0
    %1743 = vmatpush1.msra.mxu0 0.0
    %1744 = vmatprep.subr.mxu0 0.0
    %1745 = vmatpush1.msra.mxu0 0.0
    %1746 = vmatprep.subr.mxu0 0.0
    %1747 = vmatpush1.msra.mxu0 0.0
    %1748 = vmatprep.subr.mxu0 0.0
    %1749 = vmatpush1.msra.mxu0 0.0
    %1750 = vmatprep.subr.mxu0 0.0
    %1751 = vmatpush1.msra.mxu0 0.0
    %1752 = vmatprep.subr.mxu0 0.0
    %1753 = vmatpush1.msra.mxu0 0.0
    %1754 = vmatprep.subr.mxu0 0.0
    %1755 = vmatpush1.msra.mxu0 0.0
    %1756 = vmatprep.subr.mxu0 0.0
    %1757 = vmatpush1.msra.mxu0 0.0
    %1758 = vmatprep.subr.mxu0 0.0
    %1759 = vmatpush1.msra.mxu0 0.0
    %1760 = vmatprep.subr.mxu0 0.0
    %1761 = vmatpush1.msra.mxu0 0.0
    %1762 = vmatprep.subr.mxu0 0.0
    %1763 = vmatpush1.msra.mxu0 0.0
    %1764 = vmatprep.subr.mxu0 0.0
    %1765 = vmatpush1.msra.mxu0 0.0
    %1766 = vmatprep.subr.mxu0 0.0
    %1767 = vmatpush1.msra.mxu0 0.0
    %1768 = vmatprep.subr.mxu0 0.0
    %1769 = vmatpush1.msra.mxu0 0.0
    %1770 = vmatprep.subr.mxu0 0.0
    %1771 = vmatpush1.msra.mxu0 0.0
    %1772 = vmatprep.mubr.f32.mxu0 0.0
    %v1773 = vand.u32 %v1607, 4294901760
    %1774 = vmatmul.mubr.f32.gmra.mrb[0].mxu0 %v1773
    %v1775 = vpop.f32.mrb[0].mxu0
    %v1776 = vadd.f32 %v1685, %v1775
    %v1777 = vpop.f32.mrb[0].mxu0
    %1778 = vdwg.mxu0
    %1779 = vmatprep.subr.mxu0 0.0
    %v1780 = vand.u32 %v14, 4294901760
    %v1781 = vsub.f32 %v14, %v1780
    %1782 = vmatpush1.msra.mxu0 %v1781
    %1783 = vmatprep.subr.mxu0 0.0
    %v1784 = vand.u32 %v15, 4294901760
    %v1785 = vsub.f32 %v15, %v1784
    %1786 = vmatpush1.msra.mxu0 %v1785
    %1787 = vmatprep.subr.mxu0 0.0
    %v1788 = vand.u32 %v16, 4294901760
    %v1789 = vsub.f32 %v16, %v1788
    %1790 = vmatpush1.msra.mxu0 %v1789
    %1791 = vmatprep.subr.mxu0 0.0
    %v1792 = vand.u32 %v17, 4294901760
    %v1793 = vsub.f32 %v17, %v1792
    %1794 = vmatpush1.msra.mxu0 %v1793
    %1795 = vmatprep.subr.mxu0 0.0
    %1796 = vmatpush1.msra.mxu0 0.0
    %1797 = vmatprep.subr.mxu0 0.0
    %1798 = vmatpush1.msra.mxu0 0.0
    %1799 = vmatprep.subr.mxu0 0.0
    %1800 = vmatpush1.msra.mxu0 0.0
    %1801 = vmatprep.subr.mxu0 0.0
    %1802 = vmatpush1.msra.mxu0 0.0
    %1803 = vmatprep.subr.mxu0 0.0
    %1804 = vmatpush1.msra.mxu0 0.0
    %1805 = vmatprep.subr.mxu0 0.0
    %1806 = vmatpush1.msra.mxu0 0.0
    %1807 = vmatprep.subr.mxu0 0.0
    %1808 = vmatpush1.msra.mxu0 0.0
    %1809 = vmatprep.subr.mxu0 0.0
    %1810 = vmatpush1.msra.mxu0 0.0
    %1811 = vmatprep.subr.mxu0 0.0
    %1812 = vmatpush1.msra.mxu0 0.0
    %1813 = vmatprep.subr.mxu0 0.0
    %1814 = vmatpush1.msra.mxu0 0.0
    %1815 = vmatprep.subr.mxu0 0.0
    %1816 = vmatpush1.msra.mxu0 0.0
    %1817 = vmatprep.subr.mxu0 0.0
    %1818 = vmatpush1.msra.mxu0 0.0
    %1819 = vmatprep.subr.mxu0 0.0
    %1820 = vmatpush1.msra.mxu0 0.0
    %1821 = vmatprep.subr.mxu0 0.0
    %1822 = vmatpush1.msra.mxu0 0.0
    %1823 = vmatprep.subr.mxu0 0.0
    %1824 = vmatpush1.msra.mxu0 0.0
    %1825 = vmatprep.subr.mxu0 0.0
    %1826 = vmatpush1.msra.mxu0 0.0
    %1827 = vmatprep.subr.mxu0 0.0
    %1828 = vmatpush1.msra.mxu0 0.0
    %1829 = vmatprep.subr.mxu0 0.0
    %1830 = vmatpush1.msra.mxu0 0.0
    %1831 = vmatprep.subr.mxu0 0.0
    %1832 = vmatpush1.msra.mxu0 0.0
    %1833 = vmatprep.subr.mxu0 0.0
    %1834 = vmatpush1.msra.mxu0 0.0
    %1835 = vmatprep.subr.mxu0 0.0
    %1836 = vmatpush1.msra.mxu0 0.0
    %1837 = vmatprep.subr.mxu0 0.0
    %1838 = vmatpush1.msra.mxu0 0.0
    %1839 = vmatprep.subr.mxu0 0.0
    %1840 = vmatpush1.msra.mxu0 0.0
    %1841 = vmatprep.subr.mxu0 0.0
    %1842 = vmatpush1.msra.mxu0 0.0
    %1843 = vmatprep.subr.mxu0 0.0
    %1844 = vmatpush1.msra.mxu0 0.0
    %1845 = vmatprep.subr.mxu0 0.0
    %1846 = vmatpush1.msra.mxu0 0.0
    %1847 = vmatprep.subr.mxu0 0.0
    %1848 = vmatpush1.msra.mxu0 0.0
    %1849 = vmatprep.subr.mxu0 0.0
    %1850 = vmatpush1.msra.mxu0 0.0
    %1851 = vmatprep.mubr.f32.mxu0 0.0
    %v1852 = vand.u32 %v1607, 4294901760
    %v1853 = vsub.f32 %v1607, %v1852
    %1854 = vmatmul.mubr.f32.gmra.mrb[0].mxu0 %v1853
    %v1855 = vpop.f32.mrb[0].mxu0
    %v1856 = vadd.f32 %v1776, %v1855
    %v1857 = vpop.f32.mrb[0].mxu0
    %1858 = vdwg.mxu0
    %1859 = vmatprep.subr.mxu0 0.0
    %v1860 = vand.u32 %v14, 4294901760
    %1861 = vmatpush1.msra.mxu0 %v1860
    %1862 = vmatprep.subr.mxu0 0.0
    %v1863 = vand.u32 %v15, 4294901760
    %1864 = vmatpush1.msra.mxu0 %v1863
    %1865 = vmatprep.subr.mxu0 0.0
    %v1866 = vand.u32 %v16, 4294901760
    %1867 = vmatpush1.msra.mxu0 %v1866
    %1868 = vmatprep.subr.mxu0 0.0
    %v1869 = vand.u32 %v17, 4294901760
    %1870 = vmatpush1.msra.mxu0 %v1869
    %1871 = vmatprep.subr.mxu0 0.0
    %1872 = vmatpush1.msra.mxu0 0.0
    %1873 = vmatprep.subr.mxu0 0.0
    %1874 = vmatpush1.msra.mxu0 0.0
    %1875 = vmatprep.subr.mxu0 0.0
    %1876 = vmatpush1.msra.mxu0 0.0
    %1877 = vmatprep.subr.mxu0 0.0
    %1878 = vmatpush1.msra.mxu0 0.0
    %1879 = vmatprep.subr.mxu0 0.0
    %1880 = vmatpush1.msra.mxu0 0.0
    %1881 = vmatprep.subr.mxu0 0.0
    %1882 = vmatpush1.msra.mxu0 0.0
    %1883 = vmatprep.subr.mxu0 0.0
    %1884 = vmatpush1.msra.mxu0 0.0
    %1885 = vmatprep.subr.mxu0 0.0
    %1886 = vmatpush1.msra.mxu0 0.0
    %1887 = vmatprep.subr.mxu0 0.0
    %1888 = vmatpush1.msra.mxu0 0.0
    %1889 = vmatprep.subr.mxu0 0.0
    %1890 = vmatpush1.msra.mxu0 0.0
    %1891 = vmatprep.subr.mxu0 0.0
    %1892 = vmatpush1.msra.mxu0 0.0
    %1893 = vmatprep.subr.mxu0 0.0
    %1894 = vmatpush1.msra.mxu0 0.0
    %1895 = vmatprep.subr.mxu0 0.0
    %1896 = vmatpush1.msra.mxu0 0.0
    %1897 = vmatprep.subr.mxu0 0.0
    %1898 = vmatpush1.msra.mxu0 0.0
    %1899 = vmatprep.subr.mxu0 0.0
    %1900 = vmatpush1.msra.mxu0 0.0
    %1901 = vmatprep.subr.mxu0 0.0
    %1902 = vmatpush1.msra.mxu0 0.0
    %1903 = vmatprep.subr.mxu0 0.0
    %1904 = vmatpush1.msra.mxu0 0.0
    %1905 = vmatprep.subr.mxu0 0.0
    %1906 = vmatpush1.msra.mxu0 0.0
    %1907 = vmatprep.subr.mxu0 0.0
    %1908 = vmatpush1.msra.mxu0 0.0
    %1909 = vmatprep.subr.mxu0 0.0
    %1910 = vmatpush1.msra.mxu0 0.0
    %1911 = vmatprep.subr.mxu0 0.0
    %1912 = vmatpush1.msra.mxu0 0.0
    %1913 = vmatprep.subr.mxu0 0.0
    %1914 = vmatpush1.msra.mxu0 0.0
    %1915 = vmatprep.subr.mxu0 0.0
    %1916 = vmatpush1.msra.mxu0 0.0
    %1917 = vmatprep.subr.mxu0 0.0
    %1918 = vmatpush1.msra.mxu0 0.0
    %1919 = vmatprep.subr.mxu0 0.0
    %1920 = vmatpush1.msra.mxu0 0.0
    %1921 = vmatprep.subr.mxu0 0.0
    %1922 = vmatpush1.msra.mxu0 0.0
    %1923 = vmatprep.subr.mxu0 0.0
    %1924 = vmatpush1.msra.mxu0 0.0
    %1925 = vmatprep.subr.mxu0 0.0
    %1926 = vmatpush1.msra.mxu0 0.0
    %1927 = vmatprep.mubr.f32.mxu0 0.0
    %v1928 = vand.u32 %v1607, 4294901760
    %v1929 = vsub.f32 %v1607, %v1928
    %v1930 = vand.u32 %v1929, 4294901760
    %1931 = vmatmul.mubr.f32.gmra.mrb[0].mxu0 %v1930
    %v1932 = vpop.f32.mrb[0].mxu0
    %v1933 = vadd.f32 %v1856, %v1932
    %v1934 = vpop.f32.mrb[0].mxu0
    %1935 = vdwg.mxu0
    %1936 = vmatprep.subr.mxu0 0.0
    %v1937 = vand.u32 %v14, 4294901760
    %v1938 = vsub.f32 %v14, %v1937
    %v1939 = vand.u32 %v1938, 4294901760
    %1940 = vmatpush1.msra.mxu0 %v1939
    %1941 = vmatprep.subr.mxu0 0.0
    %v1942 = vand.u32 %v15, 4294901760
    %v1943 = vsub.f32 %v15, %v1942
    %v1944 = vand.u32 %v1943, 4294901760
    %1945 = vmatpush1.msra.mxu0 %v1944
    %1946 = vmatprep.subr.mxu0 0.0
    %v1947 = vand.u32 %v16, 4294901760
    %v1948 = vsub.f32 %v16, %v1947
    %v1949 = vand.u32 %v1948, 4294901760
    %1950 = vmatpush1.msra.mxu0 %v1949
    %1951 = vmatprep.subr.mxu0 0.0
    %v1952 = vand.u32 %v17, 4294901760
    %v1953 = vsub.f32 %v17, %v1952
    %v1954 = vand.u32 %v1953, 4294901760
    %1955 = vmatpush1.msra.mxu0 %v1954
    %1956 = vmatprep.subr.mxu0 0.0
    %1957 = vmatpush1.msra.mxu0 0.0
    %1958 = vmatprep.subr.mxu0 0.0
    %1959 = vmatpush1.msra.mxu0 0.0
    %1960 = vmatprep.subr.mxu0 0.0
    %1961 = vmatpush1.msra.mxu0 0.0
    %1962 = vmatprep.subr.mxu0 0.0
    %1963 = vmatpush1.msra.mxu0 0.0
    %1964 = vmatprep.subr.mxu0 0.0
    %1965 = vmatpush1.msra.mxu0 0.0
    %1966 = vmatprep.subr.mxu0 0.0
    %1967 = vmatpush1.msra.mxu0 0.0
    %1968 = vmatprep.subr.mxu0 0.0
    %1969 = vmatpush1.msra.mxu0 0.0
    %1970 = vmatprep.subr.mxu0 0.0
    %1971 = vmatpush1.msra.mxu0 0.0
    %1972 = vmatprep.subr.mxu0 0.0
    %1973 = vmatpush1.msra.mxu0 0.0
    %1974 = vmatprep.subr.mxu0 0.0
    %1975 = vmatpush1.msra.mxu0 0.0
    %1976 = vmatprep.subr.mxu0 0.0
    %1977 = vmatpush1.msra.mxu0 0.0
    %1978 = vmatprep.subr.mxu0 0.0
    %1979 = vmatpush1.msra.mxu0 0.0
    %1980 = vmatprep.subr.mxu0 0.0
    %1981 = vmatpush1.msra.mxu0 0.0
    %1982 = vmatprep.subr.mxu0 0.0
    %1983 = vmatpush1.msra.mxu0 0.0
    %1984 = vmatprep.subr.mxu0 0.0
    %1985 = vmatpush1.msra.mxu0 0.0
    %1986 = vmatprep.subr.mxu0 0.0
    %1987 = vmatpush1.msra.mxu0 0.0
    %1988 = vmatprep.subr.mxu0 0.0
    %1989 = vmatpush1.msra.mxu0 0.0
    %1990 = vmatprep.subr.mxu0 0.0
    %1991 = vmatpush1.msra.mxu0 0.0
    %1992 = vmatprep.subr.mxu0 0.0
    %1993 = vmatpush1.msra.mxu0 0.0
    %1994 = vmatprep.subr.mxu0 0.0
    %1995 = vmatpush1.msra.mxu0 0.0
    %1996 = vmatprep.subr.mxu0 0.0
    %1997 = vmatpush1.msra.mxu0 0.0
    %1998 = vmatprep.subr.mxu0 0.0
    %1999 = vmatpush1.msra.mxu0 0.0
    %2000 = vmatprep.subr.mxu0 0.0
    %2001 = vmatpush1.msra.mxu0 0.0
    %2002 = vmatprep.subr.mxu0 0.0
    %2003 = vmatpush1.msra.mxu0 0.0
    %2004 = vmatprep.subr.mxu0 0.0
    %2005 = vmatpush1.msra.mxu0 0.0
    %2006 = vmatprep.subr.mxu0 0.0
    %2007 = vmatpush1.msra.mxu0 0.0
    %2008 = vmatprep.subr.mxu0 0.0
    %2009 = vmatpush1.msra.mxu0 0.0
    %2010 = vmatprep.subr.mxu0 0.0
    %2011 = vmatpush1.msra.mxu0 0.0
    %2012 = vmatprep.mubr.f32.mxu0 0.0
    %v2013 = vand.u32 %v1607, 4294901760
    %2014 = vmatmul.mubr.f32.gmra.mrb[0].mxu0 %v2013
    %v2015 = vpop.f32.mrb[0].mxu0
    %v2016 = vadd.f32 %v1933, %v2015
    %v2017 = vpop.f32.mrb[0].mxu0
    %2018 = vdwg.mxu0
    %2019 = vmatprep.subr.mxu0 0.0
    %v2020 = vand.u32 %v14, 4294901760
    %2021 = vmatpush1.msra.mxu0 %v2020
    %2022 = vmatprep.subr.mxu0 0.0
    %v2023 = vand.u32 %v15, 4294901760
    %2024 = vmatpush1.msra.mxu0 %v2023
    %2025 = vmatprep.subr.mxu0 0.0
    %v2026 = vand.u32 %v16, 4294901760
    %2027 = vmatpush1.msra.mxu0 %v2026
    %2028 = vmatprep.subr.mxu0 0.0
    %v2029 = vand.u32 %v17, 4294901760
    %2030 = vmatpush1.msra.mxu0 %v2029
    %2031 = vmatprep.subr.mxu0 0.0
    %2032 = vmatpush1.msra.mxu0 0.0
    %2033 = vmatprep.subr.mxu0 0.0
    %2034 = vmatpush1.msra.mxu0 0.0
    %2035 = vmatprep.subr.mxu0 0.0
    %2036 = vmatpush1.msra.mxu0 0.0
    %2037 = vmatprep.subr.mxu0 0.0
    %2038 = vmatpush1.msra.mxu0 0.0
    %2039 = vmatprep.subr.mxu0 0.0
    %2040 = vmatpush1.msra.mxu0 0.0
    %2041 = vmatprep.subr.mxu0 0.0
    %2042 = vmatpush1.msra.mxu0 0.0
    %2043 = vmatprep.subr.mxu0 0.0
    %2044 = vmatpush1.msra.mxu0 0.0
    %2045 = vmatprep.subr.mxu0 0.0
    %2046 = vmatpush1.msra.mxu0 0.0
    %2047 = vmatprep.subr.mxu0 0.0
    %2048 = vmatpush1.msra.mxu0 0.0
    %2049 = vmatprep.subr.mxu0 0.0
    %2050 = vmatpush1.msra.mxu0 0.0
    %2051 = vmatprep.subr.mxu0 0.0
    %2052 = vmatpush1.msra.mxu0 0.0
    %2053 = vmatprep.subr.mxu0 0.0
    %2054 = vmatpush1.msra.mxu0 0.0
    %2055 = vmatprep.subr.mxu0 0.0
    %2056 = vmatpush1.msra.mxu0 0.0
    %2057 = vmatprep.subr.mxu0 0.0
    %2058 = vmatpush1.msra.mxu0 0.0
    %2059 = vmatprep.subr.mxu0 0.0
    %2060 = vmatpush1.msra.mxu0 0.0
    %2061 = vmatprep.subr.mxu0 0.0
    %2062 = vmatpush1.msra.mxu0 0.0
    %2063 = vmatprep.subr.mxu0 0.0
    %2064 = vmatpush1.msra.mxu0 0.0
    %2065 = vmatprep.subr.mxu0 0.0
    %2066 = vmatpush1.msra.mxu0 0.0
    %2067 = vmatprep.subr.mxu0 0.0
    %2068 = vmatpush1.msra.mxu0 0.0
    %2069 = vmatprep.subr.mxu0 0.0
    %2070 = vmatpush1.msra.mxu0 0.0
    %2071 = vmatprep.subr.mxu0 0.0
    %2072 = vmatpush1.msra.mxu0 0.0
    %2073 = vmatprep.subr.mxu0 0.0
    %2074 = vmatpush1.msra.mxu0 0.0
    %2075 = vmatprep.subr.mxu0 0.0
    %2076 = vmatpush1.msra.mxu0 0.0
    %2077 = vmatprep.subr.mxu0 0.0
    %2078 = vmatpush1.msra.mxu0 0.0
    %2079 = vmatprep.subr.mxu0 0.0
    %2080 = vmatpush1.msra.mxu0 0.0
    %2081 = vmatprep.subr.mxu0 0.0
    %2082 = vmatpush1.msra.mxu0 0.0
    %2083 = vmatprep.subr.mxu0 0.0
    %2084 = vmatpush1.msra.mxu0 0.0
    %2085 = vmatprep.subr.mxu0 0.0
    %2086 = vmatpush1.msra.mxu0 0.0
    %2087 = vmatprep.mubr.f32.mxu0 0.0
    %v2088 = vand.u32 %v1607, 4294901760
    %2089 = vmatmul.mubr.f32.gmra.mrb[0].mxu0 %v2088
    %v2090 = vpop.f32.mrb[0].mxu0
    %v2091 = vadd.f32 %v2016, %v2090
    %v2092 = vpop.f32.mrb[0].mxu0
    %2093 = vdwg.mxu0
    %v2095 = vrot.slane %v2091, 4
    %v2097 = vadd.f32 %v1084, %v2095
    %v2098 = vxor.u32 %v2097, 2147483648
    %v2099 = vmul.f32 %v2098, 1.442695
    %v2100 = vpow.pop %v2099
    %v2101 = vadd.f32 %v2100, 1.0
    %v2102 = vrcp.pop %v2101
    %v2103 = vmul.f32 1.0, %v2102
    %v2104 = vtanh.pop %v2097
    %v2106 = vrot.slane %v1596, 2
    %v2108 = vmul.f32 %v2103, %v2106
    %2110 = vrot.lane.b32.xlu0 %v2104, 64
    %v2111 = vpop.permute.xlu0 %2110
    %v2113 = vmul.f32 %v2103, %v2111
    %2115 = vrot.lane.b32.xlu0 %v2113, 32
    %v2116 = vpop.permute.xlu0 %2115
    %v2118 = vadd.f32 %v2108, %v2116
    %v2119 = vtanh.pop %v2118
    %2121 = vrot.lane.b32.xlu0 %v2119, 64
    %v2122 = vpop.permute.xlu0 %2121
    %v2124 = vmul.f32 %v2103, %v2122
    %v2126 = vrot.slane %v2124, 4
    %2127 = vrot.lane.b32.xlu0 %v2126, 32
    %v2128 = vpop.permute.xlu0 %2127
    %v2129 = vsel %vm35, %v2128, 0
    %2131 = vmatprep.subr.mxu0 0.0
    %v2132 = vand.u32 %v14, 4294901760
    %2133 = vmatpush1.msra.mxu0 %v2132
    %2134 = vmatprep.subr.mxu0 0.0
    %v2135 = vand.u32 %v15, 4294901760
    %2136 = vmatpush1.msra.mxu0 %v2135
    %2137 = vmatprep.subr.mxu0 0.0
    %v2138 = vand.u32 %v16, 4294901760
    %2139 = vmatpush1.msra.mxu0 %v2138
    %2140 = vmatprep.subr.mxu0 0.0
    %v2141 = vand.u32 %v17, 4294901760
    %2142 = vmatpush1.msra.mxu0 %v2141
    %2143 = vmatprep.subr.mxu0 0.0
    %2144 = vmatpush1.msra.mxu0 0.0
    %2145 = vmatprep.subr.mxu0 0.0
    %2146 = vmatpush1.msra.mxu0 0.0
    %2147 = vmatprep.subr.mxu0 0.0
    %2148 = vmatpush1.msra.mxu0 0.0
    %2149 = vmatprep.subr.mxu0 0.0
    %2150 = vmatpush1.msra.mxu0 0.0
    %2151 = vmatprep.subr.mxu0 0.0
    %2152 = vmatpush1.msra.mxu0 0.0
    %2153 = vmatprep.subr.mxu0 0.0
    %2154 = vmatpush1.msra.mxu0 0.0
    %2155 = vmatprep.subr.mxu0 0.0
    %2156 = vmatpush1.msra.mxu0 0.0
    %2157 = vmatprep.subr.mxu0 0.0
    %2158 = vmatpush1.msra.mxu0 0.0
    %2159 = vmatprep.subr.mxu0 0.0
    %2160 = vmatpush1.msra.mxu0 0.0
    %2161 = vmatprep.subr.mxu0 0.0
    %2162 = vmatpush1.msra.mxu0 0.0
    %2163 = vmatprep.subr.mxu0 0.0
    %2164 = vmatpush1.msra.mxu0 0.0
    %2165 = vmatprep.subr.mxu0 0.0
    %2166 = vmatpush1.msra.mxu0 0.0
    %2167 = vmatprep.subr.mxu0 0.0
    %2168 = vmatpush1.msra.mxu0 0.0
    %2169 = vmatprep.subr.mxu0 0.0
    %2170 = vmatpush1.msra.mxu0 0.0
    %2171 = vmatprep.subr.mxu0 0.0
    %2172 = vmatpush1.msra.mxu0 0.0
    %2173 = vmatprep.subr.mxu0 0.0
    %2174 = vmatpush1.msra.mxu0 0.0
    %2175 = vmatprep.subr.mxu0 0.0
    %2176 = vmatpush1.msra.mxu0 0.0
    %2177 = vmatprep.subr.mxu0 0.0
    %2178 = vmatpush1.msra.mxu0 0.0
    %2179 = vmatprep.subr.mxu0 0.0
    %2180 = vmatpush1.msra.mxu0 0.0
    %2181 = vmatprep.subr.mxu0 0.0
    %2182 = vmatpush1.msra.mxu0 0.0
    %2183 = vmatprep.subr.mxu0 0.0
    %2184 = vmatpush1.msra.mxu0 0.0
    %2185 = vmatprep.subr.mxu0 0.0
    %2186 = vmatpush1.msra.mxu0 0.0
    %2187 = vmatprep.subr.mxu0 0.0
    %2188 = vmatpush1.msra.mxu0 0.0
    %2189 = vmatprep.subr.mxu0 0.0
    %2190 = vmatpush1.msra.mxu0 0.0
    %2191 = vmatprep.subr.mxu0 0.0
    %2192 = vmatpush1.msra.mxu0 0.0
    %2193 = vmatprep.subr.mxu0 0.0
    %2194 = vmatpush1.msra.mxu0 0.0
    %2195 = vmatprep.subr.mxu0 0.0
    %2196 = vmatpush1.msra.mxu0 0.0
    %2197 = vmatprep.subr.mxu0 0.0
    %2198 = vmatpush1.msra.mxu0 0.0
    %2199 = vmatprep.mubr.f32.mxu0 0.0
    %v2200 = vand.u32 %v2129, 4294901760
    %v2201 = vsub.f32 %v2129, %v2200
    %v2202 = vand.u32 %v2201, 4294901760
    %v2203 = vsub.f32 %v2201, %v2202
    %v2204 = vand.u32 %v2203, 4294901760
    %2205 = vmatmul.mubr.f32.gmra.mrb[0].mxu0 %v2204
    %v2206 = vpop.f32.mrb[0].mxu0
    %v2207 = vadd.f32 0.0, %v2206
    %v2208 = vpop.f32.mrb[0].mxu0
    %2209 = vdwg.mxu0
    %2210 = vmatprep.subr.mxu0 0.0
    %v2211 = vand.u32 %v14, 4294901760
    %v2212 = vsub.f32 %v14, %v2211
    %v2213 = vand.u32 %v2212, 4294901760
    %v2214 = vsub.f32 %v2212, %v2213
    %v2215 = vand.u32 %v2214, 4294901760
    %2216 = vmatpush1.msra.mxu0 %v2215
    %2217 = vmatprep.subr.mxu0 0.0
    %v2218 = vand.u32 %v15, 4294901760
    %v2219 = vsub.f32 %v15, %v2218
    %v2220 = vand.u32 %v2219, 4294901760
    %v2221 = vsub.f32 %v2219, %v2220
    %v2222 = vand.u32 %v2221, 4294901760
    %2223 = vmatpush1.msra.mxu0 %v2222
    %2224 = vmatprep.subr.mxu0 0.0
    %v2225 = vand.u32 %v16, 4294901760
    %v2226 = vsub.f32 %v16, %v2225
    %v2227 = vand.u32 %v2226, 4294901760
    %v2228 = vsub.f32 %v2226, %v2227
    %v2229 = vand.u32 %v2228, 4294901760
    %2230 = vmatpush1.msra.mxu0 %v2229
    %2231 = vmatprep.subr.mxu0 0.0
    %v2232 = vand.u32 %v17, 4294901760
    %v2233 = vsub.f32 %v17, %v2232
    %v2234 = vand.u32 %v2233, 4294901760
    %v2235 = vsub.f32 %v2233, %v2234
    %v2236 = vand.u32 %v2235, 4294901760
    %2237 = vmatpush1.msra.mxu0 %v2236
    %2238 = vmatprep.subr.mxu0 0.0
    %2239 = vmatpush1.msra.mxu0 0.0
    %2240 = vmatprep.subr.mxu0 0.0
    %2241 = vmatpush1.msra.mxu0 0.0
    %2242 = vmatprep.subr.mxu0 0.0
    %2243 = vmatpush1.msra.mxu0 0.0
    %2244 = vmatprep.subr.mxu0 0.0
    %2245 = vmatpush1.msra.mxu0 0.0
    %2246 = vmatprep.subr.mxu0 0.0
    %2247 = vmatpush1.msra.mxu0 0.0
    %2248 = vmatprep.subr.mxu0 0.0
    %2249 = vmatpush1.msra.mxu0 0.0
    %2250 = vmatprep.subr.mxu0 0.0
    %2251 = vmatpush1.msra.mxu0 0.0
    %2252 = vmatprep.subr.mxu0 0.0
    %2253 = vmatpush1.msra.mxu0 0.0
    %2254 = vmatprep.subr.mxu0 0.0
    %2255 = vmatpush1.msra.mxu0 0.0
    %2256 = vmatprep.subr.mxu0 0.0
    %2257 = vmatpush1.msra.mxu0 0.0
    %2258 = vmatprep.subr.mxu0 0.0
    %2259 = vmatpush1.msra.mxu0 0.0
    %2260 = vmatprep.subr.mxu0 0.0
    %2261 = vmatpush1.msra.mxu0 0.0
    %2262 = vmatprep.subr.mxu0 0.0
    %2263 = vmatpush1.msra.mxu0 0.0
    %2264 = vmatprep.subr.mxu0 0.0
    %2265 = vmatpush1.msra.mxu0 0.0
    %2266 = vmatprep.subr.mxu0 0.0
    %2267 = vmatpush1.msra.mxu0 0.0
    %2268 = vmatprep.subr.mxu0 0.0
    %2269 = vmatpush1.msra.mxu0 0.0
    %2270 = vmatprep.subr.mxu0 0.0
    %2271 = vmatpush1.msra.mxu0 0.0
    %2272 = vmatprep.subr.mxu0 0.0
    %2273 = vmatpush1.msra.mxu0 0.0
    %2274 = vmatprep.subr.mxu0 0.0
    %2275 = vmatpush1.msra.mxu0 0.0
    %2276 = vmatprep.subr.mxu0 0.0
    %2277 = vmatpush1.msra.mxu0 0.0
    %2278 = vmatprep.subr.mxu0 0.0
    %2279 = vmatpush1.msra.mxu0 0.0
    %2280 = vmatprep.subr.mxu0 0.0
    %2281 = vmatpush1.msra.mxu0 0.0
    %2282 = vmatprep.subr.mxu0 0.0
    %2283 = vmatpush1.msra.mxu0 0.0
    %2284 = vmatprep.subr.mxu0 0.0
    %2285 = vmatpush1.msra.mxu0 0.0
    %2286 = vmatprep.subr.mxu0 0.0
    %2287 = vmatpush1.msra.mxu0 0.0
    %2288 = vmatprep.subr.mxu0 0.0
    %2289 = vmatpush1.msra.mxu0 0.0
    %2290 = vmatprep.subr.mxu0 0.0
    %2291 = vmatpush1.msra.mxu0 0.0
    %2292 = vmatprep.subr.mxu0 0.0
    %2293 = vmatpush1.msra.mxu0 0.0
    %2294 = vmatprep.mubr.f32.mxu0 0.0
    %v2295 = vand.u32 %v2129, 4294901760
    %2296 = vmatmul.mubr.f32.gmra.mrb[0].mxu0 %v2295
    %v2297 = vpop.f32.mrb[0].mxu0
    %v2298 = vadd.f32 %v2207, %v2297
    %v2299 = vpop.f32.mrb[0].mxu0
    %2300 = vdwg.mxu0
    %2301 = vmatprep.subr.mxu0 0.0
    %v2302 = vand.u32 %v14, 4294901760
    %v2303 = vsub.f32 %v14, %v2302
    %2304 = vmatpush1.msra.mxu0 %v2303
    %2305 = vmatprep.subr.mxu0 0.0
    %v2306 = vand.u32 %v15, 4294901760
    %v2307 = vsub.f32 %v15, %v2306
    %2308 = vmatpush1.msra.mxu0 %v2307
    %2309 = vmatprep.subr.mxu0 0.0
    %v2310 = vand.u32 %v16, 4294901760
    %v2311 = vsub.f32 %v16, %v2310
    %2312 = vmatpush1.msra.mxu0 %v2311
    %2313 = vmatprep.subr.mxu0 0.0
    %v2314 = vand.u32 %v17, 4294901760
    %v2315 = vsub.f32 %v17, %v2314
    %2316 = vmatpush1.msra.mxu0 %v2315
    %2317 = vmatprep.subr.mxu0 0.0
    %2318 = vmatpush1.msra.mxu0 0.0
    %2319 = vmatprep.subr.mxu0 0.0
    %2320 = vmatpush1.msra.mxu0 0.0
    %2321 = vmatprep.subr.mxu0 0.0
    %2322 = vmatpush1.msra.mxu0 0.0
    %2323 = vmatprep.subr.mxu0 0.0
    %2324 = vmatpush1.msra.mxu0 0.0
    %2325 = vmatprep.subr.mxu0 0.0
    %2326 = vmatpush1.msra.mxu0 0.0
    %2327 = vmatprep.subr.mxu0 0.0
    %2328 = vmatpush1.msra.mxu0 0.0
    %2329 = vmatprep.subr.mxu0 0.0
    %2330 = vmatpush1.msra.mxu0 0.0
    %2331 = vmatprep.subr.mxu0 0.0
    %2332 = vmatpush1.msra.mxu0 0.0
    %2333 = vmatprep.subr.mxu0 0.0
    %2334 = vmatpush1.msra.mxu0 0.0
    %2335 = vmatprep.subr.mxu0 0.0
    %2336 = vmatpush1.msra.mxu0 0.0
    %2337 = vmatprep.subr.mxu0 0.0
    %2338 = vmatpush1.msra.mxu0 0.0
    %2339 = vmatprep.subr.mxu0 0.0
    %2340 = vmatpush1.msra.mxu0 0.0
    %2341 = vmatprep.subr.mxu0 0.0
    %2342 = vmatpush1.msra.mxu0 0.0
    %2343 = vmatprep.subr.mxu0 0.0
    %2344 = vmatpush1.msra.mxu0 0.0
    %2345 = vmatprep.subr.mxu0 0.0
    %2346 = vmatpush1.msra.mxu0 0.0
    %2347 = vmatprep.subr.mxu0 0.0
    %2348 = vmatpush1.msra.mxu0 0.0
    %2349 = vmatprep.subr.mxu0 0.0
    %2350 = vmatpush1.msra.mxu0 0.0
    %2351 = vmatprep.subr.mxu0 0.0
    %2352 = vmatpush1.msra.mxu0 0.0
    %2353 = vmatprep.subr.mxu0 0.0
    %2354 = vmatpush1.msra.mxu0 0.0
    %2355 = vmatprep.subr.mxu0 0.0
    %2356 = vmatpush1.msra.mxu0 0.0
    %2357 = vmatprep.subr.mxu0 0.0
    %2358 = vmatpush1.msra.mxu0 0.0
    %2359 = vmatprep.subr.mxu0 0.0
    %2360 = vmatpush1.msra.mxu0 0.0
    %2361 = vmatprep.subr.mxu0 0.0
    %2362 = vmatpush1.msra.mxu0 0.0
    %2363 = vmatprep.subr.mxu0 0.0
    %2364 = vmatpush1.msra.mxu0 0.0
    %2365 = vmatprep.subr.mxu0 0.0
    %2366 = vmatpush1.msra.mxu0 0.0
    %2367 = vmatprep.subr.mxu0 0.0
    %2368 = vmatpush1.msra.mxu0 0.0
    %2369 = vmatprep.subr.mxu0 0.0
    %2370 = vmatpush1.msra.mxu0 0.0
    %2371 = vmatprep.subr.mxu0 0.0
    %2372 = vmatpush1.msra.mxu0 0.0
    %2373 = vmatprep.mubr.f32.mxu0 0.0
    %v2374 = vand.u32 %v2129, 4294901760
    %v2375 = vsub.f32 %v2129, %v2374
    %2376 = vmatmul.mubr.f32.gmra.mrb[0].mxu0 %v2375
    %v2377 = vpop.f32.mrb[0].mxu0
    %v2378 = vadd.f32 %v2298, %v2377
    %v2379 = vpop.f32.mrb[0].mxu0
    %2380 = vdwg.mxu0
    %2381 = vmatprep.subr.mxu0 0.0
    %v2382 = vand.u32 %v14, 4294901760
    %2383 = vmatpush1.msra.mxu0 %v2382
    %2384 = vmatprep.subr.mxu0 0.0
    %v2385 = vand.u32 %v15, 4294901760
    %2386 = vmatpush1.msra.mxu0 %v2385
    %2387 = vmatprep.subr.mxu0 0.0
    %v2388 = vand.u32 %v16, 4294901760
    %2389 = vmatpush1.msra.mxu0 %v2388
    %2390 = vmatprep.subr.mxu0 0.0
    %v2391 = vand.u32 %v17, 4294901760
    %2392 = vmatpush1.msra.mxu0 %v2391
    %2393 = vmatprep.subr.mxu0 0.0
    %2394 = vmatpush1.msra.mxu0 0.0
    %2395 = vmatprep.subr.mxu0 0.0
    %2396 = vmatpush1.msra.mxu0 0.0
    %2397 = vmatprep.subr.mxu0 0.0
    %2398 = vmatpush1.msra.mxu0 0.0
    %2399 = vmatprep.subr.mxu0 0.0
    %2400 = vmatpush1.msra.mxu0 0.0
    %2401 = vmatprep.subr.mxu0 0.0
    %2402 = vmatpush1.msra.mxu0 0.0
    %2403 = vmatprep.subr.mxu0 0.0
    %2404 = vmatpush1.msra.mxu0 0.0
    %2405 = vmatprep.subr.mxu0 0.0
    %2406 = vmatpush1.msra.mxu0 0.0
    %2407 = vmatprep.subr.mxu0 0.0
    %2408 = vmatpush1.msra.mxu0 0.0
    %2409 = vmatprep.subr.mxu0 0.0
    %2410 = vmatpush1.msra.mxu0 0.0
    %2411 = vmatprep.subr.mxu0 0.0
    %2412 = vmatpush1.msra.mxu0 0.0
    %2413 = vmatprep.subr.mxu0 0.0
    %2414 = vmatpush1.msra.mxu0 0.0
    %2415 = vmatprep.subr.mxu0 0.0
    %2416 = vmatpush1.msra.mxu0 0.0
    %2417 = vmatprep.subr.mxu0 0.0
    %2418 = vmatpush1.msra.mxu0 0.0
    %2419 = vmatprep.subr.mxu0 0.0
    %2420 = vmatpush1.msra.mxu0 0.0
    %2421 = vmatprep.subr.mxu0 0.0
    %2422 = vmatpush1.msra.mxu0 0.0
    %2423 = vmatprep.subr.mxu0 0.0
    %2424 = vmatpush1.msra.mxu0 0.0
    %2425 = vmatprep.subr.mxu0 0.0
    %2426 = vmatpush1.msra.mxu0 0.0
    %2427 = vmatprep.subr.mxu0 0.0
    %2428 = vmatpush1.msra.mxu0 0.0
    %2429 = vmatprep.subr.mxu0 0.0
    %2430 = vmatpush1.msra.mxu0 0.0
    %2431 = vmatprep.subr.mxu0 0.0
    %2432 = vmatpush1.msra.mxu0 0.0
    %2433 = vmatprep.subr.mxu0 0.0
    %2434 = vmatpush1.msra.mxu0 0.0
    %2435 = vmatprep.subr.mxu0 0.0
    %2436 = vmatpush1.msra.mxu0 0.0
    %2437 = vmatprep.subr.mxu0 0.0
    %2438 = vmatpush1.msra.mxu0 0.0
    %2439 = vmatprep.subr.mxu0 0.0
    %2440 = vmatpush1.msra.mxu0 0.0
    %2441 = vmatprep.subr.mxu0 0.0
    %2442 = vmatpush1.msra.mxu0 0.0
    %2443 = vmatprep.subr.mxu0 0.0
    %2444 = vmatpush1.msra.mxu0 0.0
    %2445 = vmatprep.subr.mxu0 0.0
    %2446 = vmatpush1.msra.mxu0 0.0
    %2447 = vmatprep.subr.mxu0 0.0
    %2448 = vmatpush1.msra.mxu0 0.0
    %2449 = vmatprep.mubr.f32.mxu0 0.0
    %v2450 = vand.u32 %v2129, 4294901760
    %v2451 = vsub.f32 %v2129, %v2450
    %v2452 = vand.u32 %v2451, 4294901760
    %2453 = vmatmul.mubr.f32.gmra.mrb[0].mxu0 %v2452
    %v2454 = vpop.f32.mrb[0].mxu0
    %v2455 = vadd.f32 %v2378, %v2454
    %v2456 = vpop.f32.mrb[0].mxu0
    %2457 = vdwg.mxu0
    %2458 = vmatprep.subr.mxu0 0.0
    %v2459 = vand.u32 %v14, 4294901760
    %v2460 = vsub.f32 %v14, %v2459
    %v2461 = vand.u32 %v2460, 4294901760
    %2462 = vmatpush1.msra.mxu0 %v2461
    %2463 = vmatprep.subr.mxu0 0.0
    %v2464 = vand.u32 %v15, 4294901760
    %v2465 = vsub.f32 %v15, %v2464
    %v2466 = vand.u32 %v2465, 4294901760
    %2467 = vmatpush1.msra.mxu0 %v2466
    %2468 = vmatprep.subr.mxu0 0.0
    %v2469 = vand.u32 %v16, 4294901760
    %v2470 = vsub.f32 %v16, %v2469
    %v2471 = vand.u32 %v2470, 4294901760
    %2472 = vmatpush1.msra.mxu0 %v2471
    %2473 = vmatprep.subr.mxu0 0.0
    %v2474 = vand.u32 %v17, 4294901760
    %v2475 = vsub.f32 %v17, %v2474
    %v2476 = vand.u32 %v2475, 4294901760
    %2477 = vmatpush1.msra.mxu0 %v2476
    %2478 = vmatprep.subr.mxu0 0.0
    %2479 = vmatpush1.msra.mxu0 0.0
    %2480 = vmatprep.subr.mxu0 0.0
    %2481 = vmatpush1.msra.mxu0 0.0
    %2482 = vmatprep.subr.mxu0 0.0
    %2483 = vmatpush1.msra.mxu0 0.0
    %2484 = vmatprep.subr.mxu0 0.0
    %2485 = vmatpush1.msra.mxu0 0.0
    %2486 = vmatprep.subr.mxu0 0.0
    %2487 = vmatpush1.msra.mxu0 0.0
    %2488 = vmatprep.subr.mxu0 0.0
    %2489 = vmatpush1.msra.mxu0 0.0
    %2490 = vmatprep.subr.mxu0 0.0
    %2491 = vmatpush1.msra.mxu0 0.0
    %2492 = vmatprep.subr.mxu0 0.0
    %2493 = vmatpush1.msra.mxu0 0.0
    %2494 = vmatprep.subr.mxu0 0.0
    %2495 = vmatpush1.msra.mxu0 0.0
    %2496 = vmatprep.subr.mxu0 0.0
    %2497 = vmatpush1.msra.mxu0 0.0
    %2498 = vmatprep.subr.mxu0 0.0
    %2499 = vmatpush1.msra.mxu0 0.0
    %2500 = vmatprep.subr.mxu0 0.0
    %2501 = vmatpush1.msra.mxu0 0.0
    %2502 = vmatprep.subr.mxu0 0.0
    %2503 = vmatpush1.msra.mxu0 0.0
    %2504 = vmatprep.subr.mxu0 0.0
    %2505 = vmatpush1.msra.mxu0 0.0
    %2506 = vmatprep.subr.mxu0 0.0
    %2507 = vmatpush1.msra.mxu0 0.0
    %2508 = vmatprep.subr.mxu0 0.0
    %2509 = vmatpush1.msra.mxu0 0.0
    %2510 = vmatprep.subr.mxu0 0.0
    %2511 = vmatpush1.msra.mxu0 0.0
    %2512 = vmatprep.subr.mxu0 0.0
    %2513 = vmatpush1.msra.mxu0 0.0
    %2514 = vmatprep.subr.mxu0 0.0
    %2515 = vmatpush1.msra.mxu0 0.0
    %2516 = vmatprep.subr.mxu0 0.0
    %2517 = vmatpush1.msra.mxu0 0.0
    %2518 = vmatprep.subr.mxu0 0.0
    %2519 = vmatpush1.msra.mxu0 0.0
    %2520 = vmatprep.subr.mxu0 0.0
    %2521 = vmatpush1.msra.mxu0 0.0
    %2522 = vmatprep.subr.mxu0 0.0
    %2523 = vmatpush1.msra.mxu0 0.0
    %2524 = vmatprep.subr.mxu0 0.0
    %2525 = vmatpush1.msra.mxu0 0.0
    %2526 = vmatprep.subr.mxu0 0.0
    %2527 = vmatpush1.msra.mxu0 0.0
    %2528 = vmatprep.subr.mxu0 0.0
    %2529 = vmatpush1.msra.mxu0 0.0
    %2530 = vmatprep.subr.mxu0 0.0
    %2531 = vmatpush1.msra.mxu0 0.0
    %2532 = vmatprep.subr.mxu0 0.0
    %2533 = vmatpush1.msra.mxu0 0.0
    %2534 = vmatprep.mubr.f32.mxu0 0.0
    %v2535 = vand.u32 %v2129, 4294901760
    %2536 = vmatmul.mubr.f32.gmra.mrb[0].mxu0 %v2535
    %v2537 = vpop.f32.mrb[0].mxu0
    %v2538 = vadd.f32 %v2455, %v2537
    %v2539 = vpop.f32.mrb[0].mxu0
    %2540 = vdwg.mxu0
    %2541 = vmatprep.subr.mxu0 0.0
    %v2542 = vand.u32 %v14, 4294901760
    %2543 = vmatpush1.msra.mxu0 %v2542
    %2544 = vmatprep.subr.mxu0 0.0
    %v2545 = vand.u32 %v15, 4294901760
    %2546 = vmatpush1.msra.mxu0 %v2545
    %2547 = vmatprep.subr.mxu0 0.0
    %v2548 = vand.u32 %v16, 4294901760
    %2549 = vmatpush1.msra.mxu0 %v2548
    %2550 = vmatprep.subr.mxu0 0.0
    %v2551 = vand.u32 %v17, 4294901760
    %2552 = vmatpush1.msra.mxu0 %v2551
    %2553 = vmatprep.subr.mxu0 0.0
    %2554 = vmatpush1.msra.mxu0 0.0
    %2555 = vmatprep.subr.mxu0 0.0
    %2556 = vmatpush1.msra.mxu0 0.0
    %2557 = vmatprep.subr.mxu0 0.0
    %2558 = vmatpush1.msra.mxu0 0.0
    %2559 = vmatprep.subr.mxu0 0.0
    %2560 = vmatpush1.msra.mxu0 0.0
    %2561 = vmatprep.subr.mxu0 0.0
    %2562 = vmatpush1.msra.mxu0 0.0
    %2563 = vmatprep.subr.mxu0 0.0
    %2564 = vmatpush1.msra.mxu0 0.0
    %2565 = vmatprep.subr.mxu0 0.0
    %2566 = vmatpush1.msra.mxu0 0.0
    %2567 = vmatprep.subr.mxu0 0.0
    %2568 = vmatpush1.msra.mxu0 0.0
    %2569 = vmatprep.subr.mxu0 0.0
    %2570 = vmatpush1.msra.mxu0 0.0
    %2571 = vmatprep.subr.mxu0 0.0
    %2572 = vmatpush1.msra.mxu0 0.0
    %2573 = vmatprep.subr.mxu0 0.0
    %2574 = vmatpush1.msra.mxu0 0.0
    %2575 = vmatprep.subr.mxu0 0.0
    %2576 = vmatpush1.msra.mxu0 0.0
    %2577 = vmatprep.subr.mxu0 0.0
    %2578 = vmatpush1.msra.mxu0 0.0
    %2579 = vmatprep.subr.mxu0 0.0
    %2580 = vmatpush1.msra.mxu0 0.0
    %2581 = vmatprep.subr.mxu0 0.0
    %2582 = vmatpush1.msra.mxu0 0.0
    %2583 = vmatprep.subr.mxu0 0.0
    %2584 = vmatpush1.msra.mxu0 0.0
    %2585 = vmatprep.subr.mxu0 0.0
    %2586 = vmatpush1.msra.mxu0 0.0
    %2587 = vmatprep.subr.mxu0 0.0
    %2588 = vmatpush1.msra.mxu0 0.0
    %2589 = vmatprep.subr.mxu0 0.0
    %2590 = vmatpush1.msra.mxu0 0.0
    %2591 = vmatprep.subr.mxu0 0.0
    %2592 = vmatpush1.msra.mxu0 0.0
    %2593 = vmatprep.subr.mxu0 0.0
    %2594 = vmatpush1.msra.mxu0 0.0
    %2595 = vmatprep.subr.mxu0 0.0
    %2596 = vmatpush1.msra.mxu0 0.0
    %2597 = vmatprep.subr.mxu0 0.0
    %2598 = vmatpush1.msra.mxu0 0.0
    %2599 = vmatprep.subr.mxu0 0.0
    %2600 = vmatpush1.msra.mxu0 0.0
    %2601 = vmatprep.subr.mxu0 0.0
    %2602 = vmatpush1.msra.mxu0 0.0
    %2603 = vmatprep.subr.mxu0 0.0
    %2604 = vmatpush1.msra.mxu0 0.0
    %2605 = vmatprep.subr.mxu0 0.0
    %2606 = vmatpush1.msra.mxu0 0.0
    %2607 = vmatprep.subr.mxu0 0.0
    %2608 = vmatpush1.msra.mxu0 0.0
    %2609 = vmatprep.mubr.f32.mxu0 0.0
    %v2610 = vand.u32 %v2129, 4294901760
    %2611 = vmatmul.mubr.f32.gmra.mrb[0].mxu0 %v2610
    %v2612 = vpop.f32.mrb[0].mxu0
    %v2613 = vadd.f32 %v2538, %v2612
    %v2614 = vpop.f32.mrb[0].mxu0
    %2615 = vdwg.mxu0
    %v2617 = vrot.slane %v2613, 6
    %v2619 = vadd.f32 %v1084, %v2617
    %v2620 = vxor.u32 %v2619, 2147483648
    %v2621 = vmul.f32 %v2620, 1.442695
    %v2622 = vpow.pop %v2621
    %v2623 = vadd.f32 %v2622, 1.0
    %v2624 = vrcp.pop %v2623
    %v2625 = vmul.f32 1.0, %v2624
    %v2626 = vtanh.pop %v2619
    %v2628 = vrot.slane %v2118, 2
    %v2630 = vmul.f32 %v2625, %v2628
    %2632 = vrot.lane.b32.xlu0 %v2626, 64
    %v2633 = vpop.permute.xlu0 %2632
    %v2635 = vmul.f32 %v2625, %v2633
    %2637 = vrot.lane.b32.xlu0 %v2635, 32
    %v2638 = vpop.permute.xlu0 %2637
    %v2640 = vadd.f32 %v2630, %v2638
    %v2641 = vtanh.pop %v2640
    %2643 = vrot.lane.b32.xlu0 %v2641, 64
    %v2644 = vpop.permute.xlu0 %2643
    %v2646 = vmul.f32 %v2625, %v2644
    %v2648 = vrot.slane %v2646, 2
    %2649 = vrot.lane.b32.xlu0 %v2648, 32
    %v2650 = vpop.permute.xlu0 %2649
    %v2651 = vsel %vm35, %v2650, 0
    %2653 = vmatprep.subr.mxu0 0.0
    %v2654 = vand.u32 %v14, 4294901760
    %2655 = vmatpush1.msra.mxu0 %v2654
    %2656 = vmatprep.subr.mxu0 0.0
    %v2657 = vand.u32 %v15, 4294901760
    %2658 = vmatpush1.msra.mxu0 %v2657
    %2659 = vmatprep.subr.mxu0 0.0
    %v2660 = vand.u32 %v16, 4294901760
    %2661 = vmatpush1.msra.mxu0 %v2660
    %2662 = vmatprep.subr.mxu0 0.0
    %v2663 = vand.u32 %v17, 4294901760
    %2664 = vmatpush1.msra.mxu0 %v2663
    %2665 = vmatprep.subr.mxu0 0.0
    %2666 = vmatpush1.msra.mxu0 0.0
    %2667 = vmatprep.subr.mxu0 0.0
    %2668 = vmatpush1.msra.mxu0 0.0
    %2669 = vmatprep.subr.mxu0 0.0
    %2670 = vmatpush1.msra.mxu0 0.0
    %2671 = vmatprep.subr.mxu0 0.0
    %2672 = vmatpush1.msra.mxu0 0.0
    %2673 = vmatprep.subr.mxu0 0.0
    %2674 = vmatpush1.msra.mxu0 0.0
    %2675 = vmatprep.subr.mxu0 0.0
    %2676 = vmatpush1.msra.mxu0 0.0
    %2677 = vmatprep.subr.mxu0 0.0
    %2678 = vmatpush1.msra.mxu0 0.0
    %2679 = vmatprep.subr.mxu0 0.0
    %2680 = vmatpush1.msra.mxu0 0.0
    %2681 = vmatprep.subr.mxu0 0.0
    %2682 = vmatpush1.msra.mxu0 0.0
    %2683 = vmatprep.subr.mxu0 0.0
    %2684 = vmatpush1.msra.mxu0 0.0
    %2685 = vmatprep.subr.mxu0 0.0
    %2686 = vmatpush1.msra.mxu0 0.0
    %2687 = vmatprep.subr.mxu0 0.0
    %2688 = vmatpush1.msra.mxu0 0.0
    %2689 = vmatprep.subr.mxu0 0.0
    %2690 = vmatpush1.msra.mxu0 0.0
    %2691 = vmatprep.subr.mxu0 0.0
    %2692 = vmatpush1.msra.mxu0 0.0
    %2693 = vmatprep.subr.mxu0 0.0
    %2694 = vmatpush1.msra.mxu0 0.0
    %2695 = vmatprep.subr.mxu0 0.0
    %2696 = vmatpush1.msra.mxu0 0.0
    %2697 = vmatprep.subr.mxu0 0.0
    %2698 = vmatpush1.msra.mxu0 0.0
    %2699 = vmatprep.subr.mxu0 0.0
    %2700 = vmatpush1.msra.mxu0 0.0
    %2701 = vmatprep.subr.mxu0 0.0
    %2702 = vmatpush1.msra.mxu0 0.0
    %2703 = vmatprep.subr.mxu0 0.0
    %2704 = vmatpush1.msra.mxu0 0.0
    %2705 = vmatprep.subr.mxu0 0.0
    %2706 = vmatpush1.msra.mxu0 0.0
    %2707 = vmatprep.subr.mxu0 0.0
    %2708 = vmatpush1.msra.mxu0 0.0
    %2709 = vmatprep.subr.mxu0 0.0
    %2710 = vmatpush1.msra.mxu0 0.0
    %2711 = vmatprep.subr.mxu0 0.0
    %2712 = vmatpush1.msra.mxu0 0.0
    %2713 = vmatprep.subr.mxu0 0.0
    %2714 = vmatpush1.msra.mxu0 0.0
    %2715 = vmatprep.subr.mxu0 0.0
    %2716 = vmatpush1.msra.mxu0 0.0
    %2717 = vmatprep.subr.mxu0 0.0
    %2718 = vmatpush1.msra.mxu0 0.0
    %2719 = vmatprep.subr.mxu0 0.0
    %2720 = vmatpush1.msra.mxu0 0.0
    %2721 = vmatprep.mubr.f32.mxu0 0.0
    %v2722 = vand.u32 %v2651, 4294901760
    %v2723 = vsub.f32 %v2651, %v2722
    %v2724 = vand.u32 %v2723, 4294901760
    %v2725 = vsub.f32 %v2723, %v2724
    %v2726 = vand.u32 %v2725, 4294901760
    %2727 = vmatmul.mubr.f32.gmra.mrb[0].mxu0 %v2726
    %v2728 = vpop.f32.mrb[0].mxu0
    %v2729 = vadd.f32 0.0, %v2728
    %v2730 = vpop.f32.mrb[0].mxu0
    %2731 = vdwg.mxu0
    %2732 = vmatprep.subr.mxu0 0.0
    %v2733 = vand.u32 %v14, 4294901760
    %v2734 = vsub.f32 %v14, %v2733
    %v2735 = vand.u32 %v2734, 4294901760
    %v2736 = vsub.f32 %v2734, %v2735
    %v2737 = vand.u32 %v2736, 4294901760
    %2738 = vmatpush1.msra.mxu0 %v2737
    %2739 = vmatprep.subr.mxu0 0.0
    %v2740 = vand.u32 %v15, 4294901760
    %v2741 = vsub.f32 %v15, %v2740
    %v2742 = vand.u32 %v2741, 4294901760
    %v2743 = vsub.f32 %v2741, %v2742
    %v2744 = vand.u32 %v2743, 4294901760
    %2745 = vmatpush1.msra.mxu0 %v2744
    %2746 = vmatprep.subr.mxu0 0.0
    %v2747 = vand.u32 %v16, 4294901760
    %v2748 = vsub.f32 %v16, %v2747
    %v2749 = vand.u32 %v2748, 4294901760
    %v2750 = vsub.f32 %v2748, %v2749
    %v2751 = vand.u32 %v2750, 4294901760
    %2752 = vmatpush1.msra.mxu0 %v2751
    %2753 = vmatprep.subr.mxu0 0.0
    %v2754 = vand.u32 %v17, 4294901760
    %v2755 = vsub.f32 %v17, %v2754
    %v2756 = vand.u32 %v2755, 4294901760
    %v2757 = vsub.f32 %v2755, %v2756
    %v2758 = vand.u32 %v2757, 4294901760
    %2759 = vmatpush1.msra.mxu0 %v2758
    %2760 = vmatprep.subr.mxu0 0.0
    %2761 = vmatpush1.msra.mxu0 0.0
    %2762 = vmatprep.subr.mxu0 0.0
    %2763 = vmatpush1.msra.mxu0 0.0
    %2764 = vmatprep.subr.mxu0 0.0
    %2765 = vmatpush1.msra.mxu0 0.0
    %2766 = vmatprep.subr.mxu0 0.0
    %2767 = vmatpush1.msra.mxu0 0.0
    %2768 = vmatprep.subr.mxu0 0.0
    %2769 = vmatpush1.msra.mxu0 0.0
    %2770 = vmatprep.subr.mxu0 0.0
    %2771 = vmatpush1.msra.mxu0 0.0
    %2772 = vmatprep.subr.mxu0 0.0
    %2773 = vmatpush1.msra.mxu0 0.0
    %2774 = vmatprep.subr.mxu0 0.0
    %2775 = vmatpush1.msra.mxu0 0.0
    %2776 = vmatprep.subr.mxu0 0.0
    %2777 = vmatpush1.msra.mxu0 0.0
    %2778 = vmatprep.subr.mxu0 0.0
    %2779 = vmatpush1.msra.mxu0 0.0
    %2780 = vmatprep.subr.mxu0 0.0
    %2781 = vmatpush1.msra.mxu0 0.0
    %2782 = vmatprep.subr.mxu0 0.0
    %2783 = vmatpush1.msra.mxu0 0.0
    %2784 = vmatprep.subr.mxu0 0.0
    %2785 = vmatpush1.msra.mxu0 0.0
    %2786 = vmatprep.subr.mxu0 0.0
    %2787 = vmatpush1.msra.mxu0 0.0
    %2788 = vmatprep.subr.mxu0 0.0
    %2789 = vmatpush1.msra.mxu0 0.0
    %2790 = vmatprep.subr.mxu0 0.0
    %2791 = vmatpush1.msra.mxu0 0.0
    %2792 = vmatprep.subr.mxu0 0.0
    %2793 = vmatpush1.msra.mxu0 0.0
    %2794 = vmatprep.subr.mxu0 0.0
    %2795 = vmatpush1.msra.mxu0 0.0
    %2796 = vmatprep.subr.mxu0 0.0
    %2797 = vmatpush1.msra.mxu0 0.0
    %2798 = vmatprep.subr.mxu0 0.0
    %2799 = vmatpush1.msra.mxu0 0.0
    %2800 = vmatprep.subr.mxu0 0.0
    %2801 = vmatpush1.msra.mxu0 0.0
    %2802 = vmatprep.subr.mxu0 0.0
    %2803 = vmatpush1.msra.mxu0 0.0
    %2804 = vmatprep.subr.mxu0 0.0
    %2805 = vmatpush1.msra.mxu0 0.0
    %2806 = vmatprep.subr.mxu0 0.0
    %2807 = vmatpush1.msra.mxu0 0.0
    %2808 = vmatprep.subr.mxu0 0.0
    %2809 = vmatpush1.msra.mxu0 0.0
    %2810 = vmatprep.subr.mxu0 0.0
    %2811 = vmatpush1.msra.mxu0 0.0
    %2812 = vmatprep.subr.mxu0 0.0
    %2813 = vmatpush1.msra.mxu0 0.0
    %2814 = vmatprep.subr.mxu0 0.0
    %2815 = vmatpush1.msra.mxu0 0.0
    %2816 = vmatprep.mubr.f32.mxu0 0.0
    %v2817 = vand.u32 %v2651, 4294901760
    %2818 = vmatmul.mubr.f32.gmra.mrb[0].mxu0 %v2817
    %v2819 = vpop.f32.mrb[0].mxu0
    %v2820 = vadd.f32 %v2729, %v2819
    %v2821 = vpop.f32.mrb[0].mxu0
    %2822 = vdwg.mxu0
    %2823 = vmatprep.subr.mxu0 0.0
    %v2824 = vand.u32 %v14, 4294901760
    %v2825 = vsub.f32 %v14, %v2824
    %2826 = vmatpush1.msra.mxu0 %v2825
    %2827 = vmatprep.subr.mxu0 0.0
    %v2828 = vand.u32 %v15, 4294901760
    %v2829 = vsub.f32 %v15, %v2828
    %2830 = vmatpush1.msra.mxu0 %v2829
    %2831 = vmatprep.subr.mxu0 0.0
    %v2832 = vand.u32 %v16, 4294901760
    %v2833 = vsub.f32 %v16, %v2832
    %2834 = vmatpush1.msra.mxu0 %v2833
    %2835 = vmatprep.subr.mxu0 0.0
    %v2836 = vand.u32 %v17, 4294901760
    %v2837 = vsub.f32 %v17, %v2836
    %2838 = vmatpush1.msra.mxu0 %v2837
    %2839 = vmatprep.subr.mxu0 0.0
    %2840 = vmatpush1.msra.mxu0 0.0
    %2841 = vmatprep.subr.mxu0 0.0
    %2842 = vmatpush1.msra.mxu0 0.0
    %2843 = vmatprep.subr.mxu0 0.0
    %2844 = vmatpush1.msra.mxu0 0.0
    %2845 = vmatprep.subr.mxu0 0.0
    %2846 = vmatpush1.msra.mxu0 0.0
    %2847 = vmatprep.subr.mxu0 0.0
    %2848 = vmatpush1.msra.mxu0 0.0
    %2849 = vmatprep.subr.mxu0 0.0
    %2850 = vmatpush1.msra.mxu0 0.0
    %2851 = vmatprep.subr.mxu0 0.0
    %2852 = vmatpush1.msra.mxu0 0.0
    %2853 = vmatprep.subr.mxu0 0.0
    %2854 = vmatpush1.msra.mxu0 0.0
    %2855 = vmatprep.subr.mxu0 0.0
    %2856 = vmatpush1.msra.mxu0 0.0
    %2857 = vmatprep.subr.mxu0 0.0
    %2858 = vmatpush1.msra.mxu0 0.0
    %2859 = vmatprep.subr.mxu0 0.0
    %2860 = vmatpush1.msra.mxu0 0.0
    %2861 = vmatprep.subr.mxu0 0.0
    %2862 = vmatpush1.msra.mxu0 0.0
    %2863 = vmatprep.subr.mxu0 0.0
    %2864 = vmatpush1.msra.mxu0 0.0
    %2865 = vmatprep.subr.mxu0 0.0
    %2866 = vmatpush1.msra.mxu0 0.0
    %2867 = vmatprep.subr.mxu0 0.0
    %2868 = vmatpush1.msra.mxu0 0.0
    %2869 = vmatprep.subr.mxu0 0.0
    %2870 = vmatpush1.msra.mxu0 0.0
    %2871 = vmatprep.subr.mxu0 0.0
    %2872 = vmatpush1.msra.mxu0 0.0
    %2873 = vmatprep.subr.mxu0 0.0
    %2874 = vmatpush1.msra.mxu0 0.0
    %2875 = vmatprep.subr.mxu0 0.0
    %2876 = vmatpush1.msra.mxu0 0.0
    %2877 = vmatprep.subr.mxu0 0.0
    %2878 = vmatpush1.msra.mxu0 0.0
    %2879 = vmatprep.subr.mxu0 0.0
    %2880 = vmatpush1.msra.mxu0 0.0
    %2881 = vmatprep.subr.mxu0 0.0
    %2882 = vmatpush1.msra.mxu0 0.0
    %2883 = vmatprep.subr.mxu0 0.0
    %2884 = vmatpush1.msra.mxu0 0.0
    %2885 = vmatprep.subr.mxu0 0.0
    %2886 = vmatpush1.msra.mxu0 0.0
    %2887 = vmatprep.subr.mxu0 0.0
    %2888 = vmatpush1.msra.mxu0 0.0
    %2889 = vmatprep.subr.mxu0 0.0
    %2890 = vmatpush1.msra.mxu0 0.0
    %2891 = vmatprep.subr.mxu0 0.0
    %2892 = vmatpush1.msra.mxu0 0.0
    %2893 = vmatprep.subr.mxu0 0.0
    %2894 = vmatpush1.msra.mxu0 0.0
    %2895 = vmatprep.mubr.f32.mxu0 0.0
    %v2896 = vand.u32 %v2651, 4294901760
    %v2897 = vsub.f32 %v2651, %v2896
    %2898 = vmatmul.mubr.f32.gmra.mrb[0].mxu0 %v2897
    %v2899 = vpop.f32.mrb[0].mxu0
    %v2900 = vadd.f32 %v2820, %v2899
    %v2901 = vpop.f32.mrb[0].mxu0
    %2902 = vdwg.mxu0
    %2903 = vmatprep.subr.mxu0 0.0
    %v2904 = vand.u32 %v14, 4294901760
    %2905 = vmatpush1.msra.mxu0 %v2904
    %2906 = vmatprep.subr.mxu0 0.0
    %v2907 = vand.u32 %v15, 4294901760
    %2908 = vmatpush1.msra.mxu0 %v2907
    %2909 = vmatprep.subr.mxu0 0.0
    %v2910 = vand.u32 %v16, 4294901760
    %2911 = vmatpush1.msra.mxu0 %v2910
    %2912 = vmatprep.subr.mxu0 0.0
    %v2913 = vand.u32 %v17, 4294901760
    %2914 = vmatpush1.msra.mxu0 %v2913
    %2915 = vmatprep.subr.mxu0 0.0
    %2916 = vmatpush1.msra.mxu0 0.0
    %2917 = vmatprep.subr.mxu0 0.0
    %2918 = vmatpush1.msra.mxu0 0.0
    %2919 = vmatprep.subr.mxu0 0.0
    %2920 = vmatpush1.msra.mxu0 0.0
    %2921 = vmatprep.subr.mxu0 0.0
    %2922 = vmatpush1.msra.mxu0 0.0
    %2923 = vmatprep.subr.mxu0 0.0
    %2924 = vmatpush1.msra.mxu0 0.0
    %2925 = vmatprep.subr.mxu0 0.0
    %2926 = vmatpush1.msra.mxu0 0.0
    %2927 = vmatprep.subr.mxu0 0.0
    %2928 = vmatpush1.msra.mxu0 0.0
    %2929 = vmatprep.subr.mxu0 0.0
    %2930 = vmatpush1.msra.mxu0 0.0
    %2931 = vmatprep.subr.mxu0 0.0
    %2932 = vmatpush1.msra.mxu0 0.0
    %2933 = vmatprep.subr.mxu0 0.0
    %2934 = vmatpush1.msra.mxu0 0.0
    %2935 = vmatprep.subr.mxu0 0.0
    %2936 = vmatpush1.msra.mxu0 0.0
    %2937 = vmatprep.subr.mxu0 0.0
    %2938 = vmatpush1.msra.mxu0 0.0
    %2939 = vmatprep.subr.mxu0 0.0
    %2940 = vmatpush1.msra.mxu0 0.0
    %2941 = vmatprep.subr.mxu0 0.0
    %2942 = vmatpush1.msra.mxu0 0.0
    %2943 = vmatprep.subr.mxu0 0.0
    %2944 = vmatpush1.msra.mxu0 0.0
    %2945 = vmatprep.subr.mxu0 0.0
    %2946 = vmatpush1.msra.mxu0 0.0
    %2947 = vmatprep.subr.mxu0 0.0
    %2948 = vmatpush1.msra.mxu0 0.0
    %2949 = vmatprep.subr.mxu0 0.0
    %2950 = vmatpush1.msra.mxu0 0.0
    %2951 = vmatprep.subr.mxu0 0.0
    %2952 = vmatpush1.msra.mxu0 0.0
    %2953 = vmatprep.subr.mxu0 0.0
    %2954 = vmatpush1.msra.mxu0 0.0
    %2955 = vmatprep.subr.mxu0 0.0
    %2956 = vmatpush1.msra.mxu0 0.0
    %2957 = vmatprep.subr.mxu0 0.0
    %2958 = vmatpush1.msra.mxu0 0.0
    %2959 = vmatprep.subr.mxu0 0.0
    %2960 = vmatpush1.msra.mxu0 0.0
    %2961 = vmatprep.subr.mxu0 0.0
    %2962 = vmatpush1.msra.mxu0 0.0
    %2963 = vmatprep.subr.mxu0 0.0
    %2964 = vmatpush1.msra.mxu0 0.0
    %2965 = vmatprep.subr.mxu0 0.0
    %2966 = vmatpush1.msra.mxu0 0.0
    %2967 = vmatprep.subr.mxu0 0.0
    %2968 = vmatpush1.msra.mxu0 0.0
    %2969 = vmatprep.subr.mxu0 0.0
    %2970 = vmatpush1.msra.mxu0 0.0
    %2971 = vmatprep.mubr.f32.mxu0 0.0
    %v2972 = vand.u32 %v2651, 4294901760
    %v2973 = vsub.f32 %v2651, %v2972
    %v2974 = vand.u32 %v2973, 4294901760
    %2975 = vmatmul.mubr.f32.gmra.mrb[0].mxu0 %v2974
    %v2976 = vpop.f32.mrb[0].mxu0
    %v2977 = vadd.f32 %v2900, %v2976
    %v2978 = vpop.f32.mrb[0].mxu0
    %2979 = vdwg.mxu0
    %2980 = vmatprep.subr.mxu0 0.0
    %v2981 = vand.u32 %v14, 4294901760
    %v2982 = vsub.f32 %v14, %v2981
    %v2983 = vand.u32 %v2982, 4294901760
    %2984 = vmatpush1.msra.mxu0 %v2983
    %2985 = vmatprep.subr.mxu0 0.0
    %v2986 = vand.u32 %v15, 4294901760
    %v2987 = vsub.f32 %v15, %v2986
    %v2988 = vand.u32 %v2987, 4294901760
    %2989 = vmatpush1.msra.mxu0 %v2988
    %2990 = vmatprep.subr.mxu0 0.0
    %v2991 = vand.u32 %v16, 4294901760
    %v2992 = vsub.f32 %v16, %v2991
    %v2993 = vand.u32 %v2992, 4294901760
    %2994 = vmatpush1.msra.mxu0 %v2993
    %2995 = vmatprep.subr.mxu0 0.0
    %v2996 = vand.u32 %v17, 4294901760
    %v2997 = vsub.f32 %v17, %v2996
    %v2998 = vand.u32 %v2997, 4294901760
    %2999 = vmatpush1.msra.mxu0 %v2998
    %3000 = vmatprep.subr.mxu0 0.0
    %3001 = vmatpush1.msra.mxu0 0.0
    %3002 = vmatprep.subr.mxu0 0.0
    %3003 = vmatpush1.msra.mxu0 0.0
    %3004 = vmatprep.subr.mxu0 0.0
    %3005 = vmatpush1.msra.mxu0 0.0
    %3006 = vmatprep.subr.mxu0 0.0
    %3007 = vmatpush1.msra.mxu0 0.0
    %3008 = vmatprep.subr.mxu0 0.0
    %3009 = vmatpush1.msra.mxu0 0.0
    %3010 = vmatprep.subr.mxu0 0.0
    %3011 = vmatpush1.msra.mxu0 0.0
    %3012 = vmatprep.subr.mxu0 0.0
    %3013 = vmatpush1.msra.mxu0 0.0
    %3014 = vmatprep.subr.mxu0 0.0
    %3015 = vmatpush1.msra.mxu0 0.0
    %3016 = vmatprep.subr.mxu0 0.0
    %3017 = vmatpush1.msra.mxu0 0.0
    %3018 = vmatprep.subr.mxu0 0.0
    %3019 = vmatpush1.msra.mxu0 0.0
    %3020 = vmatprep.subr.mxu0 0.0
    %3021 = vmatpush1.msra.mxu0 0.0
    %3022 = vmatprep.subr.mxu0 0.0
    %3023 = vmatpush1.msra.mxu0 0.0
    %3024 = vmatprep.subr.mxu0 0.0
    %3025 = vmatpush1.msra.mxu0 0.0
    %3026 = vmatprep.subr.mxu0 0.0
    %3027 = vmatpush1.msra.mxu0 0.0
    %3028 = vmatprep.subr.mxu0 0.0
    %3029 = vmatpush1.msra.mxu0 0.0
    %3030 = vmatprep.subr.mxu0 0.0
    %3031 = vmatpush1.msra.mxu0 0.0
    %3032 = vmatprep.subr.mxu0 0.0
    %3033 = vmatpush1.msra.mxu0 0.0
    %3034 = vmatprep.subr.mxu0 0.0
    %3035 = vmatpush1.msra.mxu0 0.0
    %3036 = vmatprep.subr.mxu0 0.0
    %3037 = vmatpush1.msra.mxu0 0.0
    %3038 = vmatprep.subr.mxu0 0.0
    %3039 = vmatpush1.msra.mxu0 0.0
    %3040 = vmatprep.subr.mxu0 0.0
    %3041 = vmatpush1.msra.mxu0 0.0
    %3042 = vmatprep.subr.mxu0 0.0
    %3043 = vmatpush1.msra.mxu0 0.0
    %3044 = vmatprep.subr.mxu0 0.0
    %3045 = vmatpush1.msra.mxu0 0.0
    %3046 = vmatprep.subr.mxu0 0.0
    %3047 = vmatpush1.msra.mxu0 0.0
    %3048 = vmatprep.subr.mxu0 0.0
    %3049 = vmatpush1.msra.mxu0 0.0
    %3050 = vmatprep.subr.mxu0 0.0
    %3051 = vmatpush1.msra.mxu0 0.0
    %3052 = vmatprep.subr.mxu0 0.0
    %3053 = vmatpush1.msra.mxu0 0.0
    %3054 = vmatprep.subr.mxu0 0.0
    %3055 = vmatpush1.msra.mxu0 0.0
    %3056 = vmatprep.mubr.f32.mxu0 0.0
    %v3057 = vand.u32 %v2651, 4294901760
    %3058 = vmatmul.mubr.f32.gmra.mrb[0].mxu0 %v3057
    %v3059 = vpop.f32.mrb[0].mxu0
    %v3060 = vadd.f32 %v2977, %v3059
    %v3061 = vpop.f32.mrb[0].mxu0
    %3062 = vdwg.mxu0
    %3063 = vmatprep.subr.mxu0 0.0
    %v3064 = vand.u32 %v14, 4294901760
    %3065 = vmatpush1.msra.mxu0 %v3064
    %3066 = vmatprep.subr.mxu0 0.0
    %v3067 = vand.u32 %v15, 4294901760
    %3068 = vmatpush1.msra.mxu0 %v3067
    %3069 = vmatprep.subr.mxu0 0.0
    %v3070 = vand.u32 %v16, 4294901760
    %3071 = vmatpush1.msra.mxu0 %v3070
    %3072 = vmatprep.subr.mxu0 0.0
    %v3073 = vand.u32 %v17, 4294901760
    %3074 = vmatpush1.msra.mxu0 %v3073
    %3075 = vmatprep.subr.mxu0 0.0
    %3076 = vmatpush1.msra.mxu0 0.0
    %3077 = vmatprep.subr.mxu0 0.0
    %3078 = vmatpush1.msra.mxu0 0.0
    %3079 = vmatprep.subr.mxu0 0.0
    %3080 = vmatpush1.msra.mxu0 0.0
    %3081 = vmatprep.subr.mxu0 0.0
    %3082 = vmatpush1.msra.mxu0 0.0
    %3083 = vmatprep.subr.mxu0 0.0
    %3084 = vmatpush1.msra.mxu0 0.0
    %3085 = vmatprep.subr.mxu0 0.0
    %3086 = vmatpush1.msra.mxu0 0.0
    %3087 = vmatprep.subr.mxu0 0.0
    %3088 = vmatpush1.msra.mxu0 0.0
    %3089 = vmatprep.subr.mxu0 0.0
    %3090 = vmatpush1.msra.mxu0 0.0
    %3091 = vmatprep.subr.mxu0 0.0
    %3092 = vmatpush1.msra.mxu0 0.0
    %3093 = vmatprep.subr.mxu0 0.0
    %3094 = vmatpush1.msra.mxu0 0.0
    %3095 = vmatprep.subr.mxu0 0.0
    %3096 = vmatpush1.msra.mxu0 0.0
    %3097 = vmatprep.subr.mxu0 0.0
    %3098 = vmatpush1.msra.mxu0 0.0
    %3099 = vmatprep.subr.mxu0 0.0
    %3100 = vmatpush1.msra.mxu0 0.0
    %3101 = vmatprep.subr.mxu0 0.0
    %3102 = vmatpush1.msra.mxu0 0.0
    %3103 = vmatprep.subr.mxu0 0.0
    %3104 = vmatpush1.msra.mxu0 0.0
    %3105 = vmatprep.subr.mxu0 0.0
    %3106 = vmatpush1.msra.mxu0 0.0
    %3107 = vmatprep.subr.mxu0 0.0
    %3108 = vmatpush1.msra.mxu0 0.0
    %3109 = vmatprep.subr.mxu0 0.0
    %3110 = vmatpush1.msra.mxu0 0.0
    %3111 = vmatprep.subr.mxu0 0.0
    %3112 = vmatpush1.msra.mxu0 0.0
    %3113 = vmatprep.subr.mxu0 0.0
    %3114 = vmatpush1.msra.mxu0 0.0
    %3115 = vmatprep.subr.mxu0 0.0
    %3116 = vmatpush1.msra.mxu0 0.0
    %3117 = vmatprep.subr.mxu0 0.0
    %3118 = vmatpush1.msra.mxu0 0.0
    %3119 = vmatprep.subr.mxu0 0.0
    %3120 = vmatpush1.msra.mxu0 0.0
    %3121 = vmatprep.subr.mxu0 0.0
    %3122 = vmatpush1.msra.mxu0 0.0
    %3123 = vmatprep.subr.mxu0 0.0
    %3124 = vmatpush1.msra.mxu0 0.0
    %3125 = vmatprep.subr.mxu0 0.0
    %3126 = vmatpush1.msra.mxu0 0.0
    %3127 = vmatprep.subr.mxu0 0.0
    %3128 = vmatpush1.msra.mxu0 0.0
    %3129 = vmatprep.subr.mxu0 0.0
    %3130 = vmatpush1.msra.mxu0 0.0
    %3131 = vmatprep.mubr.f32.mxu0 0.0
    %v3132 = vand.u32 %v2651, 4294901760
    %3133 = vmatmul.mubr.f32.gmra.mrb[0].mxu0 %v3132
    %v3134 = vpop.f32.mrb[0].mxu0
    %v3135 = vadd.f32 %v3060, %v3134
    %v3136 = vpop.f32.mrb[0].mxu0
    %3137 = vdwg.mxu0
    %v3138 = vadd.f32 %v1084, %v3135
    %v3139 = vxor.u32 %v3138, 2147483648
    %v3140 = vmul.f32 %v3139, 1.442695
    %v3141 = vpow.pop %v3140
    %v3142 = vadd.f32 %v3141, 1.0
    %v3143 = vrcp.pop %v3142
    %v3144 = vmul.f32 1.0, %v3143
    %v3145 = vtanh.pop %v3138
    %v3147 = vrot.slane %v2640, 2
    %v3149 = vmul.f32 %v3144, %v3147
    %3151 = vrot.lane.b32.xlu0 %v3145, 64
    %v3152 = vpop.permute.xlu0 %3151
    %v3154 = vmul.f32 %v3144, %v3152
    %3156 = vrot.lane.b32.xlu0 %v3154, 32
    %v3157 = vpop.permute.xlu0 %3156
    %v3159 = vadd.f32 %v3149, %v3157
    %v3160 = vtanh.pop %v3159
    %3162 = vrot.lane.b32.xlu0 %v3160, 64
    %v3163 = vpop.permute.xlu0 %3162
    %v3165 = vmul.f32 %v3144, %v3163
    %3167 = vrot.lane.b32.xlu0 %v3165, 32
    %v3168 = vpop.permute.xlu0 %3167
    %v3169 = vsel %vm35, %v3168, 0
    %3171 = vmatprep.subr.mxu0 0.0
    %v3172 = vand.u32 %v14, 4294901760
    %3173 = vmatpush1.msra.mxu0 %v3172
    %3174 = vmatprep.subr.mxu0 0.0
    %v3175 = vand.u32 %v15, 4294901760
    %3176 = vmatpush1.msra.mxu0 %v3175
    %3177 = vmatprep.subr.mxu0 0.0
    %v3178 = vand.u32 %v16, 4294901760
    %3179 = vmatpush1.msra.mxu0 %v3178
    %3180 = vmatprep.subr.mxu0 0.0
    %v3181 = vand.u32 %v17, 4294901760
    %3182 = vmatpush1.msra.mxu0 %v3181
    %3183 = vmatprep.subr.mxu0 0.0
    %3184 = vmatpush1.msra.mxu0 0.0
    %3185 = vmatprep.subr.mxu0 0.0
    %3186 = vmatpush1.msra.mxu0 0.0
    %3187 = vmatprep.subr.mxu0 0.0
    %3188 = vmatpush1.msra.mxu0 0.0
    %3189 = vmatprep.subr.mxu0 0.0
    %3190 = vmatpush1.msra.mxu0 0.0
    %3191 = vmatprep.subr.mxu0 0.0
    %3192 = vmatpush1.msra.mxu0 0.0
    %3193 = vmatprep.subr.mxu0 0.0
    %3194 = vmatpush1.msra.mxu0 0.0
    %3195 = vmatprep.subr.mxu0 0.0
    %3196 = vmatpush1.msra.mxu0 0.0
    %3197 = vmatprep.subr.mxu0 0.0
    %3198 = vmatpush1.msra.mxu0 0.0
    %3199 = vmatprep.subr.mxu0 0.0
    %3200 = vmatpush1.msra.mxu0 0.0
    %3201 = vmatprep.subr.mxu0 0.0
    %3202 = vmatpush1.msra.mxu0 0.0
    %3203 = vmatprep.subr.mxu0 0.0
    %3204 = vmatpush1.msra.mxu0 0.0
    %3205 = vmatprep.subr.mxu0 0.0
    %3206 = vmatpush1.msra.mxu0 0.0
    %3207 = vmatprep.subr.mxu0 0.0
    %3208 = vmatpush1.msra.mxu0 0.0
    %3209 = vmatprep.subr.mxu0 0.0
    %3210 = vmatpush1.msra.mxu0 0.0
    %3211 = vmatprep.subr.mxu0 0.0
    %3212 = vmatpush1.msra.mxu0 0.0
    %3213 = vmatprep.subr.mxu0 0.0
    %3214 = vmatpush1.msra.mxu0 0.0
    %3215 = vmatprep.subr.mxu0 0.0
    %3216 = vmatpush1.msra.mxu0 0.0
    %3217 = vmatprep.subr.mxu0 0.0
    %3218 = vmatpush1.msra.mxu0 0.0
    %3219 = vmatprep.subr.mxu0 0.0
    %3220 = vmatpush1.msra.mxu0 0.0
    %3221 = vmatprep.subr.mxu0 0.0
    %3222 = vmatpush1.msra.mxu0 0.0
    %3223 = vmatprep.subr.mxu0 0.0
    %3224 = vmatpush1.msra.mxu0 0.0
    %3225 = vmatprep.subr.mxu0 0.0
    %3226 = vmatpush1.msra.mxu0 0.0
    %3227 = vmatprep.subr.mxu0 0.0
    %3228 = vmatpush1.msra.mxu0 0.0
    %3229 = vmatprep.subr.mxu0 0.0
    %3230 = vmatpush1.msra.mxu0 0.0
    %3231 = vmatprep.subr.mxu0 0.0
    %3232 = vmatpush1.msra.mxu0 0.0
    %3233 = vmatprep.subr.mxu0 0.0
    %3234 = vmatpush1.msra.mxu0 0.0
    %3235 = vmatprep.subr.mxu0 0.0
    %3236 = vmatpush1.msra.mxu0 0.0
    %3237 = vmatprep.subr.mxu0 0.0
    %3238 = vmatpush1.msra.mxu0 0.0
    %3239 = vmatprep.mubr.f32.mxu0 0.0
    %v3240 = vand.u32 %v3169, 4294901760
    %v3241 = vsub.f32 %v3169, %v3240
    %v3242 = vand.u32 %v3241, 4294901760
    %v3243 = vsub.f32 %v3241, %v3242
    %v3244 = vand.u32 %v3243, 4294901760
    %3245 = vmatmul.mubr.f32.gmra.mrb[0].mxu0 %v3244
    %v3246 = vpop.f32.mrb[0].mxu0
    %v3247 = vadd.f32 0.0, %v3246
    %v3248 = vpop.f32.mrb[0].mxu0
    %3249 = vdwg.mxu0
    %3250 = vmatprep.subr.mxu0 0.0
    %v3251 = vand.u32 %v14, 4294901760
    %v3252 = vsub.f32 %v14, %v3251
    %v3253 = vand.u32 %v3252, 4294901760
    %v3254 = vsub.f32 %v3252, %v3253
    %v3255 = vand.u32 %v3254, 4294901760
    %3256 = vmatpush1.msra.mxu0 %v3255
    %3257 = vmatprep.subr.mxu0 0.0
    %v3258 = vand.u32 %v15, 4294901760
    %v3259 = vsub.f32 %v15, %v3258
    %v3260 = vand.u32 %v3259, 4294901760
    %v3261 = vsub.f32 %v3259, %v3260
    %v3262 = vand.u32 %v3261, 4294901760
    %3263 = vmatpush1.msra.mxu0 %v3262
    %3264 = vmatprep.subr.mxu0 0.0
    %v3265 = vand.u32 %v16, 4294901760
    %v3266 = vsub.f32 %v16, %v3265
    %v3267 = vand.u32 %v3266, 4294901760
    %v3268 = vsub.f32 %v3266, %v3267
    %v3269 = vand.u32 %v3268, 4294901760
    %3270 = vmatpush1.msra.mxu0 %v3269
    %3271 = vmatprep.subr.mxu0 0.0
    %v3272 = vand.u32 %v17, 4294901760
    %v3273 = vsub.f32 %v17, %v3272
    %v3274 = vand.u32 %v3273, 4294901760
    %v3275 = vsub.f32 %v3273, %v3274
    %v3276 = vand.u32 %v3275, 4294901760
    %3277 = vmatpush1.msra.mxu0 %v3276
    %3278 = vmatprep.subr.mxu0 0.0
    %3279 = vmatpush1.msra.mxu0 0.0
    %3280 = vmatprep.subr.mxu0 0.0
    %3281 = vmatpush1.msra.mxu0 0.0
    %3282 = vmatprep.subr.mxu0 0.0
    %3283 = vmatpush1.msra.mxu0 0.0
    %3284 = vmatprep.subr.mxu0 0.0
    %3285 = vmatpush1.msra.mxu0 0.0
    %3286 = vmatprep.subr.mxu0 0.0
    %3287 = vmatpush1.msra.mxu0 0.0
    %3288 = vmatprep.subr.mxu0 0.0
    %3289 = vmatpush1.msra.mxu0 0.0
    %3290 = vmatprep.subr.mxu0 0.0
    %3291 = vmatpush1.msra.mxu0 0.0
    %3292 = vmatprep.subr.mxu0 0.0
    %3293 = vmatpush1.msra.mxu0 0.0
    %3294 = vmatprep.subr.mxu0 0.0
    %3295 = vmatpush1.msra.mxu0 0.0
    %3296 = vmatprep.subr.mxu0 0.0
    %3297 = vmatpush1.msra.mxu0 0.0
    %3298 = vmatprep.subr.mxu0 0.0
    %3299 = vmatpush1.msra.mxu0 0.0
    %3300 = vmatprep.subr.mxu0 0.0
    %3301 = vmatpush1.msra.mxu0 0.0
    %3302 = vmatprep.subr.mxu0 0.0
    %3303 = vmatpush1.msra.mxu0 0.0
    %3304 = vmatprep.subr.mxu0 0.0
    %3305 = vmatpush1.msra.mxu0 0.0
    %3306 = vmatprep.subr.mxu0 0.0
    %3307 = vmatpush1.msra.mxu0 0.0
    %3308 = vmatprep.subr.mxu0 0.0
    %3309 = vmatpush1.msra.mxu0 0.0
    %3310 = vmatprep.subr.mxu0 0.0
    %3311 = vmatpush1.msra.mxu0 0.0
    %3312 = vmatprep.subr.mxu0 0.0
    %3313 = vmatpush1.msra.mxu0 0.0
    %3314 = vmatprep.subr.mxu0 0.0
    %3315 = vmatpush1.msra.mxu0 0.0
    %3316 = vmatprep.subr.mxu0 0.0
    %3317 = vmatpush1.msra.mxu0 0.0
    %3318 = vmatprep.subr.mxu0 0.0
    %3319 = vmatpush1.msra.mxu0 0.0
    %3320 = vmatprep.subr.mxu0 0.0
    %3321 = vmatpush1.msra.mxu0 0.0
    %3322 = vmatprep.subr.mxu0 0.0
    %3323 = vmatpush1.msra.mxu0 0.0
    %3324 = vmatprep.subr.mxu0 0.0
    %3325 = vmatpush1.msra.mxu0 0.0
    %3326 = vmatprep.subr.mxu0 0.0
    %3327 = vmatpush1.msra.mxu0 0.0
    %3328 = vmatprep.subr.mxu0 0.0
    %3329 = vmatpush1.msra.mxu0 0.0
    %3330 = vmatprep.subr.mxu0 0.0
    %3331 = vmatpush1.msra.mxu0 0.0
    %3332 = vmatprep.subr.mxu0 0.0
    %3333 = vmatpush1.msra.mxu0 0.0
    %3334 = vmatprep.mubr.f32.mxu0 0.0
    %v3335 = vand.u32 %v3169, 4294901760
    %3336 = vmatmul.mubr.f32.gmra.mrb[0].mxu0 %v3335
    %v3337 = vpop.f32.mrb[0].mxu0
    %v3338 = vadd.f32 %v3247, %v3337
    %v3339 = vpop.f32.mrb[0].mxu0
    %3340 = vdwg.mxu0
    %3341 = vmatprep.subr.mxu0 0.0
    %v3342 = vand.u32 %v14, 4294901760
    %v3343 = vsub.f32 %v14, %v3342
    %3344 = vmatpush1.msra.mxu0 %v3343
    %3345 = vmatprep.subr.mxu0 0.0
    %v3346 = vand.u32 %v15, 4294901760
    %v3347 = vsub.f32 %v15, %v3346
    %3348 = vmatpush1.msra.mxu0 %v3347
    %3349 = vmatprep.subr.mxu0 0.0
    %v3350 = vand.u32 %v16, 4294901760
    %v3351 = vsub.f32 %v16, %v3350
    %3352 = vmatpush1.msra.mxu0 %v3351
    %3353 = vmatprep.subr.mxu0 0.0
    %v3354 = vand.u32 %v17, 4294901760
    %v3355 = vsub.f32 %v17, %v3354
    %3356 = vmatpush1.msra.mxu0 %v3355
    %3357 = vmatprep.subr.mxu0 0.0
    %3358 = vmatpush1.msra.mxu0 0.0
    %3359 = vmatprep.subr.mxu0 0.0
    %3360 = vmatpush1.msra.mxu0 0.0
    %3361 = vmatprep.subr.mxu0 0.0
    %3362 = vmatpush1.msra.mxu0 0.0
    %3363 = vmatprep.subr.mxu0 0.0
    %3364 = vmatpush1.msra.mxu0 0.0
    %3365 = vmatprep.subr.mxu0 0.0
    %3366 = vmatpush1.msra.mxu0 0.0
    %3367 = vmatprep.subr.mxu0 0.0
    %3368 = vmatpush1.msra.mxu0 0.0
    %3369 = vmatprep.subr.mxu0 0.0
    %3370 = vmatpush1.msra.mxu0 0.0
    %3371 = vmatprep.subr.mxu0 0.0
    %3372 = vmatpush1.msra.mxu0 0.0
    %3373 = vmatprep.subr.mxu0 0.0
    %3374 = vmatpush1.msra.mxu0 0.0
    %3375 = vmatprep.subr.mxu0 0.0
    %3376 = vmatpush1.msra.mxu0 0.0
    %3377 = vmatprep.subr.mxu0 0.0
    %3378 = vmatpush1.msra.mxu0 0.0
    %3379 = vmatprep.subr.mxu0 0.0
    %3380 = vmatpush1.msra.mxu0 0.0
    %3381 = vmatprep.subr.mxu0 0.0
    %3382 = vmatpush1.msra.mxu0 0.0
    %3383 = vmatprep.subr.mxu0 0.0
    %3384 = vmatpush1.msra.mxu0 0.0
    %3385 = vmatprep.subr.mxu0 0.0
    %3386 = vmatpush1.msra.mxu0 0.0
    %3387 = vmatprep.subr.mxu0 0.0
    %3388 = vmatpush1.msra.mxu0 0.0
    %3389 = vmatprep.subr.mxu0 0.0
    %3390 = vmatpush1.msra.mxu0 0.0
    %3391 = vmatprep.subr.mxu0 0.0
    %3392 = vmatpush1.msra.mxu0 0.0
    %3393 = vmatprep.subr.mxu0 0.0
    %3394 = vmatpush1.msra.mxu0 0.0
    %3395 = vmatprep.subr.mxu0 0.0
    %3396 = vmatpush1.msra.mxu0 0.0
    %3397 = vmatprep.subr.mxu0 0.0
    %3398 = vmatpush1.msra.mxu0 0.0
    %3399 = vmatprep.subr.mxu0 0.0
    %3400 = vmatpush1.msra.mxu0 0.0
    %3401 = vmatprep.subr.mxu0 0.0
    %3402 = vmatpush1.msra.mxu0 0.0
    %3403 = vmatprep.subr.mxu0 0.0
    %3404 = vmatpush1.msra.mxu0 0.0
    %3405 = vmatprep.subr.mxu0 0.0
    %3406 = vmatpush1.msra.mxu0 0.0
    %3407 = vmatprep.subr.mxu0 0.0
    %3408 = vmatpush1.msra.mxu0 0.0
    %3409 = vmatprep.subr.mxu0 0.0
    %3410 = vmatpush1.msra.mxu0 0.0
    %3411 = vmatprep.subr.mxu0 0.0
    %3412 = vmatpush1.msra.mxu0 0.0
    %3413 = vmatprep.mubr.f32.mxu0 0.0
    %v3414 = vand.u32 %v3169, 4294901760
    %v3415 = vsub.f32 %v3169, %v3414
    %3416 = vmatmul.mubr.f32.gmra.mrb[0].mxu0 %v3415
    %v3417 = vpop.f32.mrb[0].mxu0
    %v3418 = vadd.f32 %v3338, %v3417
    %v3419 = vpop.f32.mrb[0].mxu0
    %3420 = vdwg.mxu0
    %3421 = vmatprep.subr.mxu0 0.0
    %v3422 = vand.u32 %v14, 4294901760
    %3423 = vmatpush1.msra.mxu0 %v3422
    %3424 = vmatprep.subr.mxu0 0.0
    %v3425 = vand.u32 %v15, 4294901760
    %3426 = vmatpush1.msra.mxu0 %v3425
    %3427 = vmatprep.subr.mxu0 0.0
    %v3428 = vand.u32 %v16, 4294901760
    %3429 = vmatpush1.msra.mxu0 %v3428
    %3430 = vmatprep.subr.mxu0 0.0
    %v3431 = vand.u32 %v17, 4294901760
    %3432 = vmatpush1.msra.mxu0 %v3431
    %3433 = vmatprep.subr.mxu0 0.0
    %3434 = vmatpush1.msra.mxu0 0.0
    %3435 = vmatprep.subr.mxu0 0.0
    %3436 = vmatpush1.msra.mxu0 0.0
    %3437 = vmatprep.subr.mxu0 0.0
    %3438 = vmatpush1.msra.mxu0 0.0
    %3439 = vmatprep.subr.mxu0 0.0
    %3440 = vmatpush1.msra.mxu0 0.0
    %3441 = vmatprep.subr.mxu0 0.0
    %3442 = vmatpush1.msra.mxu0 0.0
    %3443 = vmatprep.subr.mxu0 0.0
    %3444 = vmatpush1.msra.mxu0 0.0
    %3445 = vmatprep.subr.mxu0 0.0
    %3446 = vmatpush1.msra.mxu0 0.0
    %3447 = vmatprep.subr.mxu0 0.0
    %3448 = vmatpush1.msra.mxu0 0.0
    %3449 = vmatprep.subr.mxu0 0.0
    %3450 = vmatpush1.msra.mxu0 0.0
    %3451 = vmatprep.subr.mxu0 0.0
    %3452 = vmatpush1.msra.mxu0 0.0
    %3453 = vmatprep.subr.mxu0 0.0
    %3454 = vmatpush1.msra.mxu0 0.0
    %3455 = vmatprep.subr.mxu0 0.0
    %3456 = vmatpush1.msra.mxu0 0.0
    %3457 = vmatprep.subr.mxu0 0.0
    %3458 = vmatpush1.msra.mxu0 0.0
    %3459 = vmatprep.subr.mxu0 0.0
    %3460 = vmatpush1.msra.mxu0 0.0
    %3461 = vmatprep.subr.mxu0 0.0
    %3462 = vmatpush1.msra.mxu0 0.0
    %3463 = vmatprep.subr.mxu0 0.0
    %3464 = vmatpush1.msra.mxu0 0.0
    %3465 = vmatprep.subr.mxu0 0.0
    %3466 = vmatpush1.msra.mxu0 0.0
    %3467 = vmatprep.subr.mxu0 0.0
    %3468 = vmatpush1.msra.mxu0 0.0
    %3469 = vmatprep.subr.mxu0 0.0
    %3470 = vmatpush1.msra.mxu0 0.0
    %3471 = vmatprep.subr.mxu0 0.0
    %3472 = vmatpush1.msra.mxu0 0.0
    %3473 = vmatprep.subr.mxu0 0.0
    %3474 = vmatpush1.msra.mxu0 0.0
    %3475 = vmatprep.subr.mxu0 0.0
    %3476 = vmatpush1.msra.mxu0 0.0
    %3477 = vmatprep.subr.mxu0 0.0
    %3478 = vmatpush1.msra.mxu0 0.0
    %3479 = vmatprep.subr.mxu0 0.0
    %3480 = vmatpush1.msra.mxu0 0.0
    %3481 = vmatprep.subr.mxu0 0.0
    %3482 = vmatpush1.msra.mxu0 0.0
    %3483 = vmatprep.subr.mxu0 0.0
    %3484 = vmatpush1.msra.mxu0 0.0
    %3485 = vmatprep.subr.mxu0 0.0
    %3486 = vmatpush1.msra.mxu0 0.0
    %3487 = vmatprep.subr.mxu0 0.0
    %3488 = vmatpush1.msra.mxu0 0.0
    %3489 = vmatprep.mubr.f32.mxu0 0.0
    %v3490 = vand.u32 %v3169, 4294901760
    %v3491 = vsub.f32 %v3169, %v3490
    %v3492 = vand.u32 %v3491, 4294901760
    %3493 = vmatmul.mubr.f32.gmra.mrb[0].mxu0 %v3492
    %v3494 = vpop.f32.mrb[0].mxu0
    %v3495 = vadd.f32 %v3418, %v3494
    %v3496 = vpop.f32.mrb[0].mxu0
    %3497 = vdwg.mxu0
    %3498 = vmatprep.subr.mxu0 0.0
    %v3499 = vand.u32 %v14, 4294901760
    %v3500 = vsub.f32 %v14, %v3499
    %v3501 = vand.u32 %v3500, 4294901760
    %3502 = vmatpush1.msra.mxu0 %v3501
    %3503 = vmatprep.subr.mxu0 0.0
    %v3504 = vand.u32 %v15, 4294901760
    %v3505 = vsub.f32 %v15, %v3504
    %v3506 = vand.u32 %v3505, 4294901760
    %3507 = vmatpush1.msra.mxu0 %v3506
    %3508 = vmatprep.subr.mxu0 0.0
    %v3509 = vand.u32 %v16, 4294901760
    %v3510 = vsub.f32 %v16, %v3509
    %v3511 = vand.u32 %v3510, 4294901760
    %3512 = vmatpush1.msra.mxu0 %v3511
    %3513 = vmatprep.subr.mxu0 0.0
    %v3514 = vand.u32 %v17, 4294901760
    %v3515 = vsub.f32 %v17, %v3514
    %v3516 = vand.u32 %v3515, 4294901760
    %3517 = vmatpush1.msra.mxu0 %v3516
    %3518 = vmatprep.subr.mxu0 0.0
    %3519 = vmatpush1.msra.mxu0 0.0
    %3520 = vmatprep.subr.mxu0 0.0
    %3521 = vmatpush1.msra.mxu0 0.0
    %3522 = vmatprep.subr.mxu0 0.0
    %3523 = vmatpush1.msra.mxu0 0.0
    %3524 = vmatprep.subr.mxu0 0.0
    %3525 = vmatpush1.msra.mxu0 0.0
    %3526 = vmatprep.subr.mxu0 0.0
    %3527 = vmatpush1.msra.mxu0 0.0
    %3528 = vmatprep.subr.mxu0 0.0
    %3529 = vmatpush1.msra.mxu0 0.0
    %3530 = vmatprep.subr.mxu0 0.0
    %3531 = vmatpush1.msra.mxu0 0.0
    %3532 = vmatprep.subr.mxu0 0.0
    %3533 = vmatpush1.msra.mxu0 0.0
    %3534 = vmatprep.subr.mxu0 0.0
    %3535 = vmatpush1.msra.mxu0 0.0
    %3536 = vmatprep.subr.mxu0 0.0
    %3537 = vmatpush1.msra.mxu0 0.0
    %3538 = vmatprep.subr.mxu0 0.0
    %3539 = vmatpush1.msra.mxu0 0.0
    %3540 = vmatprep.subr.mxu0 0.0
    %3541 = vmatpush1.msra.mxu0 0.0
    %3542 = vmatprep.subr.mxu0 0.0
    %3543 = vmatpush1.msra.mxu0 0.0
    %3544 = vmatprep.subr.mxu0 0.0
    %3545 = vmatpush1.msra.mxu0 0.0
    %3546 = vmatprep.subr.mxu0 0.0
    %3547 = vmatpush1.msra.mxu0 0.0
    %3548 = vmatprep.subr.mxu0 0.0
    %3549 = vmatpush1.msra.mxu0 0.0
    %3550 = vmatprep.subr.mxu0 0.0
    %3551 = vmatpush1.msra.mxu0 0.0
    %3552 = vmatprep.subr.mxu0 0.0
    %3553 = vmatpush1.msra.mxu0 0.0
    %3554 = vmatprep.subr.mxu0 0.0
    %3555 = vmatpush1.msra.mxu0 0.0
    %3556 = vmatprep.subr.mxu0 0.0
    %3557 = vmatpush1.msra.mxu0 0.0
    %3558 = vmatprep.subr.mxu0 0.0
    %3559 = vmatpush1.msra.mxu0 0.0
    %3560 = vmatprep.subr.mxu0 0.0
    %3561 = vmatpush1.msra.mxu0 0.0
    %3562 = vmatprep.subr.mxu0 0.0
    %3563 = vmatpush1.msra.mxu0 0.0
    %3564 = vmatprep.subr.mxu0 0.0
    %3565 = vmatpush1.msra.mxu0 0.0
    %3566 = vmatprep.subr.mxu0 0.0
    %3567 = vmatpush1.msra.mxu0 0.0
    %3568 = vmatprep.subr.mxu0 0.0
    %3569 = vmatpush1.msra.mxu0 0.0
    %3570 = vmatprep.subr.mxu0 0.0
    %3571 = vmatpush1.msra.mxu0 0.0
    %3572 = vmatprep.subr.mxu0 0.0
    %3573 = vmatpush1.msra.mxu0 0.0
    %3574 = vmatprep.mubr.f32.mxu0 0.0
    %v3575 = vand.u32 %v3169, 4294901760
    %3576 = vmatmul.mubr.f32.gmra.mrb[0].mxu0 %v3575
    %v3577 = vpop.f32.mrb[0].mxu0
    %v3578 = vadd.f32 %v3495, %v3577
    %v3579 = vpop.f32.mrb[0].mxu0
    %3580 = vdwg.mxu0
    %3581 = vmatprep.subr.mxu0 0.0
    %v3582 = vand.u32 %v14, 4294901760
    %3583 = vmatpush1.msra.mxu0 %v3582
    %3584 = vmatprep.subr.mxu0 0.0
    %v3585 = vand.u32 %v15, 4294901760
    %3586 = vmatpush1.msra.mxu0 %v3585
    %3587 = vmatprep.subr.mxu0 0.0
    %v3588 = vand.u32 %v16, 4294901760
    %3589 = vmatpush1.msra.mxu0 %v3588
    %3590 = vmatprep.subr.mxu0 0.0
    %v3591 = vand.u32 %v17, 4294901760
    %3592 = vmatpush1.msra.mxu0 %v3591
    %3593 = vmatprep.subr.mxu0 0.0
    %3594 = vmatpush1.msra.mxu0 0.0
    %3595 = vmatprep.subr.mxu0 0.0
    %3596 = vmatpush1.msra.mxu0 0.0
    %3597 = vmatprep.subr.mxu0 0.0
    %3598 = vmatpush1.msra.mxu0 0.0
    %3599 = vmatprep.subr.mxu0 0.0
    %3600 = vmatpush1.msra.mxu0 0.0
    %3601 = vmatprep.subr.mxu0 0.0
    %3602 = vmatpush1.msra.mxu0 0.0
    %3603 = vmatprep.subr.mxu0 0.0
    %3604 = vmatpush1.msra.mxu0 0.0
    %3605 = vmatprep.subr.mxu0 0.0
    %3606 = vmatpush1.msra.mxu0 0.0
    %3607 = vmatprep.subr.mxu0 0.0
    %3608 = vmatpush1.msra.mxu0 0.0
    %3609 = vmatprep.subr.mxu0 0.0
    %3610 = vmatpush1.msra.mxu0 0.0
    %3611 = vmatprep.subr.mxu0 0.0
    %3612 = vmatpush1.msra.mxu0 0.0
    %3613 = vmatprep.subr.mxu0 0.0
    %3614 = vmatpush1.msra.mxu0 0.0
    %3615 = vmatprep.subr.mxu0 0.0
    %3616 = vmatpush1.msra.mxu0 0.0
    %3617 = vmatprep.subr.mxu0 0.0
    %3618 = vmatpush1.msra.mxu0 0.0
    %3619 = vmatprep.subr.mxu0 0.0
    %3620 = vmatpush1.msra.mxu0 0.0
    %3621 = vmatprep.subr.mxu0 0.0
    %3622 = vmatpush1.msra.mxu0 0.0
    %3623 = vmatprep.subr.mxu0 0.0
    %3624 = vmatpush1.msra.mxu0 0.0
    %3625 = vmatprep.subr.mxu0 0.0
    %3626 = vmatpush1.msra.mxu0 0.0
    %3627 = vmatprep.subr.mxu0 0.0
    %3628 = vmatpush1.msra.mxu0 0.0
    %3629 = vmatprep.subr.mxu0 0.0
    %3630 = vmatpush1.msra.mxu0 0.0
    %3631 = vmatprep.subr.mxu0 0.0
    %3632 = vmatpush1.msra.mxu0 0.0
    %3633 = vmatprep.subr.mxu0 0.0
    %3634 = vmatpush1.msra.mxu0 0.0
    %3635 = vmatprep.subr.mxu0 0.0
    %3636 = vmatpush1.msra.mxu0 0.0
    %3637 = vmatprep.subr.mxu0 0.0
    %3638 = vmatpush1.msra.mxu0 0.0
    %3639 = vmatprep.subr.mxu0 0.0
    %3640 = vmatpush1.msra.mxu0 0.0
    %3641 = vmatprep.subr.mxu0 0.0
    %3642 = vmatpush1.msra.mxu0 0.0
    %3643 = vmatprep.subr.mxu0 0.0
    %3644 = vmatpush1.msra.mxu0 0.0
    %3645 = vmatprep.subr.mxu0 0.0
    %3646 = vmatpush1.msra.mxu0 0.0
    %3647 = vmatprep.subr.mxu0 0.0
    %3648 = vmatpush1.msra.mxu0 0.0
    %3649 = vmatprep.mubr.f32.mxu0 0.0
    %v3650 = vand.u32 %v3169, 4294901760
    %3651 = vmatmul.mubr.f32.gmra.mrb[0].mxu0 %v3650
    %v3652 = vpop.f32.mrb[0].mxu0
    %v3653 = vadd.f32 %v3578, %v3652
    %v3654 = vpop.f32.mrb[0].mxu0
    %3655 = vdwg.mxu0
    %v3657 = vrot.slane %v3653, 2
    %v3659 = vadd.f32 %v1078, %v3657
    %v3660 = vxor.u32 %v3659, 2147483648
    %v3661 = vmul.f32 %v3660, 1.442695
    %v3662 = vpow.pop %v3661
    %v3663 = vadd.f32 %v3662, 1.0
    %v3664 = vrcp.pop %v3663
    %v3665 = vmul.f32 1.0, %v3664
    %v3666 = vtanh.pop %v3659
    %v3668 = vrot.slane %v3159, 2
    %v3670 = vmul.f32 %v3665, %v3668
    %3672 = vrot.lane.b32.xlu0 %v3666, 64
    %v3673 = vpop.permute.xlu0 %3672
    %v3675 = vmul.f32 %v3665, %v3673
    %3677 = vrot.lane.b32.xlu0 %v3675, 32
    %v3678 = vpop.permute.xlu0 %3677
    %v3680 = vadd.f32 %v3670, %v3678
    %v3681 = vtanh.pop %v3680
    %3683 = vrot.lane.b32.xlu0 %v3681, 64
    %v3684 = vpop.permute.xlu0 %3683
    %v3686 = vmul.f32 %v3665, %v3684
    %v3688 = vrot.slane %v3686, 6
    %3689 = vrot.lane.b32.xlu0 %v3688, 32
    %v3690 = vpop.permute.xlu0 %3689
    %v3691 = vsel %vm35, %v3690, 0
    %3693 = vmatprep.subr.mxu0 0.0
    %v3694 = vand.u32 %v14, 4294901760
    %3695 = vmatpush1.msra.mxu0 %v3694
    %3696 = vmatprep.subr.mxu0 0.0
    %v3697 = vand.u32 %v15, 4294901760
    %3698 = vmatpush1.msra.mxu0 %v3697
    %3699 = vmatprep.subr.mxu0 0.0
    %v3700 = vand.u32 %v16, 4294901760
    %3701 = vmatpush1.msra.mxu0 %v3700
    %3702 = vmatprep.subr.mxu0 0.0
    %v3703 = vand.u32 %v17, 4294901760
    %3704 = vmatpush1.msra.mxu0 %v3703
    %3705 = vmatprep.subr.mxu0 0.0
    %3706 = vmatpush1.msra.mxu0 0.0
    %3707 = vmatprep.subr.mxu0 0.0
    %3708 = vmatpush1.msra.mxu0 0.0
    %3709 = vmatprep.subr.mxu0 0.0
    %3710 = vmatpush1.msra.mxu0 0.0
    %3711 = vmatprep.subr.mxu0 0.0
    %3712 = vmatpush1.msra.mxu0 0.0
    %3713 = vmatprep.subr.mxu0 0.0
    %3714 = vmatpush1.msra.mxu0 0.0
    %3715 = vmatprep.subr.mxu0 0.0
    %3716 = vmatpush1.msra.mxu0 0.0
    %3717 = vmatprep.subr.mxu0 0.0
    %3718 = vmatpush1.msra.mxu0 0.0
    %3719 = vmatprep.subr.mxu0 0.0
    %3720 = vmatpush1.msra.mxu0 0.0
    %3721 = vmatprep.subr.mxu0 0.0
    %3722 = vmatpush1.msra.mxu0 0.0
    %3723 = vmatprep.subr.mxu0 0.0
    %3724 = vmatpush1.msra.mxu0 0.0
    %3725 = vmatprep.subr.mxu0 0.0
    %3726 = vmatpush1.msra.mxu0 0.0
    %3727 = vmatprep.subr.mxu0 0.0
    %3728 = vmatpush1.msra.mxu0 0.0
    %3729 = vmatprep.subr.mxu0 0.0
    %3730 = vmatpush1.msra.mxu0 0.0
    %3731 = vmatprep.subr.mxu0 0.0
    %3732 = vmatpush1.msra.mxu0 0.0
    %3733 = vmatprep.subr.mxu0 0.0
    %3734 = vmatpush1.msra.mxu0 0.0
    %3735 = vmatprep.subr.mxu0 0.0
    %3736 = vmatpush1.msra.mxu0 0.0
    %3737 = vmatprep.subr.mxu0 0.0
    %3738 = vmatpush1.msra.mxu0 0.0
    %3739 = vmatprep.subr.mxu0 0.0
    %3740 = vmatpush1.msra.mxu0 0.0
    %3741 = vmatprep.subr.mxu0 0.0
    %3742 = vmatpush1.msra.mxu0 0.0
    %3743 = vmatprep.subr.mxu0 0.0
    %3744 = vmatpush1.msra.mxu0 0.0
    %3745 = vmatprep.subr.mxu0 0.0
    %3746 = vmatpush1.msra.mxu0 0.0
    %3747 = vmatprep.subr.mxu0 0.0
    %3748 = vmatpush1.msra.mxu0 0.0
    %3749 = vmatprep.subr.mxu0 0.0
    %3750 = vmatpush1.msra.mxu0 0.0
    %3751 = vmatprep.subr.mxu0 0.0
    %3752 = vmatpush1.msra.mxu0 0.0
    %3753 = vmatprep.subr.mxu0 0.0
    %3754 = vmatpush1.msra.mxu0 0.0
    %3755 = vmatprep.subr.mxu0 0.0
    %3756 = vmatpush1.msra.mxu0 0.0
    %3757 = vmatprep.subr.mxu0 0.0
    %3758 = vmatpush1.msra.mxu0 0.0
    %3759 = vmatprep.subr.mxu0 0.0
    %3760 = vmatpush1.msra.mxu0 0.0
    %3761 = vmatprep.mubr.f32.mxu0 0.0
    %v3762 = vand.u32 %v3691, 4294901760
    %v3763 = vsub.f32 %v3691, %v3762
    %v3764 = vand.u32 %v3763, 4294901760
    %v3765 = vsub.f32 %v3763, %v3764
    %v3766 = vand.u32 %v3765, 4294901760
    %3767 = vmatmul.mubr.f32.gmra.mrb[0].mxu0 %v3766
    %v3768 = vpop.f32.mrb[0].mxu0
    %v3769 = vadd.f32 0.0, %v3768
    %v3770 = vpop.f32.mrb[0].mxu0
    %3771 = vdwg.mxu0
    %3772 = vmatprep.subr.mxu0 0.0
    %v3773 = vand.u32 %v14, 4294901760
    %v3774 = vsub.f32 %v14, %v3773
    %v3775 = vand.u32 %v3774, 4294901760
    %v3776 = vsub.f32 %v3774, %v3775
    %v3777 = vand.u32 %v3776, 4294901760
    %3778 = vmatpush1.msra.mxu0 %v3777
    %3779 = vmatprep.subr.mxu0 0.0
    %v3780 = vand.u32 %v15, 4294901760
    %v3781 = vsub.f32 %v15, %v3780
    %v3782 = vand.u32 %v3781, 4294901760
    %v3783 = vsub.f32 %v3781, %v3782
    %v3784 = vand.u32 %v3783, 4294901760
    %3785 = vmatpush1.msra.mxu0 %v3784
    %3786 = vmatprep.subr.mxu0 0.0
    %v3787 = vand.u32 %v16, 4294901760
    %v3788 = vsub.f32 %v16, %v3787
    %v3789 = vand.u32 %v3788, 4294901760
    %v3790 = vsub.f32 %v3788, %v3789
    %v3791 = vand.u32 %v3790, 4294901760
    %3792 = vmatpush1.msra.mxu0 %v3791
    %3793 = vmatprep.subr.mxu0 0.0
    %v3794 = vand.u32 %v17, 4294901760
    %v3795 = vsub.f32 %v17, %v3794
    %v3796 = vand.u32 %v3795, 4294901760
    %v3797 = vsub.f32 %v3795, %v3796
    %v3798 = vand.u32 %v3797, 4294901760
    %3799 = vmatpush1.msra.mxu0 %v3798
    %3800 = vmatprep.subr.mxu0 0.0
    %3801 = vmatpush1.msra.mxu0 0.0
    %3802 = vmatprep.subr.mxu0 0.0
    %3803 = vmatpush1.msra.mxu0 0.0
    %3804 = vmatprep.subr.mxu0 0.0
    %3805 = vmatpush1.msra.mxu0 0.0
    %3806 = vmatprep.subr.mxu0 0.0
    %3807 = vmatpush1.msra.mxu0 0.0
    %3808 = vmatprep.subr.mxu0 0.0
    %3809 = vmatpush1.msra.mxu0 0.0
    %3810 = vmatprep.subr.mxu0 0.0
    %3811 = vmatpush1.msra.mxu0 0.0
    %3812 = vmatprep.subr.mxu0 0.0
    %3813 = vmatpush1.msra.mxu0 0.0
    %3814 = vmatprep.subr.mxu0 0.0
    %3815 = vmatpush1.msra.mxu0 0.0
    %3816 = vmatprep.subr.mxu0 0.0
    %3817 = vmatpush1.msra.mxu0 0.0
    %3818 = vmatprep.subr.mxu0 0.0
    %3819 = vmatpush1.msra.mxu0 0.0
    %3820 = vmatprep.subr.mxu0 0.0
    %3821 = vmatpush1.msra.mxu0 0.0
    %3822 = vmatprep.subr.mxu0 0.0
    %3823 = vmatpush1.msra.mxu0 0.0
    %3824 = vmatprep.subr.mxu0 0.0
    %3825 = vmatpush1.msra.mxu0 0.0
    %3826 = vmatprep.subr.mxu0 0.0
    %3827 = vmatpush1.msra.mxu0 0.0
    %3828 = vmatprep.subr.mxu0 0.0
    %3829 = vmatpush1.msra.mxu0 0.0
    %3830 = vmatprep.subr.mxu0 0.0
    %3831 = vmatpush1.msra.mxu0 0.0
    %3832 = vmatprep.subr.mxu0 0.0
    %3833 = vmatpush1.msra.mxu0 0.0
    %3834 = vmatprep.subr.mxu0 0.0
    %3835 = vmatpush1.msra.mxu0 0.0
    %3836 = vmatprep.subr.mxu0 0.0
    %3837 = vmatpush1.msra.mxu0 0.0
    %3838 = vmatprep.subr.mxu0 0.0
    %3839 = vmatpush1.msra.mxu0 0.0
    %3840 = vmatprep.subr.mxu0 0.0
    %3841 = vmatpush1.msra.mxu0 0.0
    %3842 = vmatprep.subr.mxu0 0.0
    %3843 = vmatpush1.msra.mxu0 0.0
    %3844 = vmatprep.subr.mxu0 0.0
    %3845 = vmatpush1.msra.mxu0 0.0
    %3846 = vmatprep.subr.mxu0 0.0
    %3847 = vmatpush1.msra.mxu0 0.0
    %3848 = vmatprep.subr.mxu0 0.0
    %3849 = vmatpush1.msra.mxu0 0.0
    %3850 = vmatprep.subr.mxu0 0.0
    %3851 = vmatpush1.msra.mxu0 0.0
    %3852 = vmatprep.subr.mxu0 0.0
    %3853 = vmatpush1.msra.mxu0 0.0
    %3854 = vmatprep.subr.mxu0 0.0
    %3855 = vmatpush1.msra.mxu0 0.0
    %3856 = vmatprep.mubr.f32.mxu0 0.0
    %v3857 = vand.u32 %v3691, 4294901760
    %3858 = vmatmul.mubr.f32.gmra.mrb[0].mxu0 %v3857
    %v3859 = vpop.f32.mrb[0].mxu0
    %v3860 = vadd.f32 %v3769, %v3859
    %v3861 = vpop.f32.mrb[0].mxu0
    %3862 = vdwg.mxu0
    %3863 = vmatprep.subr.mxu0 0.0
    %v3864 = vand.u32 %v14, 4294901760
    %v3865 = vsub.f32 %v14, %v3864
    %3866 = vmatpush1.msra.mxu0 %v3865
    %3867 = vmatprep.subr.mxu0 0.0
    %v3868 = vand.u32 %v15, 4294901760
    %v3869 = vsub.f32 %v15, %v3868
    %3870 = vmatpush1.msra.mxu0 %v3869
    %3871 = vmatprep.subr.mxu0 0.0
    %v3872 = vand.u32 %v16, 4294901760
    %v3873 = vsub.f32 %v16, %v3872
    %3874 = vmatpush1.msra.mxu0 %v3873
    %3875 = vmatprep.subr.mxu0 0.0
    %v3876 = vand.u32 %v17, 4294901760
    %v3877 = vsub.f32 %v17, %v3876
    %3878 = vmatpush1.msra.mxu0 %v3877
    %3879 = vmatprep.subr.mxu0 0.0
    %3880 = vmatpush1.msra.mxu0 0.0
    %3881 = vmatprep.subr.mxu0 0.0
    %3882 = vmatpush1.msra.mxu0 0.0
    %3883 = vmatprep.subr.mxu0 0.0
    %3884 = vmatpush1.msra.mxu0 0.0
    %3885 = vmatprep.subr.mxu0 0.0
    %3886 = vmatpush1.msra.mxu0 0.0
    %3887 = vmatprep.subr.mxu0 0.0
    %3888 = vmatpush1.msra.mxu0 0.0
    %3889 = vmatprep.subr.mxu0 0.0
    %3890 = vmatpush1.msra.mxu0 0.0
    %3891 = vmatprep.subr.mxu0 0.0
    %3892 = vmatpush1.msra.mxu0 0.0
    %3893 = vmatprep.subr.mxu0 0.0
    %3894 = vmatpush1.msra.mxu0 0.0
    %3895 = vmatprep.subr.mxu0 0.0
    %3896 = vmatpush1.msra.mxu0 0.0
    %3897 = vmatprep.subr.mxu0 0.0
    %3898 = vmatpush1.msra.mxu0 0.0
    %3899 = vmatprep.subr.mxu0 0.0
    %3900 = vmatpush1.msra.mxu0 0.0
    %3901 = vmatprep.subr.mxu0 0.0
    %3902 = vmatpush1.msra.mxu0 0.0
    %3903 = vmatprep.subr.mxu0 0.0
    %3904 = vmatpush1.msra.mxu0 0.0
    %3905 = vmatprep.subr.mxu0 0.0
    %3906 = vmatpush1.msra.mxu0 0.0
    %3907 = vmatprep.subr.mxu0 0.0
    %3908 = vmatpush1.msra.mxu0 0.0
    %3909 = vmatprep.subr.mxu0 0.0
    %3910 = vmatpush1.msra.mxu0 0.0
    %3911 = vmatprep.subr.mxu0 0.0
    %3912 = vmatpush1.msra.mxu0 0.0
    %3913 = vmatprep.subr.mxu0 0.0
    %3914 = vmatpush1.msra.mxu0 0.0
    %3915 = vmatprep.subr.mxu0 0.0
    %3916 = vmatpush1.msra.mxu0 0.0
    %3917 = vmatprep.subr.mxu0 0.0
    %3918 = vmatpush1.msra.mxu0 0.0
    %3919 = vmatprep.subr.mxu0 0.0
    %3920 = vmatpush1.msra.mxu0 0.0
    %3921 = vmatprep.subr.mxu0 0.0
    %3922 = vmatpush1.msra.mxu0 0.0
    %3923 = vmatprep.subr.mxu0 0.0
    %3924 = vmatpush1.msra.mxu0 0.0
    %3925 = vmatprep.subr.mxu0 0.0
    %3926 = vmatpush1.msra.mxu0 0.0
    %3927 = vmatprep.subr.mxu0 0.0
    %3928 = vmatpush1.msra.mxu0 0.0
    %3929 = vmatprep.subr.mxu0 0.0
    %3930 = vmatpush1.msra.mxu0 0.0
    %3931 = vmatprep.subr.mxu0 0.0
    %3932 = vmatpush1.msra.mxu0 0.0
    %3933 = vmatprep.subr.mxu0 0.0
    %3934 = vmatpush1.msra.mxu0 0.0
    %3935 = vmatprep.mubr.f32.mxu0 0.0
    %v3936 = vand.u32 %v3691, 4294901760
    %v3937 = vsub.f32 %v3691, %v3936
    %3938 = vmatmul.mubr.f32.gmra.mrb[0].mxu0 %v3937
    %v3939 = vpop.f32.mrb[0].mxu0
    %v3940 = vadd.f32 %v3860, %v3939
    %v3941 = vpop.f32.mrb[0].mxu0
    %3942 = vdwg.mxu0
    %3943 = vmatprep.subr.mxu0 0.0
    %v3944 = vand.u32 %v14, 4294901760
    %3945 = vmatpush1.msra.mxu0 %v3944
    %3946 = vmatprep.subr.mxu0 0.0
    %v3947 = vand.u32 %v15, 4294901760
    %3948 = vmatpush1.msra.mxu0 %v3947
    %3949 = vmatprep.subr.mxu0 0.0
    %v3950 = vand.u32 %v16, 4294901760
    %3951 = vmatpush1.msra.mxu0 %v3950
    %3952 = vmatprep.subr.mxu0 0.0
    %v3953 = vand.u32 %v17, 4294901760
    %3954 = vmatpush1.msra.mxu0 %v3953
    %3955 = vmatprep.subr.mxu0 0.0
    %3956 = vmatpush1.msra.mxu0 0.0
    %3957 = vmatprep.subr.mxu0 0.0
    %3958 = vmatpush1.msra.mxu0 0.0
    %3959 = vmatprep.subr.mxu0 0.0
    %3960 = vmatpush1.msra.mxu0 0.0
    %3961 = vmatprep.subr.mxu0 0.0
    %3962 = vmatpush1.msra.mxu0 0.0
    %3963 = vmatprep.subr.mxu0 0.0
    %3964 = vmatpush1.msra.mxu0 0.0
    %3965 = vmatprep.subr.mxu0 0.0
    %3966 = vmatpush1.msra.mxu0 0.0
    %3967 = vmatprep.subr.mxu0 0.0
    %3968 = vmatpush1.msra.mxu0 0.0
    %3969 = vmatprep.subr.mxu0 0.0
    %3970 = vmatpush1.msra.mxu0 0.0
    %3971 = vmatprep.subr.mxu0 0.0
    %3972 = vmatpush1.msra.mxu0 0.0
    %3973 = vmatprep.subr.mxu0 0.0
    %3974 = vmatpush1.msra.mxu0 0.0
    %3975 = vmatprep.subr.mxu0 0.0
    %3976 = vmatpush1.msra.mxu0 0.0
    %3977 = vmatprep.subr.mxu0 0.0
    %3978 = vmatpush1.msra.mxu0 0.0
    %3979 = vmatprep.subr.mxu0 0.0
    %3980 = vmatpush1.msra.mxu0 0.0
    %3981 = vmatprep.subr.mxu0 0.0
    %3982 = vmatpush1.msra.mxu0 0.0
    %3983 = vmatprep.subr.mxu0 0.0
    %3984 = vmatpush1.msra.mxu0 0.0
    %3985 = vmatprep.subr.mxu0 0.0
    %3986 = vmatpush1.msra.mxu0 0.0
    %3987 = vmatprep.subr.mxu0 0.0
    %3988 = vmatpush1.msra.mxu0 0.0
    %3989 = vmatprep.subr.mxu0 0.0
    %3990 = vmatpush1.msra.mxu0 0.0
    %3991 = vmatprep.subr.mxu0 0.0
    %3992 = vmatpush1.msra.mxu0 0.0
    %3993 = vmatprep.subr.mxu0 0.0
    %3994 = vmatpush1.msra.mxu0 0.0
    %3995 = vmatprep.subr.mxu0 0.0
    %3996 = vmatpush1.msra.mxu0 0.0
    %3997 = vmatprep.subr.mxu0 0.0
    %3998 = vmatpush1.msra.mxu0 0.0
    %3999 = vmatprep.subr.mxu0 0.0
    %4000 = vmatpush1.msra.mxu0 0.0
    %4001 = vmatprep.subr.mxu0 0.0
    %4002 = vmatpush1.msra.mxu0 0.0
    %4003 = vmatprep.subr.mxu0 0.0
    %4004 = vmatpush1.msra.mxu0 0.0
    %4005 = vmatprep.subr.mxu0 0.0
    %4006 = vmatpush1.msra.mxu0 0.0
    %4007 = vmatprep.subr.mxu0 0.0
    %4008 = vmatpush1.msra.mxu0 0.0
    %4009 = vmatprep.subr.mxu0 0.0
    %4010 = vmatpush1.msra.mxu0 0.0
    %4011 = vmatprep.mubr.f32.mxu0 0.0
    %v4012 = vand.u32 %v3691, 4294901760
    %v4013 = vsub.f32 %v3691, %v4012
    %v4014 = vand.u32 %v4013, 4294901760
    %4015 = vmatmul.mubr.f32.gmra.mrb[0].mxu0 %v4014
    %v4016 = vpop.f32.mrb[0].mxu0
    %v4017 = vadd.f32 %v3940, %v4016
    %v4018 = vpop.f32.mrb[0].mxu0
    %4019 = vdwg.mxu0
    %4020 = vmatprep.subr.mxu0 0.0
    %v4021 = vand.u32 %v14, 4294901760
    %v4022 = vsub.f32 %v14, %v4021
    %v4023 = vand.u32 %v4022, 4294901760
    %4024 = vmatpush1.msra.mxu0 %v4023
    %4025 = vmatprep.subr.mxu0 0.0
    %v4026 = vand.u32 %v15, 4294901760
    %v4027 = vsub.f32 %v15, %v4026
    %v4028 = vand.u32 %v4027, 4294901760
    %4029 = vmatpush1.msra.mxu0 %v4028
    %4030 = vmatprep.subr.mxu0 0.0
    %v4031 = vand.u32 %v16, 4294901760
    %v4032 = vsub.f32 %v16, %v4031
    %v4033 = vand.u32 %v4032, 4294901760
    %4034 = vmatpush1.msra.mxu0 %v4033
    %4035 = vmatprep.subr.mxu0 0.0
    %v4036 = vand.u32 %v17, 4294901760
    %v4037 = vsub.f32 %v17, %v4036
    %v4038 = vand.u32 %v4037, 4294901760
    %4039 = vmatpush1.msra.mxu0 %v4038
    %4040 = vmatprep.subr.mxu0 0.0
    %4041 = vmatpush1.msra.mxu0 0.0
    %4042 = vmatprep.subr.mxu0 0.0
    %4043 = vmatpush1.msra.mxu0 0.0
    %4044 = vmatprep.subr.mxu0 0.0
    %4045 = vmatpush1.msra.mxu0 0.0
    %4046 = vmatprep.subr.mxu0 0.0
    %4047 = vmatpush1.msra.mxu0 0.0
    %4048 = vmatprep.subr.mxu0 0.0
    %4049 = vmatpush1.msra.mxu0 0.0
    %4050 = vmatprep.subr.mxu0 0.0
    %4051 = vmatpush1.msra.mxu0 0.0
    %4052 = vmatprep.subr.mxu0 0.0
    %4053 = vmatpush1.msra.mxu0 0.0
    %4054 = vmatprep.subr.mxu0 0.0
    %4055 = vmatpush1.msra.mxu0 0.0
    %4056 = vmatprep.subr.mxu0 0.0
    %4057 = vmatpush1.msra.mxu0 0.0
    %4058 = vmatprep.subr.mxu0 0.0
    %4059 = vmatpush1.msra.mxu0 0.0
    %4060 = vmatprep.subr.mxu0 0.0
    %4061 = vmatpush1.msra.mxu0 0.0
    %4062 = vmatprep.subr.mxu0 0.0
    %4063 = vmatpush1.msra.mxu0 0.0
    %4064 = vmatprep.subr.mxu0 0.0
    %4065 = vmatpush1.msra.mxu0 0.0
    %4066 = vmatprep.subr.mxu0 0.0
    %4067 = vmatpush1.msra.mxu0 0.0
    %4068 = vmatprep.subr.mxu0 0.0
    %4069 = vmatpush1.msra.mxu0 0.0
    %4070 = vmatprep.subr.mxu0 0.0
    %4071 = vmatpush1.msra.mxu0 0.0
    %4072 = vmatprep.subr.mxu0 0.0
    %4073 = vmatpush1.msra.mxu0 0.0
    %4074 = vmatprep.subr.mxu0 0.0
    %4075 = vmatpush1.msra.mxu0 0.0
    %4076 = vmatprep.subr.mxu0 0.0
    %4077 = vmatpush1.msra.mxu0 0.0
    %4078 = vmatprep.subr.mxu0 0.0
    %4079 = vmatpush1.msra.mxu0 0.0
    %4080 = vmatprep.subr.mxu0 0.0
    %4081 = vmatpush1.msra.mxu0 0.0
    %4082 = vmatprep.subr.mxu0 0.0
    %4083 = vmatpush1.msra.mxu0 0.0
    %4084 = vmatprep.subr.mxu0 0.0
    %4085 = vmatpush1.msra.mxu0 0.0
    %4086 = vmatprep.subr.mxu0 0.0
    %4087 = vmatpush1.msra.mxu0 0.0
    %4088 = vmatprep.subr.mxu0 0.0
    %4089 = vmatpush1.msra.mxu0 0.0
    %4090 = vmatprep.subr.mxu0 0.0
    %4091 = vmatpush1.msra.mxu0 0.0
    %4092 = vmatprep.subr.mxu0 0.0
    %4093 = vmatpush1.msra.mxu0 0.0
    %4094 = vmatprep.subr.mxu0 0.0
    %4095 = vmatpush1.msra.mxu0 0.0
    %4096 = vmatprep.mubr.f32.mxu0 0.0
    %v4097 = vand.u32 %v3691, 4294901760
    %4098 = vmatmul.mubr.f32.gmra.mrb[0].mxu0 %v4097
    %v4099 = vpop.f32.mrb[0].mxu0
    %v4100 = vadd.f32 %v4017, %v4099
    %v4101 = vpop.f32.mrb[0].mxu0
    %4102 = vdwg.mxu0
    %4103 = vmatprep.subr.mxu0 0.0
    %v4104 = vand.u32 %v14, 4294901760
    %4105 = vmatpush1.msra.mxu0 %v4104
    %4106 = vmatprep.subr.mxu0 0.0
    %v4107 = vand.u32 %v15, 4294901760
    %4108 = vmatpush1.msra.mxu0 %v4107
    %4109 = vmatprep.subr.mxu0 0.0
    %v4110 = vand.u32 %v16, 4294901760
    %4111 = vmatpush1.msra.mxu0 %v4110
    %4112 = vmatprep.subr.mxu0 0.0
    %v4113 = vand.u32 %v17, 4294901760
    %4114 = vmatpush1.msra.mxu0 %v4113
    %4115 = vmatprep.subr.mxu0 0.0
    %4116 = vmatpush1.msra.mxu0 0.0
    %4117 = vmatprep.subr.mxu0 0.0
    %4118 = vmatpush1.msra.mxu0 0.0
    %4119 = vmatprep.subr.mxu0 0.0
    %4120 = vmatpush1.msra.mxu0 0.0
    %4121 = vmatprep.subr.mxu0 0.0
    %4122 = vmatpush1.msra.mxu0 0.0
    %4123 = vmatprep.subr.mxu0 0.0
    %4124 = vmatpush1.msra.mxu0 0.0
    %4125 = vmatprep.subr.mxu0 0.0
    %4126 = vmatpush1.msra.mxu0 0.0
    %4127 = vmatprep.subr.mxu0 0.0
    %4128 = vmatpush1.msra.mxu0 0.0
    %4129 = vmatprep.subr.mxu0 0.0
    %4130 = vmatpush1.msra.mxu0 0.0
    %4131 = vmatprep.subr.mxu0 0.0
    %4132 = vmatpush1.msra.mxu0 0.0
    %4133 = vmatprep.subr.mxu0 0.0
    %4134 = vmatpush1.msra.mxu0 0.0
    %4135 = vmatprep.subr.mxu0 0.0
    %4136 = vmatpush1.msra.mxu0 0.0
    %4137 = vmatprep.subr.mxu0 0.0
    %4138 = vmatpush1.msra.mxu0 0.0
    %4139 = vmatprep.subr.mxu0 0.0
    %4140 = vmatpush1.msra.mxu0 0.0
    %4141 = vmatprep.subr.mxu0 0.0
    %4142 = vmatpush1.msra.mxu0 0.0
    %4143 = vmatprep.subr.mxu0 0.0
    %4144 = vmatpush1.msra.mxu0 0.0
    %4145 = vmatprep.subr.mxu0 0.0
    %4146 = vmatpush1.msra.mxu0 0.0
    %4147 = vmatprep.subr.mxu0 0.0
    %4148 = vmatpush1.msra.mxu0 0.0
    %4149 = vmatprep.subr.mxu0 0.0
    %4150 = vmatpush1.msra.mxu0 0.0
    %4151 = vmatprep.subr.mxu0 0.0
    %4152 = vmatpush1.msra.mxu0 0.0
    %4153 = vmatprep.subr.mxu0 0.0
    %4154 = vmatpush1.msra.mxu0 0.0
    %4155 = vmatprep.subr.mxu0 0.0
    %4156 = vmatpush1.msra.mxu0 0.0
    %4157 = vmatprep.subr.mxu0 0.0
    %4158 = vmatpush1.msra.mxu0 0.0
    %4159 = vmatprep.subr.mxu0 0.0
    %4160 = vmatpush1.msra.mxu0 0.0
    %4161 = vmatprep.subr.mxu0 0.0
    %4162 = vmatpush1.msra.mxu0 0.0
    %4163 = vmatprep.subr.mxu0 0.0
    %4164 = vmatpush1.msra.mxu0 0.0
    %4165 = vmatprep.subr.mxu0 0.0
    %4166 = vmatpush1.msra.mxu0 0.0
    %4167 = vmatprep.subr.mxu0 0.0
    %4168 = vmatpush1.msra.mxu0 0.0
    %4169 = vmatprep.subr.mxu0 0.0
    %4170 = vmatpush1.msra.mxu0 0.0
    %4171 = vmatprep.mubr.f32.mxu0 0.0
    %v4172 = vand.u32 %v3691, 4294901760
    %4173 = vmatmul.mubr.f32.gmra.mrb[0].mxu0 %v4172
    %v4174 = vpop.f32.mrb[0].mxu0
    %v4175 = vadd.f32 %v4100, %v4174
    %v4176 = vpop.f32.mrb[0].mxu0
    %4177 = vdwg.mxu0
    %v4179 = vrot.slane %v4175, 4
    %v4181 = vadd.f32 %v1078, %v4179
    %v4182 = vxor.u32 %v4181, 2147483648
    %v4183 = vmul.f32 %v4182, 1.442695
    %v4184 = vpow.pop %v4183
    %v4185 = vadd.f32 %v4184, 1.0
    %v4186 = vrcp.pop %v4185
    %v4187 = vmul.f32 1.0, %v4186
    %v4188 = vtanh.pop %v4181
    %v4190 = vrot.slane %v3680, 2
    %v4192 = vmul.f32 %v4187, %v4190
    %4194 = vrot.lane.b32.xlu0 %v4188, 64
    %v4195 = vpop.permute.xlu0 %4194
    %v4197 = vmul.f32 %v4187, %v4195
    %4199 = vrot.lane.b32.xlu0 %v4197, 32
    %v4200 = vpop.permute.xlu0 %4199
    %v4202 = vadd.f32 %v4192, %v4200
    %v4203 = vtanh.pop %v4202
    %4205 = vrot.lane.b32.xlu0 %v4203, 64
    %v4206 = vpop.permute.xlu0 %4205
    %v4208 = vmul.f32 %v4187, %v4206
    %v4210 = vrot.slane %v4208, 4
    %4211 = vrot.lane.b32.xlu0 %v4210, 32
    %v4212 = vpop.permute.xlu0 %4211
    %v4213 = vsel %vm35, %v4212, 0
    %4215 = vmatprep.subr.mxu0 0.0
    %v4216 = vand.u32 %v14, 4294901760
    %4217 = vmatpush1.msra.mxu0 %v4216
    %4218 = vmatprep.subr.mxu0 0.0
    %v4219 = vand.u32 %v15, 4294901760
    %4220 = vmatpush1.msra.mxu0 %v4219
    %4221 = vmatprep.subr.mxu0 0.0
    %v4222 = vand.u32 %v16, 4294901760
    %4223 = vmatpush1.msra.mxu0 %v4222
    %4224 = vmatprep.subr.mxu0 0.0
    %v4225 = vand.u32 %v17, 4294901760
    %4226 = vmatpush1.msra.mxu0 %v4225
    %4227 = vmatprep.subr.mxu0 0.0
    %4228 = vmatpush1.msra.mxu0 0.0
    %4229 = vmatprep.subr.mxu0 0.0
    %4230 = vmatpush1.msra.mxu0 0.0
    %4231 = vmatprep.subr.mxu0 0.0
    %4232 = vmatpush1.msra.mxu0 0.0
    %4233 = vmatprep.subr.mxu0 0.0
    %4234 = vmatpush1.msra.mxu0 0.0
    %4235 = vmatprep.subr.mxu0 0.0
    %4236 = vmatpush1.msra.mxu0 0.0
    %4237 = vmatprep.subr.mxu0 0.0
    %4238 = vmatpush1.msra.mxu0 0.0
    %4239 = vmatprep.subr.mxu0 0.0
    %4240 = vmatpush1.msra.mxu0 0.0
    %4241 = vmatprep.subr.mxu0 0.0
    %4242 = vmatpush1.msra.mxu0 0.0
    %4243 = vmatprep.subr.mxu0 0.0
    %4244 = vmatpush1.msra.mxu0 0.0
    %4245 = vmatprep.subr.mxu0 0.0
    %4246 = vmatpush1.msra.mxu0 0.0
    %4247 = vmatprep.subr.mxu0 0.0
    %4248 = vmatpush1.msra.mxu0 0.0
    %4249 = vmatprep.subr.mxu0 0.0
    %4250 = vmatpush1.msra.mxu0 0.0
    %4251 = vmatprep.subr.mxu0 0.0
    %4252 = vmatpush1.msra.mxu0 0.0
    %4253 = vmatprep.subr.mxu0 0.0
    %4254 = vmatpush1.msra.mxu0 0.0
    %4255 = vmatprep.subr.mxu0 0.0
    %4256 = vmatpush1.msra.mxu0 0.0
    %4257 = vmatprep.subr.mxu0 0.0
    %4258 = vmatpush1.msra.mxu0 0.0
    %4259 = vmatprep.subr.mxu0 0.0
    %4260 = vmatpush1.msra.mxu0 0.0
    %4261 = vmatprep.subr.mxu0 0.0
    %4262 = vmatpush1.msra.mxu0 0.0
    %4263 = vmatprep.subr.mxu0 0.0
    %4264 = vmatpush1.msra.mxu0 0.0
    %4265 = vmatprep.subr.mxu0 0.0
    %4266 = vmatpush1.msra.mxu0 0.0
    %4267 = vmatprep.subr.mxu0 0.0
    %4268 = vmatpush1.msra.mxu0 0.0
    %4269 = vmatprep.subr.mxu0 0.0
    %4270 = vmatpush1.msra.mxu0 0.0
    %4271 = vmatprep.subr.mxu0 0.0
    %4272 = vmatpush1.msra.mxu0 0.0
    %4273 = vmatprep.subr.mxu0 0.0
    %4274 = vmatpush1.msra.mxu0 0.0
    %4275 = vmatprep.subr.mxu0 0.0
    %4276 = vmatpush1.msra.mxu0 0.0
    %4277 = vmatprep.subr.mxu0 0.0
    %4278 = vmatpush1.msra.mxu0 0.0
    %4279 = vmatprep.subr.mxu0 0.0
    %4280 = vmatpush1.msra.mxu0 0.0
    %4281 = vmatprep.subr.mxu0 0.0
    %4282 = vmatpush1.msra.mxu0 0.0
    %4283 = vmatprep.mubr.f32.mxu0 0.0
    %v4284 = vand.u32 %v4213, 4294901760
    %v4285 = vsub.f32 %v4213, %v4284
    %v4286 = vand.u32 %v4285, 4294901760
    %v4287 = vsub.f32 %v4285, %v4286
    %v4288 = vand.u32 %v4287, 4294901760
    %4289 = vmatmul.mubr.f32.gmra.mrb[0].mxu0 %v4288
    %v4290 = vpop.f32.mrb[0].mxu0
    %v4291 = vadd.f32 0.0, %v4290
    %v4292 = vpop.f32.mrb[0].mxu0
    %4293 = vdwg.mxu0
    %4294 = vmatprep.subr.mxu0 0.0
    %v4295 = vand.u32 %v14, 4294901760
    %v4296 = vsub.f32 %v14, %v4295
    %v4297 = vand.u32 %v4296, 4294901760
    %v4298 = vsub.f32 %v4296, %v4297
    %v4299 = vand.u32 %v4298, 4294901760
    %4300 = vmatpush1.msra.mxu0 %v4299
    %4301 = vmatprep.subr.mxu0 0.0
    %v4302 = vand.u32 %v15, 4294901760
    %v4303 = vsub.f32 %v15, %v4302
    %v4304 = vand.u32 %v4303, 4294901760
    %v4305 = vsub.f32 %v4303, %v4304
    %v4306 = vand.u32 %v4305, 4294901760
    %4307 = vmatpush1.msra.mxu0 %v4306
    %4308 = vmatprep.subr.mxu0 0.0
    %v4309 = vand.u32 %v16, 4294901760
    %v4310 = vsub.f32 %v16, %v4309
    %v4311 = vand.u32 %v4310, 4294901760
    %v4312 = vsub.f32 %v4310, %v4311
    %v4313 = vand.u32 %v4312, 4294901760
    %4314 = vmatpush1.msra.mxu0 %v4313
    %4315 = vmatprep.subr.mxu0 0.0
    %v4316 = vand.u32 %v17, 4294901760
    %v4317 = vsub.f32 %v17, %v4316
    %v4318 = vand.u32 %v4317, 4294901760
    %v4319 = vsub.f32 %v4317, %v4318
    %v4320 = vand.u32 %v4319, 4294901760
    %4321 = vmatpush1.msra.mxu0 %v4320
    %4322 = vmatprep.subr.mxu0 0.0
    %4323 = vmatpush1.msra.mxu0 0.0
    %4324 = vmatprep.subr.mxu0 0.0
    %4325 = vmatpush1.msra.mxu0 0.0
    %4326 = vmatprep.subr.mxu0 0.0
    %4327 = vmatpush1.msra.mxu0 0.0
    %4328 = vmatprep.subr.mxu0 0.0
    %4329 = vmatpush1.msra.mxu0 0.0
    %4330 = vmatprep.subr.mxu0 0.0
    %4331 = vmatpush1.msra.mxu0 0.0
    %4332 = vmatprep.subr.mxu0 0.0
    %4333 = vmatpush1.msra.mxu0 0.0
    %4334 = vmatprep.subr.mxu0 0.0
    %4335 = vmatpush1.msra.mxu0 0.0
    %4336 = vmatprep.subr.mxu0 0.0
    %4337 = vmatpush1.msra.mxu0 0.0
    %4338 = vmatprep.subr.mxu0 0.0
    %4339 = vmatpush1.msra.mxu0 0.0
    %4340 = vmatprep.subr.mxu0 0.0
    %4341 = vmatpush1.msra.mxu0 0.0
    %4342 = vmatprep.subr.mxu0 0.0
    %4343 = vmatpush1.msra.mxu0 0.0
    %4344 = vmatprep.subr.mxu0 0.0
    %4345 = vmatpush1.msra.mxu0 0.0
    %4346 = vmatprep.subr.mxu0 0.0
    %4347 = vmatpush1.msra.mxu0 0.0
    %4348 = vmatprep.subr.mxu0 0.0
    %4349 = vmatpush1.msra.mxu0 0.0
    %4350 = vmatprep.subr.mxu0 0.0
    %4351 = vmatpush1.msra.mxu0 0.0
    %4352 = vmatprep.subr.mxu0 0.0
    %4353 = vmatpush1.msra.mxu0 0.0
    %4354 = vmatprep.subr.mxu0 0.0
    %4355 = vmatpush1.msra.mxu0 0.0
    %4356 = vmatprep.subr.mxu0 0.0
    %4357 = vmatpush1.msra.mxu0 0.0
    %4358 = vmatprep.subr.mxu0 0.0
    %4359 = vmatpush1.msra.mxu0 0.0
    %4360 = vmatprep.subr.mxu0 0.0
    %4361 = vmatpush1.msra.mxu0 0.0
    %4362 = vmatprep.subr.mxu0 0.0
    %4363 = vmatpush1.msra.mxu0 0.0
    %4364 = vmatprep.subr.mxu0 0.0
    %4365 = vmatpush1.msra.mxu0 0.0
    %4366 = vmatprep.subr.mxu0 0.0
    %4367 = vmatpush1.msra.mxu0 0.0
    %4368 = vmatprep.subr.mxu0 0.0
    %4369 = vmatpush1.msra.mxu0 0.0
    %4370 = vmatprep.subr.mxu0 0.0
    %4371 = vmatpush1.msra.mxu0 0.0
    %4372 = vmatprep.subr.mxu0 0.0
    %4373 = vmatpush1.msra.mxu0 0.0
    %4374 = vmatprep.subr.mxu0 0.0
    %4375 = vmatpush1.msra.mxu0 0.0
    %4376 = vmatprep.subr.mxu0 0.0
    %4377 = vmatpush1.msra.mxu0 0.0
    %4378 = vmatprep.mubr.f32.mxu0 0.0
    %v4379 = vand.u32 %v4213, 4294901760
    %4380 = vmatmul.mubr.f32.gmra.mrb[0].mxu0 %v4379
    %v4381 = vpop.f32.mrb[0].mxu0
    %v4382 = vadd.f32 %v4291, %v4381
    %v4383 = vpop.f32.mrb[0].mxu0
    %4384 = vdwg.mxu0
    %4385 = vmatprep.subr.mxu0 0.0
    %v4386 = vand.u32 %v14, 4294901760
    %v4387 = vsub.f32 %v14, %v4386
    %4388 = vmatpush1.msra.mxu0 %v4387
    %4389 = vmatprep.subr.mxu0 0.0
    %v4390 = vand.u32 %v15, 4294901760
    %v4391 = vsub.f32 %v15, %v4390
    %4392 = vmatpush1.msra.mxu0 %v4391
    %4393 = vmatprep.subr.mxu0 0.0
    %v4394 = vand.u32 %v16, 4294901760
    %v4395 = vsub.f32 %v16, %v4394
    %4396 = vmatpush1.msra.mxu0 %v4395
    %4397 = vmatprep.subr.mxu0 0.0
    %v4398 = vand.u32 %v17, 4294901760
    %v4399 = vsub.f32 %v17, %v4398
    %4400 = vmatpush1.msra.mxu0 %v4399
    %4401 = vmatprep.subr.mxu0 0.0
    %4402 = vmatpush1.msra.mxu0 0.0
    %4403 = vmatprep.subr.mxu0 0.0
    %4404 = vmatpush1.msra.mxu0 0.0
    %4405 = vmatprep.subr.mxu0 0.0
    %4406 = vmatpush1.msra.mxu0 0.0
    %4407 = vmatprep.subr.mxu0 0.0
    %4408 = vmatpush1.msra.mxu0 0.0
    %4409 = vmatprep.subr.mxu0 0.0
    %4410 = vmatpush1.msra.mxu0 0.0
    %4411 = vmatprep.subr.mxu0 0.0
    %4412 = vmatpush1.msra.mxu0 0.0
    %4413 = vmatprep.subr.mxu0 0.0
    %4414 = vmatpush1.msra.mxu0 0.0
    %4415 = vmatprep.subr.mxu0 0.0
    %4416 = vmatpush1.msra.mxu0 0.0
    %4417 = vmatprep.subr.mxu0 0.0
    %4418 = vmatpush1.msra.mxu0 0.0
    %4419 = vmatprep.subr.mxu0 0.0
    %4420 = vmatpush1.msra.mxu0 0.0
    %4421 = vmatprep.subr.mxu0 0.0
    %4422 = vmatpush1.msra.mxu0 0.0
    %4423 = vmatprep.subr.mxu0 0.0
    %4424 = vmatpush1.msra.mxu0 0.0
    %4425 = vmatprep.subr.mxu0 0.0
    %4426 = vmatpush1.msra.mxu0 0.0
    %4427 = vmatprep.subr.mxu0 0.0
    %4428 = vmatpush1.msra.mxu0 0.0
    %4429 = vmatprep.subr.mxu0 0.0
    %4430 = vmatpush1.msra.mxu0 0.0
    %4431 = vmatprep.subr.mxu0 0.0
    %4432 = vmatpush1.msra.mxu0 0.0
    %4433 = vmatprep.subr.mxu0 0.0
    %4434 = vmatpush1.msra.mxu0 0.0
    %4435 = vmatprep.subr.mxu0 0.0
    %4436 = vmatpush1.msra.mxu0 0.0
    %4437 = vmatprep.subr.mxu0 0.0
    %4438 = vmatpush1.msra.mxu0 0.0
    %4439 = vmatprep.subr.mxu0 0.0
    %4440 = vmatpush1.msra.mxu0 0.0
    %4441 = vmatprep.subr.mxu0 0.0
    %4442 = vmatpush1.msra.mxu0 0.0
    %4443 = vmatprep.subr.mxu0 0.0
    %4444 = vmatpush1.msra.mxu0 0.0
    %4445 = vmatprep.subr.mxu0 0.0
    %4446 = vmatpush1.msra.mxu0 0.0
    %4447 = vmatprep.subr.mxu0 0.0
    %4448 = vmatpush1.msra.mxu0 0.0
    %4449 = vmatprep.subr.mxu0 0.0
    %4450 = vmatpush1.msra.mxu0 0.0
    %4451 = vmatprep.subr.mxu0 0.0
    %4452 = vmatpush1.msra.mxu0 0.0
    %4453 = vmatprep.subr.mxu0 0.0
    %4454 = vmatpush1.msra.mxu0 0.0
    %4455 = vmatprep.subr.mxu0 0.0
    %4456 = vmatpush1.msra.mxu0 0.0
    %4457 = vmatprep.mubr.f32.mxu0 0.0
    %v4458 = vand.u32 %v4213, 4294901760
    %v4459 = vsub.f32 %v4213, %v4458
    %4460 = vmatmul.mubr.f32.gmra.mrb[0].mxu0 %v4459
    %v4461 = vpop.f32.mrb[0].mxu0
    %v4462 = vadd.f32 %v4382, %v4461
    %v4463 = vpop.f32.mrb[0].mxu0
    %4464 = vdwg.mxu0
    %4465 = vmatprep.subr.mxu0 0.0
    %v4466 = vand.u32 %v14, 4294901760
    %4467 = vmatpush1.msra.mxu0 %v4466
    %4468 = vmatprep.subr.mxu0 0.0
    %v4469 = vand.u32 %v15, 4294901760
    %4470 = vmatpush1.msra.mxu0 %v4469
    %4471 = vmatprep.subr.mxu0 0.0
    %v4472 = vand.u32 %v16, 4294901760
    %4473 = vmatpush1.msra.mxu0 %v4472
    %4474 = vmatprep.subr.mxu0 0.0
    %v4475 = vand.u32 %v17, 4294901760
    %4476 = vmatpush1.msra.mxu0 %v4475
    %4477 = vmatprep.subr.mxu0 0.0
    %4478 = vmatpush1.msra.mxu0 0.0
    %4479 = vmatprep.subr.mxu0 0.0
    %4480 = vmatpush1.msra.mxu0 0.0
    %4481 = vmatprep.subr.mxu0 0.0
    %4482 = vmatpush1.msra.mxu0 0.0
    %4483 = vmatprep.subr.mxu0 0.0
    %4484 = vmatpush1.msra.mxu0 0.0
    %4485 = vmatprep.subr.mxu0 0.0
    %4486 = vmatpush1.msra.mxu0 0.0
    %4487 = vmatprep.subr.mxu0 0.0
    %4488 = vmatpush1.msra.mxu0 0.0
    %4489 = vmatprep.subr.mxu0 0.0
    %4490 = vmatpush1.msra.mxu0 0.0
    %4491 = vmatprep.subr.mxu0 0.0
    %4492 = vmatpush1.msra.mxu0 0.0
    %4493 = vmatprep.subr.mxu0 0.0
    %4494 = vmatpush1.msra.mxu0 0.0
    %4495 = vmatprep.subr.mxu0 0.0
    %4496 = vmatpush1.msra.mxu0 0.0
    %4497 = vmatprep.subr.mxu0 0.0
    %4498 = vmatpush1.msra.mxu0 0.0
    %4499 = vmatprep.subr.mxu0 0.0
    %4500 = vmatpush1.msra.mxu0 0.0
    %4501 = vmatprep.subr.mxu0 0.0
    %4502 = vmatpush1.msra.mxu0 0.0
    %4503 = vmatprep.subr.mxu0 0.0
    %4504 = vmatpush1.msra.mxu0 0.0
    %4505 = vmatprep.subr.mxu0 0.0
    %4506 = vmatpush1.msra.mxu0 0.0
    %4507 = vmatprep.subr.mxu0 0.0
    %4508 = vmatpush1.msra.mxu0 0.0
    %4509 = vmatprep.subr.mxu0 0.0
    %4510 = vmatpush1.msra.mxu0 0.0
    %4511 = vmatprep.subr.mxu0 0.0
    %4512 = vmatpush1.msra.mxu0 0.0
    %4513 = vmatprep.subr.mxu0 0.0
    %4514 = vmatpush1.msra.mxu0 0.0
    %4515 = vmatprep.subr.mxu0 0.0
    %4516 = vmatpush1.msra.mxu0 0.0
    %4517 = vmatprep.subr.mxu0 0.0
    %4518 = vmatpush1.msra.mxu0 0.0
    %4519 = vmatprep.subr.mxu0 0.0
    %4520 = vmatpush1.msra.mxu0 0.0
    %4521 = vmatprep.subr.mxu0 0.0
    %4522 = vmatpush1.msra.mxu0 0.0
    %4523 = vmatprep.subr.mxu0 0.0
    %4524 = vmatpush1.msra.mxu0 0.0
    %4525 = vmatprep.subr.mxu0 0.0
    %4526 = vmatpush1.msra.mxu0 0.0
    %4527 = vmatprep.subr.mxu0 0.0
    %4528 = vmatpush1.msra.mxu0 0.0
    %4529 = vmatprep.subr.mxu0 0.0
    %4530 = vmatpush1.msra.mxu0 0.0
    %4531 = vmatprep.subr.mxu0 0.0
    %4532 = vmatpush1.msra.mxu0 0.0
    %4533 = vmatprep.mubr.f32.mxu0 0.0
    %v4534 = vand.u32 %v4213, 4294901760
    %v4535 = vsub.f32 %v4213, %v4534
    %v4536 = vand.u32 %v4535, 4294901760
    %4537 = vmatmul.mubr.f32.gmra.mrb[0].mxu0 %v4536
    %v4538 = vpop.f32.mrb[0].mxu0
    %v4539 = vadd.f32 %v4462, %v4538
    %v4540 = vpop.f32.mrb[0].mxu0
    %4541 = vdwg.mxu0
    %4542 = vmatprep.subr.mxu0 0.0
    %v4543 = vand.u32 %v14, 4294901760
    %v4544 = vsub.f32 %v14, %v4543
    %v4545 = vand.u32 %v4544, 4294901760
    %4546 = vmatpush1.msra.mxu0 %v4545
    %4547 = vmatprep.subr.mxu0 0.0
    %v4548 = vand.u32 %v15, 4294901760
    %v4549 = vsub.f32 %v15, %v4548
    %v4550 = vand.u32 %v4549, 4294901760
    %4551 = vmatpush1.msra.mxu0 %v4550
    %4552 = vmatprep.subr.mxu0 0.0
    %v4553 = vand.u32 %v16, 4294901760
    %v4554 = vsub.f32 %v16, %v4553
    %v4555 = vand.u32 %v4554, 4294901760
    %4556 = vmatpush1.msra.mxu0 %v4555
    %4557 = vmatprep.subr.mxu0 0.0
    %v4558 = vand.u32 %v17, 4294901760
    %v4559 = vsub.f32 %v17, %v4558
    %v4560 = vand.u32 %v4559, 4294901760
    %4561 = vmatpush1.msra.mxu0 %v4560
    %4562 = vmatprep.subr.mxu0 0.0
    %4563 = vmatpush1.msra.mxu0 0.0
    %4564 = vmatprep.subr.mxu0 0.0
    %4565 = vmatpush1.msra.mxu0 0.0
    %4566 = vmatprep.subr.mxu0 0.0
    %4567 = vmatpush1.msra.mxu0 0.0
    %4568 = vmatprep.subr.mxu0 0.0
    %4569 = vmatpush1.msra.mxu0 0.0
    %4570 = vmatprep.subr.mxu0 0.0
    %4571 = vmatpush1.msra.mxu0 0.0
    %4572 = vmatprep.subr.mxu0 0.0
    %4573 = vmatpush1.msra.mxu0 0.0
    %4574 = vmatprep.subr.mxu0 0.0
    %4575 = vmatpush1.msra.mxu0 0.0
    %4576 = vmatprep.subr.mxu0 0.0
    %4577 = vmatpush1.msra.mxu0 0.0
    %4578 = vmatprep.subr.mxu0 0.0
    %4579 = vmatpush1.msra.mxu0 0.0
    %4580 = vmatprep.subr.mxu0 0.0
    %4581 = vmatpush1.msra.mxu0 0.0
    %4582 = vmatprep.subr.mxu0 0.0
    %4583 = vmatpush1.msra.mxu0 0.0
    %4584 = vmatprep.subr.mxu0 0.0
    %4585 = vmatpush1.msra.mxu0 0.0
    %4586 = vmatprep.subr.mxu0 0.0
    %4587 = vmatpush1.msra.mxu0 0.0
    %4588 = vmatprep.subr.mxu0 0.0
    %4589 = vmatpush1.msra.mxu0 0.0
    %4590 = vmatprep.subr.mxu0 0.0
    %4591 = vmatpush1.msra.mxu0 0.0
    %4592 = vmatprep.subr.mxu0 0.0
    %4593 = vmatpush1.msra.mxu0 0.0
    %4594 = vmatprep.subr.mxu0 0.0
    %4595 = vmatpush1.msra.mxu0 0.0
    %4596 = vmatprep.subr.mxu0 0.0
    %4597 = vmatpush1.msra.mxu0 0.0
    %4598 = vmatprep.subr.mxu0 0.0
    %4599 = vmatpush1.msra.mxu0 0.0
    %4600 = vmatprep.subr.mxu0 0.0
    %4601 = vmatpush1.msra.mxu0 0.0
    %4602 = vmatprep.subr.mxu0 0.0
    %4603 = vmatpush1.msra.mxu0 0.0
    %4604 = vmatprep.subr.mxu0 0.0
    %4605 = vmatpush1.msra.mxu0 0.0
    %4606 = vmatprep.subr.mxu0 0.0
    %4607 = vmatpush1.msra.mxu0 0.0
    %4608 = vmatprep.subr.mxu0 0.0
    %4609 = vmatpush1.msra.mxu0 0.0
    %4610 = vmatprep.subr.mxu0 0.0
    %4611 = vmatpush1.msra.mxu0 0.0
    %4612 = vmatprep.subr.mxu0 0.0
    %4613 = vmatpush1.msra.mxu0 0.0
    %4614 = vmatprep.subr.mxu0 0.0
    %4615 = vmatpush1.msra.mxu0 0.0
    %4616 = vmatprep.subr.mxu0 0.0
    %4617 = vmatpush1.msra.mxu0 0.0
    %4618 = vmatprep.mubr.f32.mxu0 0.0
    %v4619 = vand.u32 %v4213, 4294901760
    %4620 = vmatmul.mubr.f32.gmra.mrb[0].mxu0 %v4619
    %v4621 = vpop.f32.mrb[0].mxu0
    %v4622 = vadd.f32 %v4539, %v4621
    %v4623 = vpop.f32.mrb[0].mxu0
    %4624 = vdwg.mxu0
    %4625 = vmatprep.subr.mxu0 0.0
    %v4626 = vand.u32 %v14, 4294901760
    %4627 = vmatpush1.msra.mxu0 %v4626
    %4628 = vmatprep.subr.mxu0 0.0
    %v4629 = vand.u32 %v15, 4294901760
    %4630 = vmatpush1.msra.mxu0 %v4629
    %4631 = vmatprep.subr.mxu0 0.0
    %v4632 = vand.u32 %v16, 4294901760
    %4633 = vmatpush1.msra.mxu0 %v4632
    %4634 = vmatprep.subr.mxu0 0.0
    %v4635 = vand.u32 %v17, 4294901760
    %4636 = vmatpush1.msra.mxu0 %v4635
    %4637 = vmatprep.subr.mxu0 0.0
    %4638 = vmatpush1.msra.mxu0 0.0
    %4639 = vmatprep.subr.mxu0 0.0
    %4640 = vmatpush1.msra.mxu0 0.0
    %4641 = vmatprep.subr.mxu0 0.0
    %4642 = vmatpush1.msra.mxu0 0.0
    %4643 = vmatprep.subr.mxu0 0.0
    %4644 = vmatpush1.msra.mxu0 0.0
    %4645 = vmatprep.subr.mxu0 0.0
    %4646 = vmatpush1.msra.mxu0 0.0
    %4647 = vmatprep.subr.mxu0 0.0
    %4648 = vmatpush1.msra.mxu0 0.0
    %4649 = vmatprep.subr.mxu0 0.0
    %4650 = vmatpush1.msra.mxu0 0.0
    %4651 = vmatprep.subr.mxu0 0.0
    %4652 = vmatpush1.msra.mxu0 0.0
    %4653 = vmatprep.subr.mxu0 0.0
    %4654 = vmatpush1.msra.mxu0 0.0
    %4655 = vmatprep.subr.mxu0 0.0
    %4656 = vmatpush1.msra.mxu0 0.0
    %4657 = vmatprep.subr.mxu0 0.0
    %4658 = vmatpush1.msra.mxu0 0.0
    %4659 = vmatprep.subr.mxu0 0.0
    %4660 = vmatpush1.msra.mxu0 0.0
    %4661 = vmatprep.subr.mxu0 0.0
    %4662 = vmatpush1.msra.mxu0 0.0
    %4663 = vmatprep.subr.mxu0 0.0
    %4664 = vmatpush1.msra.mxu0 0.0
    %4665 = vmatprep.subr.mxu0 0.0
    %4666 = vmatpush1.msra.mxu0 0.0
    %4667 = vmatprep.subr.mxu0 0.0
    %4668 = vmatpush1.msra.mxu0 0.0
    %4669 = vmatprep.subr.mxu0 0.0
    %4670 = vmatpush1.msra.mxu0 0.0
    %4671 = vmatprep.subr.mxu0 0.0
    %4672 = vmatpush1.msra.mxu0 0.0
    %4673 = vmatprep.subr.mxu0 0.0
    %4674 = vmatpush1.msra.mxu0 0.0
    %4675 = vmatprep.subr.mxu0 0.0
    %4676 = vmatpush1.msra.mxu0 0.0
    %4677 = vmatprep.subr.mxu0 0.0
    %4678 = vmatpush1.msra.mxu0 0.0
    %4679 = vmatprep.subr.mxu0 0.0
    %4680 = vmatpush1.msra.mxu0 0.0
    %4681 = vmatprep.subr.mxu0 0.0
    %4682 = vmatpush1.msra.mxu0 0.0
    %4683 = vmatprep.subr.mxu0 0.0
    %4684 = vmatpush1.msra.mxu0 0.0
    %4685 = vmatprep.subr.mxu0 0.0
    %4686 = vmatpush1.msra.mxu0 0.0
    %4687 = vmatprep.subr.mxu0 0.0
    %4688 = vmatpush1.msra.mxu0 0.0
    %4689 = vmatprep.subr.mxu0 0.0
    %4690 = vmatpush1.msra.mxu0 0.0
    %4691 = vmatprep.subr.mxu0 0.0
    %4692 = vmatpush1.msra.mxu0 0.0
    %4693 = vmatprep.mubr.f32.mxu0 0.0
    %v4694 = vand.u32 %v4213, 4294901760
    %4695 = vmatmul.mubr.f32.gmra.mrb[0].mxu0 %v4694
    %v4696 = vpop.f32.mrb[0].mxu0
    %v4697 = vadd.f32 %v4622, %v4696
    %v4698 = vpop.f32.mrb[0].mxu0
    %4699 = vdwg.mxu0
    %v4701 = vrot.slane %v4697, 6
    %v4703 = vadd.f32 %v1078, %v4701
    %v4704 = vxor.u32 %v4703, 2147483648
    %v4705 = vmul.f32 %v4704, 1.442695
    %v4706 = vpow.pop %v4705
    %v4707 = vadd.f32 %v4706, 1.0
    %v4708 = vrcp.pop %v4707
    %v4709 = vmul.f32 1.0, %v4708
    %v4710 = vtanh.pop %v4703
    %v4712 = vrot.slane %v4202, 2
    %v4714 = vmul.f32 %v4709, %v4712
    %4716 = vrot.lane.b32.xlu0 %v4710, 64
    %v4717 = vpop.permute.xlu0 %4716
    %v4719 = vmul.f32 %v4709, %v4717
    %4721 = vrot.lane.b32.xlu0 %v4719, 32
    %v4722 = vpop.permute.xlu0 %4721
    %v4724 = vadd.f32 %v4714, %v4722
    %v4725 = vtanh.pop %v4724
    %4727 = vrot.lane.b32.xlu0 %v4725, 64
    %v4728 = vpop.permute.xlu0 %4727
    %v4730 = vmul.f32 %v4709, %v4728
    %v4732 = vrot.slane %v4730, 2
    %4733 = vrot.lane.b32.xlu0 %v4732, 32
    %v4734 = vpop.permute.xlu0 %4733
    %v4735 = vsel %vm35, %v4734, 0
    %4737 = vmatprep.subr.mxu0 0.0
    %v4738 = vand.u32 %v14, 4294901760
    %4739 = vmatpush1.msra.mxu0 %v4738
    %4740 = vmatprep.subr.mxu0 0.0
    %v4741 = vand.u32 %v15, 4294901760
    %4742 = vmatpush1.msra.mxu0 %v4741
    %4743 = vmatprep.subr.mxu0 0.0
    %v4744 = vand.u32 %v16, 4294901760
    %4745 = vmatpush1.msra.mxu0 %v4744
    %4746 = vmatprep.subr.mxu0 0.0
    %v4747 = vand.u32 %v17, 4294901760
    %4748 = vmatpush1.msra.mxu0 %v4747
    %4749 = vmatprep.subr.mxu0 0.0
    %4750 = vmatpush1.msra.mxu0 0.0
    %4751 = vmatprep.subr.mxu0 0.0
    %4752 = vmatpush1.msra.mxu0 0.0
    %4753 = vmatprep.subr.mxu0 0.0
    %4754 = vmatpush1.msra.mxu0 0.0
    %4755 = vmatprep.subr.mxu0 0.0
    %4756 = vmatpush1.msra.mxu0 0.0
    %4757 = vmatprep.subr.mxu0 0.0
    %4758 = vmatpush1.msra.mxu0 0.0
    %4759 = vmatprep.subr.mxu0 0.0
    %4760 = vmatpush1.msra.mxu0 0.0
    %4761 = vmatprep.subr.mxu0 0.0
    %4762 = vmatpush1.msra.mxu0 0.0
    %4763 = vmatprep.subr.mxu0 0.0
    %4764 = vmatpush1.msra.mxu0 0.0
    %4765 = vmatprep.subr.mxu0 0.0
    %4766 = vmatpush1.msra.mxu0 0.0
    %4767 = vmatprep.subr.mxu0 0.0
    %4768 = vmatpush1.msra.mxu0 0.0
    %4769 = vmatprep.subr.mxu0 0.0
    %4770 = vmatpush1.msra.mxu0 0.0
    %4771 = vmatprep.subr.mxu0 0.0
    %4772 = vmatpush1.msra.mxu0 0.0
    %4773 = vmatprep.subr.mxu0 0.0
    %4774 = vmatpush1.msra.mxu0 0.0
    %4775 = vmatprep.subr.mxu0 0.0
    %4776 = vmatpush1.msra.mxu0 0.0
    %4777 = vmatprep.subr.mxu0 0.0
    %4778 = vmatpush1.msra.mxu0 0.0
    %4779 = vmatprep.subr.mxu0 0.0
    %4780 = vmatpush1.msra.mxu0 0.0
    %4781 = vmatprep.subr.mxu0 0.0
    %4782 = vmatpush1.msra.mxu0 0.0
    %4783 = vmatprep.subr.mxu0 0.0
    %4784 = vmatpush1.msra.mxu0 0.0
    %4785 = vmatprep.subr.mxu0 0.0
    %4786 = vmatpush1.msra.mxu0 0.0
    %4787 = vmatprep.subr.mxu0 0.0
    %4788 = vmatpush1.msra.mxu0 0.0
    %4789 = vmatprep.subr.mxu0 0.0
    %4790 = vmatpush1.msra.mxu0 0.0
    %4791 = vmatprep.subr.mxu0 0.0
    %4792 = vmatpush1.msra.mxu0 0.0
    %4793 = vmatprep.subr.mxu0 0.0
    %4794 = vmatpush1.msra.mxu0 0.0
    %4795 = vmatprep.subr.mxu0 0.0
    %4796 = vmatpush1.msra.mxu0 0.0
    %4797 = vmatprep.subr.mxu0 0.0
    %4798 = vmatpush1.msra.mxu0 0.0
    %4799 = vmatprep.subr.mxu0 0.0
    %4800 = vmatpush1.msra.mxu0 0.0
    %4801 = vmatprep.subr.mxu0 0.0
    %4802 = vmatpush1.msra.mxu0 0.0
    %4803 = vmatprep.subr.mxu0 0.0
    %4804 = vmatpush1.msra.mxu0 0.0
    %4805 = vmatprep.mubr.f32.mxu0 0.0
    %v4806 = vand.u32 %v4735, 4294901760
    %v4807 = vsub.f32 %v4735, %v4806
    %v4808 = vand.u32 %v4807, 4294901760
    %v4809 = vsub.f32 %v4807, %v4808
    %v4810 = vand.u32 %v4809, 4294901760
    %4811 = vmatmul.mubr.f32.gmra.mrb[0].mxu0 %v4810
    %v4812 = vpop.f32.mrb[0].mxu0
    %v4813 = vadd.f32 0.0, %v4812
    %v4814 = vpop.f32.mrb[0].mxu0
    %4815 = vdwg.mxu0
    %4816 = vmatprep.subr.mxu0 0.0
    %v4817 = vand.u32 %v14, 4294901760
    %v4818 = vsub.f32 %v14, %v4817
    %v4819 = vand.u32 %v4818, 4294901760
    %v4820 = vsub.f32 %v4818, %v4819
    %v4821 = vand.u32 %v4820, 4294901760
    %4822 = vmatpush1.msra.mxu0 %v4821
    %4823 = vmatprep.subr.mxu0 0.0
    %v4824 = vand.u32 %v15, 4294901760
    %v4825 = vsub.f32 %v15, %v4824
    %v4826 = vand.u32 %v4825, 4294901760
    %v4827 = vsub.f32 %v4825, %v4826
    %v4828 = vand.u32 %v4827, 4294901760
    %4829 = vmatpush1.msra.mxu0 %v4828
    %4830 = vmatprep.subr.mxu0 0.0
    %v4831 = vand.u32 %v16, 4294901760
    %v4832 = vsub.f32 %v16, %v4831
    %v4833 = vand.u32 %v4832, 4294901760
    %v4834 = vsub.f32 %v4832, %v4833
    %v4835 = vand.u32 %v4834, 4294901760
    %4836 = vmatpush1.msra.mxu0 %v4835
    %4837 = vmatprep.subr.mxu0 0.0
    %v4838 = vand.u32 %v17, 4294901760
    %v4839 = vsub.f32 %v17, %v4838
    %v4840 = vand.u32 %v4839, 4294901760
    %v4841 = vsub.f32 %v4839, %v4840
    %v4842 = vand.u32 %v4841, 4294901760
    %4843 = vmatpush1.msra.mxu0 %v4842
    %4844 = vmatprep.subr.mxu0 0.0
    %4845 = vmatpush1.msra.mxu0 0.0
    %4846 = vmatprep.subr.mxu0 0.0
    %4847 = vmatpush1.msra.mxu0 0.0
    %4848 = vmatprep.subr.mxu0 0.0
    %4849 = vmatpush1.msra.mxu0 0.0
    %4850 = vmatprep.subr.mxu0 0.0
    %4851 = vmatpush1.msra.mxu0 0.0
    %4852 = vmatprep.subr.mxu0 0.0
    %4853 = vmatpush1.msra.mxu0 0.0
    %4854 = vmatprep.subr.mxu0 0.0
    %4855 = vmatpush1.msra.mxu0 0.0
    %4856 = vmatprep.subr.mxu0 0.0
    %4857 = vmatpush1.msra.mxu0 0.0
    %4858 = vmatprep.subr.mxu0 0.0
    %4859 = vmatpush1.msra.mxu0 0.0
    %4860 = vmatprep.subr.mxu0 0.0
    %4861 = vmatpush1.msra.mxu0 0.0
    %4862 = vmatprep.subr.mxu0 0.0
    %4863 = vmatpush1.msra.mxu0 0.0
    %4864 = vmatprep.subr.mxu0 0.0
    %4865 = vmatpush1.msra.mxu0 0.0
    %4866 = vmatprep.subr.mxu0 0.0
    %4867 = vmatpush1.msra.mxu0 0.0
    %4868 = vmatprep.subr.mxu0 0.0
    %4869 = vmatpush1.msra.mxu0 0.0
    %4870 = vmatprep.subr.mxu0 0.0
    %4871 = vmatpush1.msra.mxu0 0.0
    %4872 = vmatprep.subr.mxu0 0.0
    %4873 = vmatpush1.msra.mxu0 0.0
    %4874 = vmatprep.subr.mxu0 0.0
    %4875 = vmatpush1.msra.mxu0 0.0
    %4876 = vmatprep.subr.mxu0 0.0
    %4877 = vmatpush1.msra.mxu0 0.0
    %4878 = vmatprep.subr.mxu0 0.0
    %4879 = vmatpush1.msra.mxu0 0.0
    %4880 = vmatprep.subr.mxu0 0.0
    %4881 = vmatpush1.msra.mxu0 0.0
    %4882 = vmatprep.subr.mxu0 0.0
    %4883 = vmatpush1.msra.mxu0 0.0
    %4884 = vmatprep.subr.mxu0 0.0
    %4885 = vmatpush1.msra.mxu0 0.0
    %4886 = vmatprep.subr.mxu0 0.0
    %4887 = vmatpush1.msra.mxu0 0.0
    %4888 = vmatprep.subr.mxu0 0.0
    %4889 = vmatpush1.msra.mxu0 0.0
    %4890 = vmatprep.subr.mxu0 0.0
    %4891 = vmatpush1.msra.mxu0 0.0
    %4892 = vmatprep.subr.mxu0 0.0
    %4893 = vmatpush1.msra.mxu0 0.0
    %4894 = vmatprep.subr.mxu0 0.0
    %4895 = vmatpush1.msra.mxu0 0.0
    %4896 = vmatprep.subr.mxu0 0.0
    %4897 = vmatpush1.msra.mxu0 0.0
    %4898 = vmatprep.subr.mxu0 0.0
    %4899 = vmatpush1.msra.mxu0 0.0
    %4900 = vmatprep.mubr.f32.mxu0 0.0
    %v4901 = vand.u32 %v4735, 4294901760
    %4902 = vmatmul.mubr.f32.gmra.mrb[0].mxu0 %v4901
    %v4903 = vpop.f32.mrb[0].mxu0
    %v4904 = vadd.f32 %v4813, %v4903
    %v4905 = vpop.f32.mrb[0].mxu0
    %4906 = vdwg.mxu0
    %4907 = vmatprep.subr.mxu0 0.0
    %v4908 = vand.u32 %v14, 4294901760
    %v4909 = vsub.f32 %v14, %v4908
    %4910 = vmatpush1.msra.mxu0 %v4909
    %4911 = vmatprep.subr.mxu0 0.0
    %v4912 = vand.u32 %v15, 4294901760
    %v4913 = vsub.f32 %v15, %v4912
    %4914 = vmatpush1.msra.mxu0 %v4913
    %4915 = vmatprep.subr.mxu0 0.0
    %v4916 = vand.u32 %v16, 4294901760
    %v4917 = vsub.f32 %v16, %v4916
    %4918 = vmatpush1.msra.mxu0 %v4917
    %4919 = vmatprep.subr.mxu0 0.0
    %v4920 = vand.u32 %v17, 4294901760
    %v4921 = vsub.f32 %v17, %v4920
    %4922 = vmatpush1.msra.mxu0 %v4921
    %4923 = vmatprep.subr.mxu0 0.0
    %4924 = vmatpush1.msra.mxu0 0.0
    %4925 = vmatprep.subr.mxu0 0.0
    %4926 = vmatpush1.msra.mxu0 0.0
    %4927 = vmatprep.subr.mxu0 0.0
    %4928 = vmatpush1.msra.mxu0 0.0
    %4929 = vmatprep.subr.mxu0 0.0
    %4930 = vmatpush1.msra.mxu0 0.0
    %4931 = vmatprep.subr.mxu0 0.0
    %4932 = vmatpush1.msra.mxu0 0.0
    %4933 = vmatprep.subr.mxu0 0.0
    %4934 = vmatpush1.msra.mxu0 0.0
    %4935 = vmatprep.subr.mxu0 0.0
    %4936 = vmatpush1.msra.mxu0 0.0
    %4937 = vmatprep.subr.mxu0 0.0
    %4938 = vmatpush1.msra.mxu0 0.0
    %4939 = vmatprep.subr.mxu0 0.0
    %4940 = vmatpush1.msra.mxu0 0.0
    %4941 = vmatprep.subr.mxu0 0.0
    %4942 = vmatpush1.msra.mxu0 0.0
    %4943 = vmatprep.subr.mxu0 0.0
    %4944 = vmatpush1.msra.mxu0 0.0
    %4945 = vmatprep.subr.mxu0 0.0
    %4946 = vmatpush1.msra.mxu0 0.0
    %4947 = vmatprep.subr.mxu0 0.0
    %4948 = vmatpush1.msra.mxu0 0.0
    %4949 = vmatprep.subr.mxu0 0.0
    %4950 = vmatpush1.msra.mxu0 0.0
    %4951 = vmatprep.subr.mxu0 0.0
    %4952 = vmatpush1.msra.mxu0 0.0
    %4953 = vmatprep.subr.mxu0 0.0
    %4954 = vmatpush1.msra.mxu0 0.0
    %4955 = vmatprep.subr.mxu0 0.0
    %4956 = vmatpush1.msra.mxu0 0.0
    %4957 = vmatprep.subr.mxu0 0.0
    %4958 = vmatpush1.msra.mxu0 0.0
    %4959 = vmatprep.subr.mxu0 0.0
    %4960 = vmatpush1.msra.mxu0 0.0
    %4961 = vmatprep.subr.mxu0 0.0
    %4962 = vmatpush1.msra.mxu0 0.0
    %4963 = vmatprep.subr.mxu0 0.0
    %4964 = vmatpush1.msra.mxu0 0.0
    %4965 = vmatprep.subr.mxu0 0.0
    %4966 = vmatpush1.msra.mxu0 0.0
    %4967 = vmatprep.subr.mxu0 0.0
    %4968 = vmatpush1.msra.mxu0 0.0
    %4969 = vmatprep.subr.mxu0 0.0
    %4970 = vmatpush1.msra.mxu0 0.0
    %4971 = vmatprep.subr.mxu0 0.0
    %4972 = vmatpush1.msra.mxu0 0.0
    %4973 = vmatprep.subr.mxu0 0.0
    %4974 = vmatpush1.msra.mxu0 0.0
    %4975 = vmatprep.subr.mxu0 0.0
    %4976 = vmatpush1.msra.mxu0 0.0
    %4977 = vmatprep.subr.mxu0 0.0
    %4978 = vmatpush1.msra.mxu0 0.0
    %4979 = vmatprep.mubr.f32.mxu0 0.0
    %v4980 = vand.u32 %v4735, 4294901760
    %v4981 = vsub.f32 %v4735, %v4980
    %4982 = vmatmul.mubr.f32.gmra.mrb[0].mxu0 %v4981
    %v4983 = vpop.f32.mrb[0].mxu0
    %v4984 = vadd.f32 %v4904, %v4983
    %v4985 = vpop.f32.mrb[0].mxu0
    %4986 = vdwg.mxu0
    %4987 = vmatprep.subr.mxu0 0.0
    %v4988 = vand.u32 %v14, 4294901760
    %4989 = vmatpush1.msra.mxu0 %v4988
    %4990 = vmatprep.subr.mxu0 0.0
    %v4991 = vand.u32 %v15, 4294901760
    %4992 = vmatpush1.msra.mxu0 %v4991
    %4993 = vmatprep.subr.mxu0 0.0
    %v4994 = vand.u32 %v16, 4294901760
    %4995 = vmatpush1.msra.mxu0 %v4994
    %4996 = vmatprep.subr.mxu0 0.0
    %v4997 = vand.u32 %v17, 4294901760
    %4998 = vmatpush1.msra.mxu0 %v4997
    %4999 = vmatprep.subr.mxu0 0.0
    %5000 = vmatpush1.msra.mxu0 0.0
    %5001 = vmatprep.subr.mxu0 0.0
    %5002 = vmatpush1.msra.mxu0 0.0
    %5003 = vmatprep.subr.mxu0 0.0
    %5004 = vmatpush1.msra.mxu0 0.0
    %5005 = vmatprep.subr.mxu0 0.0
    %5006 = vmatpush1.msra.mxu0 0.0
    %5007 = vmatprep.subr.mxu0 0.0
    %5008 = vmatpush1.msra.mxu0 0.0
    %5009 = vmatprep.subr.mxu0 0.0
    %5010 = vmatpush1.msra.mxu0 0.0
    %5011 = vmatprep.subr.mxu0 0.0
    %5012 = vmatpush1.msra.mxu0 0.0
    %5013 = vmatprep.subr.mxu0 0.0
    %5014 = vmatpush1.msra.mxu0 0.0
    %5015 = vmatprep.subr.mxu0 0.0
    %5016 = vmatpush1.msra.mxu0 0.0
    %5017 = vmatprep.subr.mxu0 0.0
    %5018 = vmatpush1.msra.mxu0 0.0
    %5019 = vmatprep.subr.mxu0 0.0
    %5020 = vmatpush1.msra.mxu0 0.0
    %5021 = vmatprep.subr.mxu0 0.0
    %5022 = vmatpush1.msra.mxu0 0.0
    %5023 = vmatprep.subr.mxu0 0.0
    %5024 = vmatpush1.msra.mxu0 0.0
    %5025 = vmatprep.subr.mxu0 0.0
    %5026 = vmatpush1.msra.mxu0 0.0
    %5027 = vmatprep.subr.mxu0 0.0
    %5028 = vmatpush1.msra.mxu0 0.0
    %5029 = vmatprep.subr.mxu0 0.0
    %5030 = vmatpush1.msra.mxu0 0.0
    %5031 = vmatprep.subr.mxu0 0.0
    %5032 = vmatpush1.msra.mxu0 0.0
    %5033 = vmatprep.subr.mxu0 0.0
    %5034 = vmatpush1.msra.mxu0 0.0
    %5035 = vmatprep.subr.mxu0 0.0
    %5036 = vmatpush1.msra.mxu0 0.0
    %5037 = vmatprep.subr.mxu0 0.0
    %5038 = vmatpush1.msra.mxu0 0.0
    %5039 = vmatprep.subr.mxu0 0.0
    %5040 = vmatpush1.msra.mxu0 0.0
    %5041 = vmatprep.subr.mxu0 0.0
    %5042 = vmatpush1.msra.mxu0 0.0
    %5043 = vmatprep.subr.mxu0 0.0
    %5044 = vmatpush1.msra.mxu0 0.0
    %5045 = vmatprep.subr.mxu0 0.0
    %5046 = vmatpush1.msra.mxu0 0.0
    %5047 = vmatprep.subr.mxu0 0.0
    %5048 = vmatpush1.msra.mxu0 0.0
    %5049 = vmatprep.subr.mxu0 0.0
    %5050 = vmatpush1.msra.mxu0 0.0
    %5051 = vmatprep.subr.mxu0 0.0
    %5052 = vmatpush1.msra.mxu0 0.0
    %5053 = vmatprep.subr.mxu0 0.0
    %5054 = vmatpush1.msra.mxu0 0.0
    %5055 = vmatprep.mubr.f32.mxu0 0.0
    %v5056 = vand.u32 %v4735, 4294901760
    %v5057 = vsub.f32 %v4735, %v5056
    %v5058 = vand.u32 %v5057, 4294901760
    %5059 = vmatmul.mubr.f32.gmra.mrb[0].mxu0 %v5058
    %v5060 = vpop.f32.mrb[0].mxu0
    %v5061 = vadd.f32 %v4984, %v5060
    %v5062 = vpop.f32.mrb[0].mxu0
    %5063 = vdwg.mxu0
    %5064 = vmatprep.subr.mxu0 0.0
    %v5065 = vand.u32 %v14, 4294901760
    %v5066 = vsub.f32 %v14, %v5065
    %v5067 = vand.u32 %v5066, 4294901760
    %5068 = vmatpush1.msra.mxu0 %v5067
    %5069 = vmatprep.subr.mxu0 0.0
    %v5070 = vand.u32 %v15, 4294901760
    %v5071 = vsub.f32 %v15, %v5070
    %v5072 = vand.u32 %v5071, 4294901760
    %5073 = vmatpush1.msra.mxu0 %v5072
    %5074 = vmatprep.subr.mxu0 0.0
    %v5075 = vand.u32 %v16, 4294901760
    %v5076 = vsub.f32 %v16, %v5075
    %v5077 = vand.u32 %v5076, 4294901760
    %5078 = vmatpush1.msra.mxu0 %v5077
    %5079 = vmatprep.subr.mxu0 0.0
    %v5080 = vand.u32 %v17, 4294901760
    %v5081 = vsub.f32 %v17, %v5080
    %v5082 = vand.u32 %v5081, 4294901760
    %5083 = vmatpush1.msra.mxu0 %v5082
    %5084 = vmatprep.subr.mxu0 0.0
    %5085 = vmatpush1.msra.mxu0 0.0
    %5086 = vmatprep.subr.mxu0 0.0
    %5087 = vmatpush1.msra.mxu0 0.0
    %5088 = vmatprep.subr.mxu0 0.0
    %5089 = vmatpush1.msra.mxu0 0.0
    %5090 = vmatprep.subr.mxu0 0.0
    %5091 = vmatpush1.msra.mxu0 0.0
    %5092 = vmatprep.subr.mxu0 0.0
    %5093 = vmatpush1.msra.mxu0 0.0
    %5094 = vmatprep.subr.mxu0 0.0
    %5095 = vmatpush1.msra.mxu0 0.0
    %5096 = vmatprep.subr.mxu0 0.0
    %5097 = vmatpush1.msra.mxu0 0.0
    %5098 = vmatprep.subr.mxu0 0.0
    %5099 = vmatpush1.msra.mxu0 0.0
    %5100 = vmatprep.subr.mxu0 0.0
    %5101 = vmatpush1.msra.mxu0 0.0
    %5102 = vmatprep.subr.mxu0 0.0
    %5103 = vmatpush1.msra.mxu0 0.0
    %5104 = vmatprep.subr.mxu0 0.0
    %5105 = vmatpush1.msra.mxu0 0.0
    %5106 = vmatprep.subr.mxu0 0.0
    %5107 = vmatpush1.msra.mxu0 0.0
    %5108 = vmatprep.subr.mxu0 0.0
    %5109 = vmatpush1.msra.mxu0 0.0
    %5110 = vmatprep.subr.mxu0 0.0
    %5111 = vmatpush1.msra.mxu0 0.0
    %5112 = vmatprep.subr.mxu0 0.0
    %5113 = vmatpush1.msra.mxu0 0.0
    %5114 = vmatprep.subr.mxu0 0.0
    %5115 = vmatpush1.msra.mxu0 0.0
    %5116 = vmatprep.subr.mxu0 0.0
    %5117 = vmatpush1.msra.mxu0 0.0
    %5118 = vmatprep.subr.mxu0 0.0
    %5119 = vmatpush1.msra.mxu0 0.0
    %5120 = vmatprep.subr.mxu0 0.0
    %5121 = vmatpush1.msra.mxu0 0.0
    %5122 = vmatprep.subr.mxu0 0.0
    %5123 = vmatpush1.msra.mxu0 0.0
    %5124 = vmatprep.subr.mxu0 0.0
    %5125 = vmatpush1.msra.mxu0 0.0
    %5126 = vmatprep.subr.mxu0 0.0
    %5127 = vmatpush1.msra.mxu0 0.0
    %5128 = vmatprep.subr.mxu0 0.0
    %5129 = vmatpush1.msra.mxu0 0.0
    %5130 = vmatprep.subr.mxu0 0.0
    %5131 = vmatpush1.msra.mxu0 0.0
    %5132 = vmatprep.subr.mxu0 0.0
    %5133 = vmatpush1.msra.mxu0 0.0
    %5134 = vmatprep.subr.mxu0 0.0
    %5135 = vmatpush1.msra.mxu0 0.0
    %5136 = vmatprep.subr.mxu0 0.0
    %5137 = vmatpush1.msra.mxu0 0.0
    %5138 = vmatprep.subr.mxu0 0.0
    %5139 = vmatpush1.msra.mxu0 0.0
    %5140 = vmatprep.mubr.f32.mxu0 0.0
    %v5141 = vand.u32 %v4735, 4294901760
    %5142 = vmatmul.mubr.f32.gmra.mrb[0].mxu0 %v5141
    %v5143 = vpop.f32.mrb[0].mxu0
    %v5144 = vadd.f32 %v5061, %v5143
    %v5145 = vpop.f32.mrb[0].mxu0
    %5146 = vdwg.mxu0
    %5147 = vmatprep.subr.mxu0 0.0
    %v5148 = vand.u32 %v14, 4294901760
    %5149 = vmatpush1.msra.mxu0 %v5148
    %5150 = vmatprep.subr.mxu0 0.0
    %v5151 = vand.u32 %v15, 4294901760
    %5152 = vmatpush1.msra.mxu0 %v5151
    %5153 = vmatprep.subr.mxu0 0.0
    %v5154 = vand.u32 %v16, 4294901760
    %5155 = vmatpush1.msra.mxu0 %v5154
    %5156 = vmatprep.subr.mxu0 0.0
    %v5157 = vand.u32 %v17, 4294901760
    %5158 = vmatpush1.msra.mxu0 %v5157
    %5159 = vmatprep.subr.mxu0 0.0
    %5160 = vmatpush1.msra.mxu0 0.0
    %5161 = vmatprep.subr.mxu0 0.0
    %5162 = vmatpush1.msra.mxu0 0.0
    %5163 = vmatprep.subr.mxu0 0.0
    %5164 = vmatpush1.msra.mxu0 0.0
    %5165 = vmatprep.subr.mxu0 0.0
    %5166 = vmatpush1.msra.mxu0 0.0
    %5167 = vmatprep.subr.mxu0 0.0
    %5168 = vmatpush1.msra.mxu0 0.0
    %5169 = vmatprep.subr.mxu0 0.0
    %5170 = vmatpush1.msra.mxu0 0.0
    %5171 = vmatprep.subr.mxu0 0.0
    %5172 = vmatpush1.msra.mxu0 0.0
    %5173 = vmatprep.subr.mxu0 0.0
    %5174 = vmatpush1.msra.mxu0 0.0
    %5175 = vmatprep.subr.mxu0 0.0
    %5176 = vmatpush1.msra.mxu0 0.0
    %5177 = vmatprep.subr.mxu0 0.0
    %5178 = vmatpush1.msra.mxu0 0.0
    %5179 = vmatprep.subr.mxu0 0.0
    %5180 = vmatpush1.msra.mxu0 0.0
    %5181 = vmatprep.subr.mxu0 0.0
    %5182 = vmatpush1.msra.mxu0 0.0
    %5183 = vmatprep.subr.mxu0 0.0
    %5184 = vmatpush1.msra.mxu0 0.0
    %5185 = vmatprep.subr.mxu0 0.0
    %5186 = vmatpush1.msra.mxu0 0.0
    %5187 = vmatprep.subr.mxu0 0.0
    %5188 = vmatpush1.msra.mxu0 0.0
    %5189 = vmatprep.subr.mxu0 0.0
    %5190 = vmatpush1.msra.mxu0 0.0
    %5191 = vmatprep.subr.mxu0 0.0
    %5192 = vmatpush1.msra.mxu0 0.0
    %5193 = vmatprep.subr.mxu0 0.0
    %5194 = vmatpush1.msra.mxu0 0.0
    %5195 = vmatprep.subr.mxu0 0.0
    %5196 = vmatpush1.msra.mxu0 0.0
    %5197 = vmatprep.subr.mxu0 0.0
    %5198 = vmatpush1.msra.mxu0 0.0
    %5199 = vmatprep.subr.mxu0 0.0
    %5200 = vmatpush1.msra.mxu0 0.0
    %5201 = vmatprep.subr.mxu0 0.0
    %5202 = vmatpush1.msra.mxu0 0.0
    %5203 = vmatprep.subr.mxu0 0.0
    %5204 = vmatpush1.msra.mxu0 0.0
    %5205 = vmatprep.subr.mxu0 0.0
    %5206 = vmatpush1.msra.mxu0 0.0
    %5207 = vmatprep.subr.mxu0 0.0
    %5208 = vmatpush1.msra.mxu0 0.0
    %5209 = vmatprep.subr.mxu0 0.0
    %5210 = vmatpush1.msra.mxu0 0.0
    %5211 = vmatprep.subr.mxu0 0.0
    %5212 = vmatpush1.msra.mxu0 0.0
    %5213 = vmatprep.subr.mxu0 0.0
    %5214 = vmatpush1.msra.mxu0 0.0
    %5215 = vmatprep.mubr.f32.mxu0 0.0
    %v5216 = vand.u32 %v4735, 4294901760
    %5217 = vmatmul.mubr.f32.gmra.mrb[0].mxu0 %v5216
    %v5218 = vpop.f32.mrb[0].mxu0
    %v5219 = vadd.f32 %v5144, %v5218
    %v5220 = vpop.f32.mrb[0].mxu0
    %5221 = vdwg.mxu0
    %v5222 = vadd.f32 %v1078, %v5219
    %v5223 = vxor.u32 %v5222, 2147483648
    %v5224 = vmul.f32 %v5223, 1.442695
    %v5225 = vpow.pop %v5224
    %v5226 = vadd.f32 %v5225, 1.0
    %v5227 = vrcp.pop %v5226
    %v5228 = vmul.f32 1.0, %v5227
    %v5229 = vtanh.pop %v5222
    %v5231 = vrot.slane %v4724, 2
    %v5233 = vmul.f32 %v5228, %v5231
    %5235 = vrot.lane.b32.xlu0 %v5229, 64
    %v5236 = vpop.permute.xlu0 %5235
    %v5238 = vmul.f32 %v5228, %v5236
    %5240 = vrot.lane.b32.xlu0 %v5238, 32
    %v5241 = vpop.permute.xlu0 %5240
    %v5243 = vadd.f32 %v5233, %v5241
    %v5244 = vtanh.pop %v5243
    %5246 = vrot.lane.b32.xlu0 %v5244, 64
    %v5247 = vpop.permute.xlu0 %5246
    %v5249 = vmul.f32 %v5228, %v5247
    %5251 = vrot.lane.b32.xlu0 %v5249, 32
    %v5252 = vpop.permute.xlu0 %5251
    %vm5254 = vcmask 254976
    %5255 = vst.msk [vmem:[#allocation4] sm:$0x3] %vm5254, %v5252
    // Predicated region
    $region6: #{encoder_forward.1} parent=1 // pred_check
      _
    $region7: #{encoder_forward.1} parent=1 // pred_check_branch
      %5257 = sbr.rel (0) target = $region9
    $region8: #{encoder_forward.1} parent=1 // pred_region
      %s5259 = ssub.s32 256, 256
      %5260 = vsyncadd [#allocation3], %s5259
      %s5261 = sshll.u32 [#allocation2], 4
      %s5262 = int_to_ptr.vmem [resolvable:$true] %s5261
      %5267 = dma.vmem_to_hbm [thread:$0]  %s5262, 256, %s1, [#allocation3], 128, 128, 8
    $region9: #{encoder_forward.1} parent=1 // pred_fallthru
      _
    // Predicated region
    $region10: #{encoder_forward.1} parent=1 // pred_check
      _
    $region11: #{encoder_forward.1} parent=1 // pred_check_branch
      %5269 = sbr.rel (0) target = $region13
    $region12: #{encoder_forward.1} parent=1 // pred_region
      %s5271 = ssub.s32 32, 32
      %5272 = vsyncadd [#allocation5], %s5271
      %s5274 = sshll.u32 [#allocation4], 4
      %s5275 = int_to_ptr.vmem [resolvable:$true] %s5274
      %5277 = dma.vmem_to_hbm [thread:$0]  %s5275, 32, %s2, [#allocation5]
    $region13: #{encoder_forward.1} parent=1 // pred_fallthru
      _
    // Predicated region
    $region14: #{encoder_forward.1} parent=1 // pred_check
      _
    $region15: #{encoder_forward.1} parent=1 // pred_check_branch
      %5279 = sbr.rel (0) target = $region17
    $region16: #{encoder_forward.1} parent=1 // pred_region
      %5280 = dma.done [#allocation3], 256
    $region17: #{encoder_forward.1} parent=1 // pred_fallthru
      _
    // Predicated region
    $region18: #{encoder_forward.1} parent=1 // pred_check
      _
    $region19: #{encoder_forward.1} parent=1 // pred_check_branch
      %5282 = sbr.rel (0) target = $region21
    $region20: #{encoder_forward.1} parent=1 // pred_region
      %5283 = dma.done [#allocation5], 32
    $region21: #{encoder_forward.1} parent=1 // pred_fallthru
      _
    %5284 = vsyncpa [#allocation3], 1
    %5285 = vsyncpa [#allocation5], 1

</llo_original>
